<compile_context>
chip_gen: v5e
topology: v5e:2x2
jax: 0.10.0
libtpu: 0.0.40
codegen_flags: <defaults>
</compile_context>

<pallas_src>
import numpy as np
import jax
import jax.numpy as jnp
from jax.experimental import pallas as pl
from jax.experimental.pallas import tpu as pltpu

MASK_VALUE = -1e30


def _round_up(x, m):
    return ((x + m - 1) // m) * m


def get_rotary_matrix(context_window, embedding_dim):
    # Identical construction to the PyTorch helper (including the (i - 1) quirk).
    # Used only by the pure-JAX reference; the kernel uses cos/signed-sin tables.
    R = np.zeros((context_window, embedding_dim, embedding_dim), dtype=np.float32)
    for position in range(context_window):
        for i in range(embedding_dim // 2):
            theta = 10000.0 ** (-2.0 * (i - 1) / embedding_dim)
            m_theta = position * theta
            R[position, 2 * i, 2 * i] = np.cos(m_theta)
            R[position, 2 * i, 2 * i + 1] = -np.sin(m_theta)
            R[position, 2 * i + 1, 2 * i] = np.sin(m_theta)
            R[position, 2 * i + 1, 2 * i + 1] = np.cos(m_theta)
    return jnp.asarray(R)


def prepare_params(params, *, matmul_dtype=jnp.bfloat16, v_tile=None):
    """One-time weight packing (runs once, NOT per forward call).

    - Permutes Q/K weight columns into rotate-half layout and folds 1/sqrt(D)
      into Q, so in-kernel RoPE is q*cos + roll(q, D/2)*signed_sin.
    - Packs [Q | K | V] into a single (D, 3*H*D) matrix for one fused matmul.
    - Builds cos / signed-sin tables (PyTorch (i - 1) theta quirk preserved).
    - Pads the LM-head weight to a lane-dense multiple of v_tile.
    """
    cdt = matmul_dtype
    H, D, _ = params['wq'].shape
    S = params['scale'].shape[0]
    V = params['wlast'].shape[-1]

    # rotate-half permutation of output dims: [0,2,4,... | 1,3,5,...]
    perm = np.concatenate([np.arange(0, D, 2), np.arange(1, D, 2)])
    inv_sqrt_d = 1.0 / np.sqrt(D)

    wq = np.asarray(params['wq'])[..., perm] * np.float32(inv_sqrt_d)  # scale folded
    wk = np.asarray(params['wk'])[..., perm]
    wv = np.asarray(params['wv'])

    def group(w):                       # (H, D, D) -> (D, H*D), head-major columns
        return np.transpose(w, (1, 0, 2)).reshape(D, H * D)

    wqkv = np.concatenate([group(wq), group(wk), group(wv)], axis=1)   # (D, 3*H*D)

    # cos / signed-sin tables in rotate-half layout (same (i - 1) quirk as torch).
    half = D // 2
    i = np.arange(half, dtype=np.float64)
    theta = 10000.0 ** (-2.0 * (i - 1) / D)
    ang = np.arange(S, dtype=np.float64)[:, None] * theta[None, :]     # (S, half)
    cos_t = np.concatenate([np.cos(ang), np.cos(ang)], axis=-1)        # (S, D)
    ssin_t = np.concatenate([np.sin(ang), -np.sin(ang)], axis=-1)      # sign folded

    # LM-head vocab padding to a lane-dense tile (multiple of 128).
    if v_tile is None:
        # <=512 keeps v7x's 64 MiB/TC happy; bump to 1024-2048 on v5e/v6e.
        v_tile = min(512, _round_up(V, 128))
    assert v_tile % 128 == 0
    Vp = _round_up(V, v_tile)
    wlast_p = np.zeros((D, Vp), np.float32)
    wlast_p[:, :V] = np.asarray(params['wlast'])
    blast_p = np.zeros((1, Vp), np.float32)
    blast_p[:, :V] = np.asarray(params['blast'])

    return {
        'embedding': params['embedding'],
        'scale': params['scale'],
        'cos': jnp.asarray(cos_t, dtype=jnp.float32),
        'ssin': jnp.asarray(ssin_t, dtype=jnp.float32),
        'wqkv': jnp.asarray(wqkv, dtype=cdt),
        'wo': params['wo'].astype(cdt),
        'bo': params['bo'],
        'w1': params['w1'].astype(cdt),
        'b1': params['b1'],
        'wg': params['wg'].astype(cdt),
        'bg': params['bg'],
        'wl': params['wl'].astype(cdt),
        'bl': params['bl'],
        'beta': params['beta'],
        'wlast': jnp.asarray(wlast_p, dtype=cdt),
        'blast': jnp.asarray(blast_p, dtype=jnp.float32),
        'matmul_dtype': cdt,
        'v_tile': int(v_tile),
        'vocab_size': int(V),
        'n_heads': int(H),
    }


def rope_model_kernel(emb_ref, scale_ref, cos_ref, ssin_ref,
                      wqkv_ref, wo_ref, bo_ref,
                      w1_ref, b1_ref, wg_ref, bg_ref, wl_ref, bl_ref,
                      beta_ref, wlast_ref, blast_ref,
                      out_ref, x4_ref):
    S, D = scale_ref.shape
    HD = wo_ref.shape[0]
    H = HD // D
    cdt = wqkv_ref.dtype                 # matmul compute dtype (bf16 or f32)
    b = pl.program_id(1)                 # grid = (num_v, B): batch is innermost

    # ---- trunk: RMSNorm + RoPE masked MHA + RMSNorm + SwiGLU FFN ----
    # Runs once per batch element (first vocab tile); result carried in x4_ref[b]
    # across all vocab tiles so the LM-head weight tile is reused over the batch.
    @pl.when(pl.program_id(0) == 0)
    def _trunk():
        x = emb_ref[...]                  # (S, D)
        scale = scale_ref[...]            # (S, D)
        cos_t = cos_ref[...]              # (S, D)  rotate-half layout
        ssin_t = ssin_ref[...]            # (S, D)  sign already folded in

        def rmsnorm(v):
            # torch: ||v||_F * (S*D)^(-1/2), then scale * (v / ff_rms)
            inv_rms = jax.lax.rsqrt(jnp.sum(v * v) * (1.0 / (S * D)))
            return scale * (v * inv_rms)

        def rotate_half(v):
            # RoPE partner in rotate-half layout; sign lives in ssin_t.
            if D % 256 == 0:
                return pltpu.roll(v, shift=D // 2, axis=-1)   # XLU slot (free under MXU)
            # lane-unaligned (toy) sizes: slice+concat instead of a lane rotate
            return jnp.concatenate([v[:, D // 2:], v[:, :D // 2]], axis=-1)

        x1 = rmsnorm(x)
        x1_c = x1.astype(cdt)

        # Fused QKV projection: ONE lane-dense MXU matmul against (D, 3*H*D).
        # Column layout: [Q heads | K heads | V heads]; Q columns already carry
        # the 1/sqrt(D) attention scale.
        qkv = jnp.dot(x1_c, wqkv_ref[...], preferred_element_type=jnp.float32)

        row = jax.lax.broadcasted_iota(jnp.int32, (S, S), 0)
        col = jax.lax.broadcasted_iota(jnp.int32, (S, S), 1)
        causal = row >= col               # built once, shared by all heads

        heads = []
        for h in range(H):                # static unroll over heads
            q = qkv[:, h * D:(h + 1) * D]
            k = qkv[:, HD + h * D:HD + (h + 1) * D]
            v = qkv[:, 2 * HD + h * D:2 * HD + (h + 1) * D]

            # elementwise RoPE: q*cos + roll(q)*signed_sin (no extra MXU matmul)
            q_rot = q * cos_t + rotate_half(q) * ssin_t
            k_rot = k * cos_t + rotate_half(k) * ssin_t

            scores = jnp.dot(q_rot.astype(cdt), k_rot.astype(cdt).T,
                             preferred_element_type=jnp.float32)
            scores = jnp.where(causal, scores, MASK_VALUE)
            scores = scores - jnp.max(scores, axis=-1, keepdims=True)
            p = jnp.exp(scores)
            p = p * pl.reciprocal(jnp.sum(p, axis=-1, keepdims=True), approx=True)

            heads.append(jnp.dot(p.astype(cdt), v.astype(cdt),
                                 preferred_element_type=jnp.float32))

        # One batched output projection (K = H*D) instead of H small matmuls.
        hc = jnp.concatenate(heads, axis=-1).astype(cdt)       # (S, H*D) staging
        attn = jnp.dot(hc, wo_ref[...],
                       preferred_element_type=jnp.float32) + bo_ref[...]
        x2 = x1 + attn

        # ---- second RMSNorm + Sequential(Linear, SwiGLU) + residual ----
        x3 = rmsnorm(x2)
        x3_c = x3.astype(cdt)
        h1 = jnp.dot(x3_c, w1_ref[...], preferred_element_type=jnp.float32) + b1_ref[...]
        h1_c = h1.astype(cdt)
        g = jnp.dot(h1_c, wg_ref[...], preferred_element_type=jnp.float32) + bg_ref[...]
        lin = jnp.dot(h1_c, wl_ref[...], preferred_element_type=jnp.float32) + bl_ref[...]
        beta = beta_ref[0]
        swish_gate = g * jax.nn.sigmoid(beta * g)
        # f32 scratch; on v7x this could be stored as bf16 to shave VMEM.
        x4_ref[b] = (x3 + swish_gate * lin).astype(x4_ref.dtype)

    # ---- LM head: one lane-dense vocab tile, reused across the whole batch ----
    out_ref[...] = (jnp.dot(x4_ref[b].astype(cdt), wlast_ref[...],
                            preferred_element_type=jnp.float32)
                    + blast_ref[...]).astype(out_ref.dtype)


def rope_model_forward(idx, packed, *, logits_dtype=jnp.float32):
    # TODO(synk): embedding gather (nn.Embedding) stays as plain-JAX glue.
    emb = packed['embedding'][idx]            # (B, S, D)
    B, S, D = emb.shape
    H = packed['n_heads']
    V = packed['vocab_size']
    v_tile = packed['v_tile']
    Vp = packed['wlast'].shape[-1]
    num_v = Vp // v_tile
    cdt = packed['matmul_dtype']

    args = (emb, packed['scale'], packed['cos'], packed['ssin'],
            packed['wqkv'], packed['wo'], packed['bo'],
            packed['w1'], packed['b1'], packed['wg'], packed['bg'],
            packed['wl'], packed['bl'], packed['beta'],
            packed['wlast'], packed['blast'])

    flops = int(B * (2 * S * D * (3 * H * D)          # fused QKV projection
                     + H * 4 * S * S * D              # scores + p@v per head
                     + 2 * S * (H * D) * D            # batched output projection
                     + 3 * 2 * S * D * D              # ffn matmuls
                     + 2 * S * D * Vp))               # lm head
    transcendentals = int(B * (H * S * S + S * D))
    bytes_accessed = int(sum(int(a.size) * a.dtype.itemsize for a in args)
                         + (num_v - 1) * int(emb.size) * emb.dtype.itemsize
                         + B * S * Vp * jnp.dtype(logits_dtype).itemsize)

    def run(single_buffer):
        def fixed(shape):
            # Grid-invariant block: constant index map; single-buffer it so the
            # pipeline doesn't double its VMEM residency for zero overlap gain.
            nd = len(shape)
            index_map = lambda v, b, _nd=nd: (0,) * _nd
            if single_buffer:
                try:
                    return pl.BlockSpec(shape, index_map,
                                        pipeline_mode=pl.Buffered(1))
                except TypeError:
                    pass
            return pl.BlockSpec(shape, index_map)

        in_specs = [
            pl.BlockSpec((None, S, D), lambda v, b: (b, 0, 0)),      # emb (per-batch)
            fixed((S, D)),                                           # rms scale
            fixed((S, D)),                                           # cos table
            fixed((S, D)),                                           # signed-sin table
            fixed((D, 3 * H * D)),                                   # packed QKV W
            fixed((H * D, D)),                                       # out-proj W
            fixed((1, D)),                                           # out-proj b
            fixed((D, D)),                                           # ffn linear1 W
            fixed((1, D)),                                           # ffn linear1 b
            fixed((D, D)),                                           # swiglu gate W
            fixed((1, D)),                                           # swiglu gate b
            fixed((D, D)),                                           # swiglu linear W
            fixed((1, D)),                                           # swiglu linear b
            pl.BlockSpec(memory_space=pltpu.MemorySpace.SMEM),       # beta (scalar)
            pl.BlockSpec((D, v_tile), lambda v, b: (0, v)),          # lm head W tile
            pl.BlockSpec((1, v_tile), lambda v, b: (0, v)),          # lm head b tile
        ]
        out_spec = pl.BlockSpec((None, S, v_tile), lambda v, b: (b, 0, v))

        return pl.pallas_call(
            rope_model_kernel,
            out_shape=jax.ShapeDtypeStruct((B, S, Vp), logits_dtype),
            grid_spec=pltpu.PrefetchScalarGridSpec(
                num_scalar_prefetch=0,
                # vocab-major grid: each wlast tile is fetched once and reused
                # across the whole batch (batch axis innermost & parallel).
                grid=(num_v, B),
                in_specs=in_specs,
                out_specs=out_spec,
                # per-batch trunk outputs carried across vocab tiles
                scratch_shapes=[pltpu.VMEM((B, S, D), jnp.float32)],
            ),
            compiler_params=pltpu.CompilerParams(
                dimension_semantics=("arbitrary", "parallel")),
            cost_estimate=pl.CostEstimate(flops=flops,
                                          transcendentals=transcendentals,
                                          bytes_accessed=bytes_accessed),
        )(*args)

    try:
        logits_p = jax.block_until_ready(run(True))
    except Exception:
        # Fallback if this jax build rejects single-buffered (Buffered(1)) specs.
        logits_p = run(False)
    return logits_p[..., :V]                # drop lane padding


def init_params(key, vocab_size, context_window, d_model, n_heads):
    ks = jax.random.split(key, 16)
    std = 1.0 / np.sqrt(d_model)
    f32 = jnp.float32
    return {
        'embedding': jax.random.normal(ks[0], (vocab_size, d_model), f32),
        'scale': 1.0 + 0.1 * jax.random.normal(ks[1], (context_window, d_model), f32),
        'R': get_rotary_matrix(context_window, d_model),        # reference only
        'wq': std * jax.random.normal(ks[2], (n_heads, d_model, d_model), f32),
        'wk': std * jax.random.normal(ks[3], (n_heads, d_model, d_model), f32),
        'wv': std * jax.random.normal(ks[4], (n_heads, d_model, d_model), f32),
        'wo': std * jax.random.normal(ks[5], (n_heads * d_model, d_model), f32),
        'bo': 0.1 * jax.random.normal(ks[6], (1, d_model), f32),
        'w1': std * jax.random.normal(ks[7], (d_model, d_model), f32),
        'b1': 0.1 * jax.random.normal(ks[8], (1, d_model), f32),
        'wg': std * jax.random.normal(ks[9], (d_model, d_model), f32),
        'bg': 0.1 * jax.random.normal(ks[10], (1, d_model), f32),
        'wl': std * jax.random.normal(ks[11], (d_model, d_model), f32),
        'bl': 0.1 * jax.random.normal(ks[12], (1, d_model), f32),
        'beta': jnp.ones((1,), f32),
        'wlast': std * jax.random.normal(ks[13], (d_model, vocab_size), f32),
        'blast': 0.1 * jax.random.normal(ks[14], (1, vocab_size), f32),
    }


def reference_forward(idx, params):
    # Pure-JAX reference mirroring the PyTorch forward (eval mode, no dropout),
    # using the explicit (S, D, D) rotation matrices -- validates the rotate-half
    # permutation / signed-sin / scale-fold refactor inside the kernel.
    emb = params['embedding'][idx]
    B, S, D = emb.shape
    scale, R = params['scale'], params['R']

    def rms(x):
        ff = jnp.sqrt(jnp.sum(x * x, axis=(1, 2)) / (S * D))
        return scale[None] * (x / ff[:, None, None])

    x1 = rms(emb)
    H = params['wq'].shape[0]
    inv = 1.0 / np.sqrt(D)
    causal = np.tril(np.ones((S, S), dtype=bool))
    heads = []
    for h in range(H):
        q = x1 @ params['wq'][h]
        k = x1 @ params['wk'][h]
        v = x1 @ params['wv'][h]
        q_rot = jnp.einsum('bsd,sde->bse', q, R)
        k_rot = jnp.einsum('bsd,sde->bse', k, R)
        s_ = jnp.einsum('bqd,bkd->bqk', q_rot, k_rot) * inv
        s_ = jnp.where(causal[None], s_, MASK_VALUE)
        p = jax.nn.softmax(s_, axis=-1)
        heads.append(jnp.einsum('bqk,bkd->bqd', p, v))
    hc = jnp.concatenate(heads, axis=-1)
    x2 = x1 + (hc @ params['wo'] + params['bo'])
    x3 = rms(x2)
    h1 = x3 @ params['w1'] + params['b1']
    g = h1 @ params['wg'] + params['bg']
    lin = h1 @ params['wl'] + params['bl']
    beta = params['beta'][0]
    x4 = x3 + (g * jax.nn.sigmoid(beta * g)) * lin
    return x4 @ params['wlast'] + params['blast']


if __name__ == "__main__":
    config = {'vocab_size': 32, 'd_model': 32, 'n_heads': 2,
              'context_window': 8, 'batch_size': 2}

    key = jax.random.PRNGKey(0)
    kp, ki = jax.random.split(key)
    params = init_params(kp, config['vocab_size'], config['context_window'],
                         config['d_model'], config['n_heads'])
    idx = jax.random.randint(ki, (config['batch_size'], config['context_window']),
                             0, config['vocab_size'], dtype=jnp.int32)

    ref = reference_forward(idx, params)

    # f32 MXU path: strict check against the explicit-R reference.
    packed_f32 = prepare_params(params, matmul_dtype=jnp.float32)
    logits = jax.block_until_ready(rope_model_forward(idx, packed_f32))
    assert logits.shape == (config['batch_size'], config['context_window'],
                            config['vocab_size'])
    err = float(jnp.max(jnp.abs(logits - ref)))
    if not np.isfinite(err) or err > 5e-2:
        raise AssertionError(f"f32 mismatch vs reference: max abs err = {err}")

    # bf16 MXU path (default, f32 accumulation) -- the recommended mode for
    # v5e/v6e/v7x; loose tolerance check.
    packed_bf16 = prepare_params(params, matmul_dtype=jnp.bfloat16)
    logits_bf16 = jax.block_until_ready(rope_model_forward(idx, packed_bf16))
    err_bf16 = float(jnp.max(jnp.abs(logits_bf16 - ref)))
    if not np.isfinite(err_bf16) or err_bf16 > 5e-1:
        raise AssertionError(f"bf16 mismatch vs reference: max abs err = {err_bf16}")

    print("KERNEL_OK")
</pallas_src>

<mosaic_0001>
module attributes {stable_mosaic.version = 11 : i64} {
  func.func @rope_model_kernel(%arg0: i32, %arg1: i32, %arg2: memref<1x8x32xf32, #tpu.memory_space<vmem>>, %arg3: memref<8x32xf32, #tpu.memory_space<vmem>>, %arg4: memref<8x32xf32, #tpu.memory_space<vmem>>, %arg5: memref<8x32xf32, #tpu.memory_space<vmem>>, %arg6: memref<32x192xf32, #tpu.memory_space<vmem>>, %arg7: memref<64x32xf32, #tpu.memory_space<vmem>>, %arg8: memref<1x32xf32, #tpu.memory_space<vmem>>, %arg9: memref<32x32xf32, #tpu.memory_space<vmem>>, %arg10: memref<1x32xf32, #tpu.memory_space<vmem>>, %arg11: memref<32x32xf32, #tpu.memory_space<vmem>>, %arg12: memref<1x32xf32, #tpu.memory_space<vmem>>, %arg13: memref<32x32xf32, #tpu.memory_space<vmem>>, %arg14: memref<1x32xf32, #tpu.memory_space<vmem>>, %arg15: memref<1xf32, #tpu.memory_space<smem>>, %arg16: memref<32x128xf32, #tpu.memory_space<vmem>>, %arg17: memref<1x128xf32, #tpu.memory_space<vmem>>, %arg18: memref<1x8x128xf32, #tpu.memory_space<vmem>>, %arg19: memref<2x8x32xf32, #tpu.memory_space<vmem>>) attributes {dimension_semantics = [#tpu.dimension_semantics<arbitrary>, #tpu.dimension_semantics<parallel>], iteration_bounds = array<i64: 1, 2>, scalar_prefetch = 0 : i64, scratch_operands = 1 : i64, tpu.core_type = #tpu.core_type<tc>, window_params = [{transform_indices = @transform_0, window_bounds = array<i64: 1, 8, 32>}, {pipeline_mode = #tpu.pipeline_mode<synchronous>, transform_indices = @transform_1, window_bounds = array<i64: 8, 32>}, {pipeline_mode = #tpu.pipeline_mode<synchronous>, transform_indices = @transform_2, window_bounds = array<i64: 8, 32>}, {pipeline_mode = #tpu.pipeline_mode<synchronous>, transform_indices = @transform_3, window_bounds = array<i64: 8, 32>}, {pipeline_mode = #tpu.pipeline_mode<synchronous>, transform_indices = @transform_4, window_bounds = array<i64: 32, 192>}, {pipeline_mode = #tpu.pipeline_mode<synchronous>, transform_indices = @transform_5, window_bounds = array<i64: 64, 32>}, {pipeline_mode = #tpu.pipeline_mode<synchronous>, transform_indices = @transform_6, window_bounds = array<i64: 1, 32>}, {pipeline_mode = #tpu.pipeline_mode<synchronous>, transform_indices = @transform_7, window_bounds = array<i64: 32, 32>}, {pipeline_mode = #tpu.pipeline_mode<synchronous>, transform_indices = @transform_8, window_bounds = array<i64: 1, 32>}, {pipeline_mode = #tpu.pipeline_mode<synchronous>, transform_indices = @transform_9, window_bounds = array<i64: 32, 32>}, {pipeline_mode = #tpu.pipeline_mode<synchronous>, transform_indices = @transform_10, window_bounds = array<i64: 1, 32>}, {pipeline_mode = #tpu.pipeline_mode<synchronous>, transform_indices = @transform_11, window_bounds = array<i64: 32, 32>}, {pipeline_mode = #tpu.pipeline_mode<synchronous>, transform_indices = @transform_12, window_bounds = array<i64: 1, 32>}, {transform_indices = @transform_13, window_bounds = array<i64: 1>}, {transform_indices = @transform_14, window_bounds = array<i64: 32, 128>}, {transform_indices = @transform_15, window_bounds = array<i64: 1, 128>}, {transform_indices = @transform_16, window_bounds = array<i64: 1, 8, 128>}]} {
    %c0_i32 = arith.constant 0 : i32
    %0 = arith.cmpi eq, %arg0, %c0_i32 : i32
    %1 = arith.extui %0 : i1 to i32
    %c0_i32_0 = arith.constant 0 : i32
    %2 = arith.cmpi ne, %1, %c0_i32_0 : i32
    scf.if %2 {
      %c0_9 = arith.constant 0 : index
      %c0_10 = arith.constant 0 : index
      %c0_11 = arith.constant 0 : index
      %14 = vector.load %arg2[%c0_9, %c0_10, %c0_11] : memref<1x8x32xf32, #tpu.memory_space<vmem>>, vector<1x8x32xf32>
      %15 = vector.shape_cast %14 : vector<1x8x32xf32> to vector<8x32xf32>
      %c0_12 = arith.constant 0 : index
      %c0_13 = arith.constant 0 : index
      %16 = vector.load %arg3[%c0_12, %c0_13] : memref<8x32xf32, #tpu.memory_space<vmem>>, vector<8x32xf32>
      %c0_14 = arith.constant 0 : index
      %c0_15 = arith.constant 0 : index
      %17 = vector.load %arg4[%c0_14, %c0_15] : memref<8x32xf32, #tpu.memory_space<vmem>>, vector<8x32xf32>
      %c0_16 = arith.constant 0 : index
      %c0_17 = arith.constant 0 : index
      %18 = vector.load %arg5[%c0_16, %c0_17] : memref<8x32xf32, #tpu.memory_space<vmem>>, vector<8x32xf32>
      %19 = arith.mulf %15, %15 : vector<8x32xf32>
      %20 = vector.shape_cast %19 : vector<8x32xf32> to vector<1x8x32xf32>
      %cst_18 = arith.constant dense<0.000000e+00> : vector<1xf32>
      %21 = vector.multi_reduction <add>, %20, %cst_18 [1, 2] : vector<1x8x32xf32> to vector<1xf32>
      %22 = vector.shape_cast %21 : vector<1xf32> to vector<1x1x1xf32>
      %23 = vector.extract %22[0, 0, 0] : f32 from vector<1x1x1xf32>
      %cst_19 = arith.constant 3.906250e-03 : f32
      %24 = arith.mulf %23, %cst_19 : f32
      %25 = math.rsqrt %24 : f32
      %26 = vector.broadcast %25 : f32 to vector<8x32xf32>
      %27 = arith.mulf %15, %26 : vector<8x32xf32>
      %28 = arith.mulf %16, %27 : vector<8x32xf32>
      %c0_20 = arith.constant 0 : index
      %c0_21 = arith.constant 0 : index
      %29 = vector.load %arg6[%c0_20, %c0_21] : memref<32x192xf32, #tpu.memory_space<vmem>>, vector<32x192xf32>
      %cst_22 = arith.constant dense<0.000000e+00> : vector<8x192xf32>
      %30 = tpu.matmul %28, %29, %cst_22 {dimension_numbers = #tpu.dot_dimension_numbers<[1], [0], [0], [1], [0, 0, 1, 1], [], []>} : vector<8x32xf32>, vector<32x192xf32>, vector<8x192xf32> -> vector<8x192xf32>
      %31 = tpu.iota {dimensions = array<i32: 0>} : vector<8x8xi32>
      %32 = tpu.iota {dimensions = array<i32: 1>} : vector<8x8xi32>
      %33 = arith.cmpi sge, %31, %32 : vector<8x8xi32>
      %34 = vector.extract_strided_slice %30 {offsets = [0, 0], sizes = [8, 32], strides = [1, 1]} : vector<8x192xf32> to vector<8x32xf32>
      %35 = vector.extract_strided_slice %30 {offsets = [0, 64], sizes = [8, 32], strides = [1, 1]} : vector<8x192xf32> to vector<8x32xf32>
      %36 = vector.extract_strided_slice %30 {offsets = [0, 128], sizes = [8, 32], strides = [1, 1]} : vector<8x192xf32> to vector<8x32xf32>
      %37 = arith.mulf %34, %17 : vector<8x32xf32>
      %38 = vector.extract_strided_slice %34 {offsets = [0, 16], sizes = [8, 16], strides = [1, 1]} : vector<8x32xf32> to vector<8x16xf32>
      %39 = vector.extract_strided_slice %34 {offsets = [0, 0], sizes = [8, 16], strides = [1, 1]} : vector<8x32xf32> to vector<8x16xf32>
      %40 = tpu.concatenate %38, %39 in 1 : vector<8x16xf32>, vector<8x16xf32> -> vector<8x32xf32>
      %41 = arith.mulf %40, %18 : vector<8x32xf32>
      %42 = arith.addf %37, %41 : vector<8x32xf32>
      %43 = arith.mulf %35, %17 : vector<8x32xf32>
      %44 = vector.extract_strided_slice %35 {offsets = [0, 16], sizes = [8, 16], strides = [1, 1]} : vector<8x32xf32> to vector<8x16xf32>
      %45 = vector.extract_strided_slice %35 {offsets = [0, 0], sizes = [8, 16], strides = [1, 1]} : vector<8x32xf32> to vector<8x16xf32>
      %46 = tpu.concatenate %44, %45 in 1 : vector<8x16xf32>, vector<8x16xf32> -> vector<8x32xf32>
      %47 = arith.mulf %46, %18 : vector<8x32xf32>
      %48 = arith.addf %43, %47 : vector<8x32xf32>
      %49 = tpu.transpose %48, [1, 0] : vector<8x32xf32> -> vector<32x8xf32>
      %cst_23 = arith.constant dense<0.000000e+00> : vector<8x8xf32>
      %50 = tpu.matmul %42, %49, %cst_23 {dimension_numbers = #tpu.dot_dimension_numbers<[1], [0], [0], [1], [0, 0, 1, 1], [], []>} : vector<8x32xf32>, vector<32x8xf32>, vector<8x8xf32> -> vector<8x8xf32>
      %cst_24 = arith.constant -1.000000e+30 : f32
      %51 = vector.broadcast %cst_24 : f32 to vector<8x8xf32>
      %52 = arith.select %33, %50, %51 : vector<8x8xi1>, vector<8x8xf32>
      %cst_25 = arith.constant dense<0xFF800000> : vector<8xf32>
      %53 = vector.multi_reduction <maximumf>, %52, %cst_25 [1] : vector<8x8xf32> to vector<8xf32>
      %54 = vector.shape_cast %53 : vector<8xf32> to vector<8x1xf32>
      %55 = vector.broadcast %54 : vector<8x1xf32> to vector<8x8xf32>
      %56 = arith.subf %52, %55 : vector<8x8xf32>
      %57 = math.exp %56 : vector<8x8xf32>
      %cst_26 = arith.constant dense<0.000000e+00> : vector<8xf32>
      %58 = vector.multi_reduction <add>, %57, %cst_26 [1] : vector<8x8xf32> to vector<8xf32>
      %59 = vector.shape_cast %58 : vector<8xf32> to vector<8x1xf32>
      %60 = tpu.reciprocal %59 {approx = true} : vector<8x1xf32> -> vector<8x1xf32>
      %61 = vector.broadcast %60 : vector<8x1xf32> to vector<8x8xf32>
      %62 = arith.mulf %57, %61 : vector<8x8xf32>
      %cst_27 = arith.constant dense<0.000000e+00> : vector<8x32xf32>
      %63 = tpu.matmul %62, %36, %cst_27 {dimension_numbers = #tpu.dot_dimension_numbers<[1], [0], [0], [1], [0, 0, 1, 1], [], []>} : vector<8x8xf32>, vector<8x32xf32>, vector<8x32xf32> -> vector<8x32xf32>
      %64 = vector.extract_strided_slice %30 {offsets = [0, 32], sizes = [8, 32], strides = [1, 1]} : vector<8x192xf32> to vector<8x32xf32>
      %65 = vector.extract_strided_slice %30 {offsets = [0, 96], sizes = [8, 32], strides = [1, 1]} : vector<8x192xf32> to vector<8x32xf32>
      %66 = vector.extract_strided_slice %30 {offsets = [0, 160], sizes = [8, 32], strides = [1, 1]} : vector<8x192xf32> to vector<8x32xf32>
      %67 = arith.mulf %64, %17 : vector<8x32xf32>
      %68 = vector.extract_strided_slice %64 {offsets = [0, 16], sizes = [8, 16], strides = [1, 1]} : vector<8x32xf32> to vector<8x16xf32>
      %69 = vector.extract_strided_slice %64 {offsets = [0, 0], sizes = [8, 16], strides = [1, 1]} : vector<8x32xf32> to vector<8x16xf32>
      %70 = tpu.concatenate %68, %69 in 1 : vector<8x16xf32>, vector<8x16xf32> -> vector<8x32xf32>
      %71 = arith.mulf %70, %18 : vector<8x32xf32>
      %72 = arith.addf %67, %71 : vector<8x32xf32>
      %73 = arith.mulf %65, %17 : vector<8x32xf32>
      %74 = vector.extract_strided_slice %65 {offsets = [0, 16], sizes = [8, 16], strides = [1, 1]} : vector<8x32xf32> to vector<8x16xf32>
      %75 = vector.extract_strided_slice %65 {offsets = [0, 0], sizes = [8, 16], strides = [1, 1]} : vector<8x32xf32> to vector<8x16xf32>
      %76 = tpu.concatenate %74, %75 in 1 : vector<8x16xf32>, vector<8x16xf32> -> vector<8x32xf32>
      %77 = arith.mulf %76, %18 : vector<8x32xf32>
      %78 = arith.addf %73, %77 : vector<8x32xf32>
      %79 = tpu.transpose %78, [1, 0] : vector<8x32xf32> -> vector<32x8xf32>
      %cst_28 = arith.constant dense<0.000000e+00> : vector<8x8xf32>
      %80 = tpu.matmul %72, %79, %cst_28 {dimension_numbers = #tpu.dot_dimension_numbers<[1], [0], [0], [1], [0, 0, 1, 1], [], []>} : vector<8x32xf32>, vector<32x8xf32>, vector<8x8xf32> -> vector<8x8xf32>
      %cst_29 = arith.constant -1.000000e+30 : f32
      %81 = vector.broadcast %cst_29 : f32 to vector<8x8xf32>
      %82 = arith.select %33, %80, %81 : vector<8x8xi1>, vector<8x8xf32>
      %cst_30 = arith.constant dense<0xFF800000> : vector<8xf32>
      %83 = vector.multi_reduction <maximumf>, %82, %cst_30 [1] : vector<8x8xf32> to vector<8xf32>
      %84 = vector.shape_cast %83 : vector<8xf32> to vector<8x1xf32>
      %85 = vector.broadcast %84 : vector<8x1xf32> to vector<8x8xf32>
      %86 = arith.subf %82, %85 : vector<8x8xf32>
      %87 = math.exp %86 : vector<8x8xf32>
      %cst_31 = arith.constant dense<0.000000e+00> : vector<8xf32>
      %88 = vector.multi_reduction <add>, %87, %cst_31 [1] : vector<8x8xf32> to vector<8xf32>
      %89 = vector.shape_cast %88 : vector<8xf32> to vector<8x1xf32>
      %90 = tpu.reciprocal %89 {approx = true} : vector<8x1xf32> -> vector<8x1xf32>
      %91 = vector.broadcast %90 : vector<8x1xf32> to vector<8x8xf32>
      %92 = arith.mulf %87, %91 : vector<8x8xf32>
      %cst_32 = arith.constant dense<0.000000e+00> : vector<8x32xf32>
      %93 = tpu.matmul %92, %66, %cst_32 {dimension_numbers = #tpu.dot_dimension_numbers<[1], [0], [0], [1], [0, 0, 1, 1], [], []>} : vector<8x8xf32>, vector<8x32xf32>, vector<8x32xf32> -> vector<8x32xf32>
      %94 = tpu.concatenate %63, %93 in 1 : vector<8x32xf32>, vector<8x32xf32> -> vector<8x64xf32>
      %c0_33 = arith.constant 0 : index
      %c0_34 = arith.constant 0 : index
      %95 = vector.load %arg7[%c0_33, %c0_34] : memref<64x32xf32, #tpu.memory_space<vmem>>, vector<64x32xf32>
      %cst_35 = arith.constant dense<0.000000e+00> : vector<8x32xf32>
      %96 = tpu.matmul %94, %95, %cst_35 {dimension_numbers = #tpu.dot_dimension_numbers<[1], [0], [0], [1], [0, 0, 1, 1], [], []>} : vector<8x64xf32>, vector<64x32xf32>, vector<8x32xf32> -> vector<8x32xf32>
      %c0_36 = arith.constant 0 : index
      %c0_37 = arith.constant 0 : index
      %97 = vector.load %arg8[%c0_36, %c0_37] : memref<1x32xf32, #tpu.memory_space<vmem>>, vector<1x32xf32>
      %98 = vector.broadcast %97 : vector<1x32xf32> to vector<8x32xf32>
      %99 = arith.addf %96, %98 : vector<8x32xf32>
      %100 = arith.addf %28, %99 : vector<8x32xf32>
      %101 = arith.mulf %100, %100 : vector<8x32xf32>
      %102 = vector.shape_cast %101 : vector<8x32xf32> to vector<1x8x32xf32>
      %cst_38 = arith.constant dense<0.000000e+00> : vector<1xf32>
      %103 = vector.multi_reduction <add>, %102, %cst_38 [1, 2] : vector<1x8x32xf32> to vector<1xf32>
      %104 = vector.shape_cast %103 : vector<1xf32> to vector<1x1x1xf32>
      %105 = vector.extract %104[0, 0, 0] : f32 from vector<1x1x1xf32>
      %cst_39 = arith.constant 3.906250e-03 : f32
      %106 = arith.mulf %105, %cst_39 : f32
      %107 = math.rsqrt %106 : f32
      %108 = vector.broadcast %107 : f32 to vector<8x32xf32>
      %109 = arith.mulf %100, %108 : vector<8x32xf32>
      %110 = arith.mulf %16, %109 : vector<8x32xf32>
      %c0_40 = arith.constant 0 : index
      %c0_41 = arith.constant 0 : index
      %111 = vector.load %arg9[%c0_40, %c0_41] : memref<32x32xf32, #tpu.memory_space<vmem>>, vector<32x32xf32>
      %cst_42 = arith.constant dense<0.000000e+00> : vector<8x32xf32>
      %112 = tpu.matmul %110, %111, %cst_42 {dimension_numbers = #tpu.dot_dimension_numbers<[1], [0], [0], [1], [0, 0, 1, 1], [], []>} : vector<8x32xf32>, vector<32x32xf32>, vector<8x32xf32> -> vector<8x32xf32>
      %c0_43 = arith.constant 0 : index
      %c0_44 = arith.constant 0 : index
      %113 = vector.load %arg10[%c0_43, %c0_44] : memref<1x32xf32, #tpu.memory_space<vmem>>, vector<1x32xf32>
      %114 = vector.broadcast %113 : vector<1x32xf32> to vector<8x32xf32>
      %115 = arith.addf %112, %114 : vector<8x32xf32>
      %c0_45 = arith.constant 0 : index
      %c0_46 = arith.constant 0 : index
      %116 = vector.load %arg11[%c0_45, %c0_46] : memref<32x32xf32, #tpu.memory_space<vmem>>, vector<32x32xf32>
      %cst_47 = arith.constant dense<0.000000e+00> : vector<8x32xf32>
      %117 = tpu.matmul %115, %116, %cst_47 {dimension_numbers = #tpu.dot_dimension_numbers<[1], [0], [0], [1], [0, 0, 1, 1], [], []>} : vector<8x32xf32>, vector<32x32xf32>, vector<8x32xf32> -> vector<8x32xf32>
      %c0_48 = arith.constant 0 : index
      %c0_49 = arith.constant 0 : index
      %118 = vector.load %arg12[%c0_48, %c0_49] : memref<1x32xf32, #tpu.memory_space<vmem>>, vector<1x32xf32>
      %119 = vector.broadcast %118 : vector<1x32xf32> to vector<8x32xf32>
      %120 = arith.addf %117, %119 : vector<8x32xf32>
      %c0_50 = arith.constant 0 : index
      %c0_51 = arith.constant 0 : index
      %121 = vector.load %arg13[%c0_50, %c0_51] : memref<32x32xf32, #tpu.memory_space<vmem>>, vector<32x32xf32>
      %cst_52 = arith.constant dense<0.000000e+00> : vector<8x32xf32>
      %122 = tpu.matmul %115, %121, %cst_52 {dimension_numbers = #tpu.dot_dimension_numbers<[1], [0], [0], [1], [0, 0, 1, 1], [], []>} : vector<8x32xf32>, vector<32x32xf32>, vector<8x32xf32> -> vector<8x32xf32>
      %c0_53 = arith.constant 0 : index
      %c0_54 = arith.constant 0 : index
      %123 = vector.load %arg14[%c0_53, %c0_54] : memref<1x32xf32, #tpu.memory_space<vmem>>, vector<1x32xf32>
      %124 = vector.broadcast %123 : vector<1x32xf32> to vector<8x32xf32>
      %125 = arith.addf %122, %124 : vector<8x32xf32>
      %c0_55 = arith.constant 0 : index
      %126 = memref.load %arg15[%c0_55] : memref<1xf32, #tpu.memory_space<smem>>
      %127 = vector.broadcast %126 : f32 to vector<8x32xf32>
      %128 = arith.mulf %127, %120 : vector<8x32xf32>
      %129 = arith.negf %128 : vector<8x32xf32>
      %130 = math.exp %129 : vector<8x32xf32>
      %cst_56 = arith.constant 1.000000e+00 : f32
      %131 = vector.broadcast %cst_56 : f32 to vector<8x32xf32>
      %132 = arith.addf %131, %130 : vector<8x32xf32>
      %133 = arith.divf %131, %132 : vector<8x32xf32>
      %134 = arith.mulf %120, %133 : vector<8x32xf32>
      %135 = arith.mulf %134, %125 : vector<8x32xf32>
      %136 = arith.addf %110, %135 : vector<8x32xf32>
      %137 = arith.index_cast %arg1 : i32 to index
      %c0_57 = arith.constant 0 : index
      %c0_58 = arith.constant 0 : index
      %138 = vector.load %arg19[%137, %c0_57, %c0_58] : memref<2x8x32xf32, #tpu.memory_space<vmem>>, vector<1x8x32xf32>
      %139 = vector.shape_cast %138 : vector<1x8x32xf32> to vector<8x32xf32>
      %140 = vector.shape_cast %136 : vector<8x32xf32> to vector<1x8x32xf32>
      tpu.vector_store %arg19[%137, %c0_57, %c0_58], %140 {strides = array<i32>} : memref<2x8x32xf32, #tpu.memory_space<vmem>>, vector<1x8x32xf32>,
    } else {
    }
    %3 = arith.index_cast %arg1 : i32 to index
    %c0 = arith.constant 0 : index
    %c0_1 = arith.constant 0 : index
    %4 = vector.load %arg19[%3, %c0, %c0_1] : memref<2x8x32xf32, #tpu.memory_space<vmem>>, vector<1x8x32xf32>
    %5 = vector.shape_cast %4 : vector<1x8x32xf32> to vector<8x32xf32>
    %c0_2 = arith.constant 0 : index
    %c0_3 = arith.constant 0 : index
    %6 = vector.load %arg16[%c0_2, %c0_3] : memref<32x128xf32, #tpu.memory_space<vmem>>, vector<32x128xf32>
    %cst = arith.constant dense<0.000000e+00> : vector<8x128xf32>
    %7 = tpu.matmul %5, %6, %cst {dimension_numbers = #tpu.dot_dimension_numbers<[1], [0], [0], [1], [0, 0, 1, 1], [], []>} : vector<8x32xf32>, vector<32x128xf32>, vector<8x128xf32> -> vector<8x128xf32>
    %c0_4 = arith.constant 0 : index
    %c0_5 = arith.constant 0 : index
    %8 = vector.load %arg17[%c0_4, %c0_5] : memref<1x128xf32, #tpu.memory_space<vmem>>, vector<1x128xf32>
    %9 = vector.broadcast %8 : vector<1x128xf32> to vector<8x128xf32>
    %10 = arith.addf %7, %9 : vector<8x128xf32>
    %c0_6 = arith.constant 0 : index
    %c0_7 = arith.constant 0 : index
    %c0_8 = arith.constant 0 : index
    %11 = vector.load %arg18[%c0_6, %c0_7, %c0_8] : memref<1x8x128xf32, #tpu.memory_space<vmem>>, vector<1x8x128xf32>
    %12 = vector.shape_cast %11 : vector<1x8x128xf32> to vector<8x128xf32>
    %13 = vector.shape_cast %10 : vector<8x128xf32> to vector<1x8x128xf32>
    tpu.vector_store %arg18[%c0_6, %c0_7, %c0_8], %13 {strides = array<i32>} : memref<1x8x128xf32, #tpu.memory_space<vmem>>, vector<1x8x128xf32>,
    return
  }
  func.func @transform_0(%arg0: i32, %arg1: i32) -> (i32, i32, i32) {
    %c0_i32 = arith.constant 0 : i32
    %c0_i32_0 = arith.constant 0 : i32
    %c0_i32_1 = arith.constant 0 : i32
    return %arg1, %c0_i32, %c0_i32_0 : i32, i32, i32
  }
  func.func @transform_1(%arg0: i32, %arg1: i32) -> (i32, i32) {
    %c0_i32 = arith.constant 0 : i32
    %c0_i32_0 = arith.constant 0 : i32
    %c0_i32_1 = arith.constant 0 : i32
    return %c0_i32, %c0_i32_0 : i32, i32
  }
  func.func @transform_2(%arg0: i32, %arg1: i32) -> (i32, i32) {
    %c0_i32 = arith.constant 0 : i32
    %c0_i32_0 = arith.constant 0 : i32
    %c0_i32_1 = arith.constant 0 : i32
    return %c0_i32, %c0_i32_0 : i32, i32
  }
  func.func @transform_3(%arg0: i32, %arg1: i32) -> (i32, i32) {
    %c0_i32 = arith.constant 0 : i32
    %c0_i32_0 = arith.constant 0 : i32
    %c0_i32_1 = arith.constant 0 : i32
    return %c0_i32, %c0_i32_0 : i32, i32
  }
  func.func @transform_4(%arg0: i32, %arg1: i32) -> (i32, i32) {
    %c0_i32 = arith.constant 0 : i32
    %c0_i32_0 = arith.constant 0 : i32
    %c0_i32_1 = arith.constant 0 : i32
    return %c0_i32, %c0_i32_0 : i32, i32
  }
  func.func @transform_5(%arg0: i32, %arg1: i32) -> (i32, i32) {
    %c0_i32 = arith.constant 0 : i32
    %c0_i32_0 = arith.constant 0 : i32
    %c0_i32_1 = arith.constant 0 : i32
    return %c0_i32, %c0_i32_0 : i32, i32
  }
  func.func @transform_6(%arg0: i32, %arg1: i32) -> (i32, i32) {
    %c0_i32 = arith.constant 0 : i32
    %c0_i32_0 = arith.constant 0 : i32
    %c0_i32_1 = arith.constant 0 : i32
    return %c0_i32, %c0_i32_0 : i32, i32
  }
  func.func @transform_7(%arg0: i32, %arg1: i32) -> (i32, i32) {
    %c0_i32 = arith.constant 0 : i32
    %c0_i32_0 = arith.constant 0 : i32
    %c0_i32_1 = arith.constant 0 : i32
    return %c0_i32, %c0_i32_0 : i32, i32
  }
  func.func @transform_8(%arg0: i32, %arg1: i32) -> (i32, i32) {
    %c0_i32 = arith.constant 0 : i32
    %c0_i32_0 = arith.constant 0 : i32
    %c0_i32_1 = arith.constant 0 : i32
    return %c0_i32, %c0_i32_0 : i32, i32
  }
  func.func @transform_9(%arg0: i32, %arg1: i32) -> (i32, i32) {
    %c0_i32 = arith.constant 0 : i32
    %c0_i32_0 = arith.constant 0 : i32
    %c0_i32_1 = arith.constant 0 : i32
    return %c0_i32, %c0_i32_0 : i32, i32
  }
  func.func @transform_10(%arg0: i32, %arg1: i32) -> (i32, i32) {
    %c0_i32 = arith.constant 0 : i32
    %c0_i32_0 = arith.constant 0 : i32
    %c0_i32_1 = arith.constant 0 : i32
    return %c0_i32, %c0_i32_0 : i32, i32
  }
  func.func @transform_11(%arg0: i32, %arg1: i32) -> (i32, i32) {
    %c0_i32 = arith.constant 0 : i32
    %c0_i32_0 = arith.constant 0 : i32
    %c0_i32_1 = arith.constant 0 : i32
    return %c0_i32, %c0_i32_0 : i32, i32
  }
  func.func @transform_12(%arg0: i32, %arg1: i32) -> (i32, i32) {
    %c0_i32 = arith.constant 0 : i32
    %c0_i32_0 = arith.constant 0 : i32
    %c0_i32_1 = arith.constant 0 : i32
    return %c0_i32, %c0_i32_0 : i32, i32
  }
  func.func @transform_13(%arg0: i32, %arg1: i32) -> i32 {
    %c0_i32 = arith.constant 0 : i32
    %c0_i32_0 = arith.constant 0 : i32
    return %c0_i32 : i32
  }
  func.func @transform_14(%arg0: i32, %arg1: i32) -> (i32, i32) {
    %c0_i32 = arith.constant 0 : i32
    %c0_i32_0 = arith.constant 0 : i32
    return %c0_i32, %arg0 : i32, i32
  }
  func.func @transform_15(%arg0: i32, %arg1: i32) -> (i32, i32) {
    %c0_i32 = arith.constant 0 : i32
    %c0_i32_0 = arith.constant 0 : i32
    return %c0_i32, %arg0 : i32, i32
  }
  func.func @transform_16(%arg0: i32, %arg1: i32) -> (i32, i32, i32) {
    %c0_i32 = arith.constant 0 : i32
    %c0_i32_0 = arith.constant 0 : i32
    return %arg1, %c0_i32, %arg0 : i32, i32, i32
  }
}

module attributes {stable_mosaic.version = 11 : i64} {
  func.func @rope_model_kernel(%arg0: i32, %arg1: i32, %arg2: memref<1x8x32xf32, #tpu.memory_space<vmem>>, %arg3: memref<8x32xf32, #tpu.memory_space<vmem>>, %arg4: memref<8x32xf32, #tpu.memory_space<vmem>>, %arg5: memref<8x32xf32, #tpu.memory_space<vmem>>, %arg6: memref<32x192xf32, #tpu.memory_space<vmem>>, %arg7: memref<64x32xf32, #tpu.memory_space<vmem>>, %arg8: memref<1x32xf32, #tpu.memory_space<vmem>>, %arg9: memref<32x32xf32, #tpu.memory_space<vmem>>, %arg10: memref<1x32xf32, #tpu.memory_space<vmem>>, %arg11: memref<32x32xf32, #tpu.memory_space<vmem>>, %arg12: memref<1x32xf32, #tpu.memory_space<vmem>>, %arg13: memref<32x32xf32, #tpu.memory_space<vmem>>, %arg14: memref<1x32xf32, #tpu.memory_space<vmem>>, %arg15: memref<1xf32, #tpu.memory_space<smem>>, %arg16: memref<32x128xf32, #tpu.memory_space<vmem>>, %arg17: memref<1x128xf32, #tpu.memory_space<vmem>>, %arg18: memref<1x8x128xf32, #tpu.memory_space<vmem>>, %arg19: memref<2x8x32xf32, #tpu.memory_space<vmem>>) attributes {dimension_semantics = [#tpu.dimension_semantics<arbitrary>, #tpu.dimension_semantics<parallel>], iteration_bounds = array<i64: 1, 2>, scalar_prefetch = 0 : i64, scratch_operands = 1 : i64, tpu.core_type = #tpu.core_type<tc>, window_params = [{transform_indices = @transform_0, window_bounds = array<i64: 1, 8, 32>}, {pipeline_mode = #tpu.pipeline_mode<synchronous>, transform_indices = @transform_1, window_bounds = array<i64: 8, 32>}, {pipeline_mode = #tpu.pipeline_mode<synchronous>, transform_indices = @transform_2, window_bounds = array<i64: 8, 32>}, {pipeline_mode = #tpu.pipeline_mode<synchronous>, transform_indices = @transform_3, window_bounds = array<i64: 8, 32>}, {pipeline_mode = #tpu.pipeline_mode<synchronous>, transform_indices = @transform_4, window_bounds = array<i64: 32, 192>}, {pipeline_mode = #tpu.pipeline_mode<synchronous>, transform_indices = @transform_5, window_bounds = array<i64: 64, 32>}, {pipeline_mode = #tpu.pipeline_mode<synchronous>, transform_indices = @transform_6, window_bounds = array<i64: 1, 32>}, {pipeline_mode = #tpu.pipeline_mode<synchronous>, transform_indices = @transform_7, window_bounds = array<i64: 32, 32>}, {pipeline_mode = #tpu.pipeline_mode<synchronous>, transform_indices = @transform_8, window_bounds = array<i64: 1, 32>}, {pipeline_mode = #tpu.pipeline_mode<synchronous>, transform_indices = @transform_9, window_bounds = array<i64: 32, 32>}, {pipeline_mode = #tpu.pipeline_mode<synchronous>, transform_indices = @transform_10, window_bounds = array<i64: 1, 32>}, {pipeline_mode = #tpu.pipeline_mode<synchronous>, transform_indices = @transform_11, window_bounds = array<i64: 32, 32>}, {pipeline_mode = #tpu.pipeline_mode<synchronous>, transform_indices = @transform_12, window_bounds = array<i64: 1, 32>}, {transform_indices = @transform_13, window_bounds = array<i64: 1>}, {transform_indices = @transform_14, window_bounds = array<i64: 32, 128>}, {transform_indices = @transform_15, window_bounds = array<i64: 1, 128>}, {transform_indices = @transform_16, window_bounds = array<i64: 1, 8, 128>}]} {
    %c0_i32 = arith.constant 0 : i32
    %0 = arith.cmpi eq, %arg0, %c0_i32 : i32
    %1 = arith.extui %0 : i1 to i32
    %c0_i32_0 = arith.constant 0 : i32
    %2 = arith.cmpi ne, %1, %c0_i32_0 : i32
    scf.if %2 {
      %c0_9 = arith.constant 0 : index
      %c0_10 = arith.constant 0 : index
      %c0_11 = arith.constant 0 : index
      %14 = vector.load %arg2[%c0_9, %c0_10, %c0_11] : memref<1x8x32xf32, #tpu.memory_space<vmem>>, vector<1x8x32xf32>
      %15 = vector.shape_cast %14 : vector<1x8x32xf32> to vector<8x32xf32>
      %c0_12 = arith.constant 0 : index
      %c0_13 = arith.constant 0 : index
      %16 = vector.load %arg3[%c0_12, %c0_13] : memref<8x32xf32, #tpu.memory_space<vmem>>, vector<8x32xf32>
      %c0_14 = arith.constant 0 : index
      %c0_15 = arith.constant 0 : index
      %17 = vector.load %arg4[%c0_14, %c0_15] : memref<8x32xf32, #tpu.memory_space<vmem>>, vector<8x32xf32>
      %c0_16 = arith.constant 0 : index
      %c0_17 = arith.constant 0 : index
      %18 = vector.load %arg5[%c0_16, %c0_17] : memref<8x32xf32, #tpu.memory_space<vmem>>, vector<8x32xf32>
      %19 = arith.mulf %15, %15 : vector<8x32xf32>
      %20 = vector.shape_cast %19 : vector<8x32xf32> to vector<1x8x32xf32>
      %cst_18 = arith.constant dense<0.000000e+00> : vector<1xf32>
      %21 = vector.multi_reduction <add>, %20, %cst_18 [1, 2] : vector<1x8x32xf32> to vector<1xf32>
      %22 = vector.shape_cast %21 : vector<1xf32> to vector<1x1x1xf32>
      %23 = vector.extract %22[0, 0, 0] : f32 from vector<1x1x1xf32>
      %cst_19 = arith.constant 3.906250e-03 : f32
      %24 = arith.mulf %23, %cst_19 : f32
      %25 = math.rsqrt %24 : f32
      %26 = vector.broadcast %25 : f32 to vector<8x32xf32>
      %27 = arith.mulf %15, %26 : vector<8x32xf32>
      %28 = arith.mulf %16, %27 : vector<8x32xf32>
      %c0_20 = arith.constant 0 : index
      %c0_21 = arith.constant 0 : index
      %29 = vector.load %arg6[%c0_20, %c0_21] : memref<32x192xf32, #tpu.memory_space<vmem>>, vector<32x192xf32>
      %cst_22 = arith.constant dense<0.000000e+00> : vector<8x192xf32>
      %30 = tpu.matmul %28, %29, %cst_22 {dimension_numbers = #tpu.dot_dimension_numbers<[1], [0], [0], [1], [0, 0, 1, 1], [], []>} : vector<8x32xf32>, vector<32x192xf32>, vector<8x192xf32> -> vector<8x192xf32>
      %31 = tpu.iota {dimensions = array<i32: 0>} : vector<8x8xi32>
      %32 = tpu.iota {dimensions = array<i32: 1>} : vector<8x8xi32>
      %33 = arith.cmpi sge, %31, %32 : vector<8x8xi32>
      %34 = vector.extract_strided_slice %30 {offsets = [0, 0], sizes = [8, 32], strides = [1, 1]} : vector<8x192xf32> to vector<8x32xf32>
      %35 = vector.extract_strided_slice %30 {offsets = [0, 64], sizes = [8, 32], strides = [1, 1]} : vector<8x192xf32> to vector<8x32xf32>
      %36 = vector.extract_strided_slice %30 {offsets = [0, 128], sizes = [8, 32], strides = [1, 1]} : vector<8x192xf32> to vector<8x32xf32>
      %37 = arith.mulf %34, %17 : vector<8x32xf32>
      %38 = vector.extract_strided_slice %34 {offsets = [0, 16], sizes = [8, 16], strides = [1, 1]} : vector<8x32xf32> to vector<8x16xf32>
      %39 = vector.extract_strided_slice %34 {offsets = [0, 0], sizes = [8, 16], strides = [1, 1]} : vector<8x32xf32> to vector<8x16xf32>
      %40 = tpu.concatenate %38, %39 in 1 : vector<8x16xf32>, vector<8x16xf32> -> vector<8x32xf32>
      %41 = arith.mulf %40, %18 : vector<8x32xf32>
      %42 = arith.addf %37, %41 : vector<8x32xf32>
      %43 = arith.mulf %35, %17 : vector<8x32xf32>
      %44 = vector.extract_strided_slice %35 {offsets = [0, 16], sizes = [8, 16], strides = [1, 1]} : vector<8x32xf32> to vector<8x16xf32>
      %45 = vector.extract_strided_slice %35 {offsets = [0, 0], sizes = [8, 16], strides = [1, 1]} : vector<8x32xf32> to vector<8x16xf32>
      %46 = tpu.concatenate %44, %45 in 1 : vector<8x16xf32>, vector<8x16xf32> -> vector<8x32xf32>
      %47 = arith.mulf %46, %18 : vector<8x32xf32>
      %48 = arith.addf %43, %47 : vector<8x32xf32>
      %49 = tpu.transpose %48, [1, 0] : vector<8x32xf32> -> vector<32x8xf32>
      %cst_23 = arith.constant dense<0.000000e+00> : vector<8x8xf32>
      %50 = tpu.matmul %42, %49, %cst_23 {dimension_numbers = #tpu.dot_dimension_numbers<[1], [0], [0], [1], [0, 0, 1, 1], [], []>} : vector<8x32xf32>, vector<32x8xf32>, vector<8x8xf32> -> vector<8x8xf32>
      %cst_24 = arith.constant -1.000000e+30 : f32
      %51 = vector.broadcast %cst_24 : f32 to vector<8x8xf32>
      %52 = arith.select %33, %50, %51 : vector<8x8xi1>, vector<8x8xf32>
      %cst_25 = arith.constant dense<0xFF800000> : vector<8xf32>
      %53 = vector.multi_reduction <maximumf>, %52, %cst_25 [1] : vector<8x8xf32> to vector<8xf32>
      %54 = vector.shape_cast %53 : vector<8xf32> to vector<8x1xf32>
      %55 = vector.broadcast %54 : vector<8x1xf32> to vector<8x8xf32>
      %56 = arith.subf %52, %55 : vector<8x8xf32>
      %57 = math.exp %56 : vector<8x8xf32>
      %cst_26 = arith.constant dense<0.000000e+00> : vector<8xf32>
      %58 = vector.multi_reduction <add>, %57, %cst_26 [1] : vector<8x8xf32> to vector<8xf32>
      %59 = vector.shape_cast %58 : vector<8xf32> to vector<8x1xf32>
      %60 = tpu.reciprocal %59 {approx = true} : vector<8x1xf32> -> vector<8x1xf32>
      %61 = vector.broadcast %60 : vector<8x1xf32> to vector<8x8xf32>
      %62 = arith.mulf %57, %61 : vector<8x8xf32>
      %cst_27 = arith.constant dense<0.000000e+00> : vector<8x32xf32>
      %63 = tpu.matmul %62, %36, %cst_27 {dimension_numbers = #tpu.dot_dimension_numbers<[1], [0], [0], [1], [0, 0, 1, 1], [], []>} : vector<8x8xf32>, vector<8x32xf32>, vector<8x32xf32> -> vector<8x32xf32>
      %64 = vector.extract_strided_slice %30 {offsets = [0, 32], sizes = [8, 32], strides = [1, 1]} : vector<8x192xf32> to vector<8x32xf32>
      %65 = vector.extract_strided_slice %30 {offsets = [0, 96], sizes = [8, 32], strides = [1, 1]} : vector<8x192xf32> to vector<8x32xf32>
      %66 = vector.extract_strided_slice %30 {offsets = [0, 160], sizes = [8, 32], strides = [1, 1]} : vector<8x192xf32> to vector<8x32xf32>
      %67 = arith.mulf %64, %17 : vector<8x32xf32>
      %68 = vector.extract_strided_slice %64 {offsets = [0, 16], sizes = [8, 16], strides = [1, 1]} : vector<8x32xf32> to vector<8x16xf32>
      %69 = vector.extract_strided_slice %64 {offsets = [0, 0], sizes = [8, 16], strides = [1, 1]} : vector<8x32xf32> to vector<8x16xf32>
      %70 = tpu.concatenate %68, %69 in 1 : vector<8x16xf32>, vector<8x16xf32> -> vector<8x32xf32>
      %71 = arith.mulf %70, %18 : vector<8x32xf32>
      %72 = arith.addf %67, %71 : vector<8x32xf32>
      %73 = arith.mulf %65, %17 : vector<8x32xf32>
      %74 = vector.extract_strided_slice %65 {offsets = [0, 16], sizes = [8, 16], strides = [1, 1]} : vector<8x32xf32> to vector<8x16xf32>
      %75 = vector.extract_strided_slice %65 {offsets = [0, 0], sizes = [8, 16], strides = [1, 1]} : vector<8x32xf32> to vector<8x16xf32>
      %76 = tpu.concatenate %74, %75 in 1 : vector<8x16xf32>, vector<8x16xf32> -> vector<8x32xf32>
      %77 = arith.mulf %76, %18 : vector<8x32xf32>
      %78 = arith.addf %73, %77 : vector<8x32xf32>
      %79 = tpu.transpose %78, [1, 0] : vector<8x32xf32> -> vector<32x8xf32>
      %cst_28 = arith.constant dense<0.000000e+00> : vector<8x8xf32>
      %80 = tpu.matmul %72, %79, %cst_28 {dimension_numbers = #tpu.dot_dimension_numbers<[1], [0], [0], [1], [0, 0, 1, 1], [], []>} : vector<8x32xf32>, vector<32x8xf32>, vector<8x8xf32> -> vector<8x8xf32>
      %cst_29 = arith.constant -1.000000e+30 : f32
      %81 = vector.broadcast %cst_29 : f32 to vector<8x8xf32>
      %82 = arith.select %33, %80, %81 : vector<8x8xi1>, vector<8x8xf32>
      %cst_30 = arith.constant dense<0xFF800000> : vector<8xf32>
      %83 = vector.multi_reduction <maximumf>, %82, %cst_30 [1] : vector<8x8xf32> to vector<8xf32>
      %84 = vector.shape_cast %83 : vector<8xf32> to vector<8x1xf32>
      %85 = vector.broadcast %84 : vector<8x1xf32> to vector<8x8xf32>
      %86 = arith.subf %82, %85 : vector<8x8xf32>
      %87 = math.exp %86 : vector<8x8xf32>
      %cst_31 = arith.constant dense<0.000000e+00> : vector<8xf32>
      %88 = vector.multi_reduction <add>, %87, %cst_31 [1] : vector<8x8xf32> to vector<8xf32>
      %89 = vector.shape_cast %88 : vector<8xf32> to vector<8x1xf32>
      %90 = tpu.reciprocal %89 {approx = true} : vector<8x1xf32> -> vector<8x1xf32>
      %91 = vector.broadcast %90 : vector<8x1xf32> to vector<8x8xf32>
      %92 = arith.mulf %87, %91 : vector<8x8xf32>
      %cst_32 = arith.constant dense<0.000000e+00> : vector<8x32xf32>
      %93 = tpu.matmul %92, %66, %cst_32 {dimension_numbers = #tpu.dot_dimension_numbers<[1], [0], [0], [1], [0, 0, 1, 1], [], []>} : vector<8x8xf32>, vector<8x32xf32>, vector<8x32xf32> -> vector<8x32xf32>
      %94 = tpu.concatenate %63, %93 in 1 : vector<8x32xf32>, vector<8x32xf32> -> vector<8x64xf32>
      %c0_33 = arith.constant 0 : index
      %c0_34 = arith.constant 0 : index
      %95 = vector.load %arg7[%c0_33, %c0_34] : memref<64x32xf32, #tpu.memory_space<vmem>>, vector<64x32xf32>
      %cst_35 = arith.constant dense<0.000000e+00> : vector<8x32xf32>
      %96 = tpu.matmul %94, %95, %cst_35 {dimension_numbers = #tpu.dot_dimension_numbers<[1], [0], [0], [1], [0, 0, 1, 1], [], []>} : vector<8x64xf32>, vector<64x32xf32>, vector<8x32xf32> -> vector<8x32xf32>
      %c0_36 = arith.constant 0 : index
      %c0_37 = arith.constant 0 : index
      %97 = vector.load %arg8[%c0_36, %c0_37] : memref<1x32xf32, #tpu.memory_space<vmem>>, vector<1x32xf32>
      %98 = vector.broadcast %97 : vector<1x32xf32> to vector<8x32xf32>
      %99 = arith.addf %96, %98 : vector<8x32xf32>
      %100 = arith.addf %28, %99 : vector<8x32xf32>
      %101 = arith.mulf %100, %100 : vector<8x32xf32>
      %102 = vector.shape_cast %101 : vector<8x32xf32> to vector<1x8x32xf32>
      %cst_38 = arith.constant dense<0.000000e+00> : vector<1xf32>
      %103 = vector.multi_reduction <add>, %102, %cst_38 [1, 2] : vector<1x8x32xf32> to vector<1xf32>
      %104 = vector.shape_cast %103 : vector<1xf32> to vector<1x1x1xf32>
      %105 = vector.extract %104[0, 0, 0] : f32 from vector<1x1x1xf32>
      %cst_39 = arith.constant 3.906250e-03 : f32
      %106 = arith.mulf %105, %cst_39 : f32
      %107 = math.rsqrt %106 : f32
      %108 = vector.broadcast %107 : f32 to vector<8x32xf32>
      %109 = arith.mulf %100, %108 : vector<8x32xf32>
      %110 = arith.mulf %16, %109 : vector<8x32xf32>
      %c0_40 = arith.constant 0 : index
      %c0_41 = arith.constant 0 : index
      %111 = vector.load %arg9[%c0_40, %c0_41] : memref<32x32xf32, #tpu.memory_space<vmem>>, vector<32x32xf32>
      %cst_42 = arith.constant dense<0.000000e+00> : vector<8x32xf32>
      %112 = tpu.matmul %110, %111, %cst_42 {dimension_numbers = #tpu.dot_dimension_numbers<[1], [0], [0], [1], [0, 0, 1, 1], [], []>} : vector<8x32xf32>, vector<32x32xf32>, vector<8x32xf32> -> vector<8x32xf32>
      %c0_43 = arith.constant 0 : index
      %c0_44 = arith.constant 0 : index
      %113 = vector.load %arg10[%c0_43, %c0_44] : memref<1x32xf32, #tpu.memory_space<vmem>>, vector<1x32xf32>
      %114 = vector.broadcast %113 : vector<1x32xf32> to vector<8x32xf32>
      %115 = arith.addf %112, %114 : vector<8x32xf32>
      %c0_45 = arith.constant 0 : index
      %c0_46 = arith.constant 0 : index
      %116 = vector.load %arg11[%c0_45, %c0_46] : memref<32x32xf32, #tpu.memory_space<vmem>>, vector<32x32xf32>
      %cst_47 = arith.constant dense<0.000000e+00> : vector<8x32xf32>
      %117 = tpu.matmul %115, %116, %cst_47 {dimension_numbers = #tpu.dot_dimension_numbers<[1], [0], [0], [1], [0, 0, 1, 1], [], []>} : vector<8x32xf32>, vector<32x32xf32>, vector<8x32xf32> -> vector<8x32xf32>
      %c0_48 = arith.constant 0 : index
      %c0_49 = arith.constant 0 : index
      %118 = vector.load %arg12[%c0_48, %c0_49] : memref<1x32xf32, #tpu.memory_space<vmem>>, vector<1x32xf32>
      %119 = vector.broadcast %118 : vector<1x32xf32> to vector<8x32xf32>
      %120 = arith.addf %117, %119 : vector<8x32xf32>
      %c0_50 = arith.constant 0 : index
      %c0_51 = arith.constant 0 : index
      %121 = vector.load %arg13[%c0_50, %c0_51] : memref<32x32xf32, #tpu.memory_space<vmem>>, vector<32x32xf32>
      %cst_52 = arith.constant dense<0.000000e+00> : vector<8x32xf32>
      %122 = tpu.matmul %115, %121, %cst_52 {dimension_numbers = #tpu.dot_dimension_numbers<[1], [0], [0], [1], [0, 0, 1, 1], [], []>} : vector<8x32xf32>, vector<32x32xf32>, vector<8x32xf32> -> vector<8x32xf32>
      %c0_53 = arith.constant 0 : index
      %c0_54 = arith.constant 0 : index
      %123 = vector.load %arg14[%c0_53, %c0_54] : memref<1x32xf32, #tpu.memory_space<vmem>>, vector<1x32xf32>
      %124 = vector.broadcast %123 : vector<1x32xf32> to vector<8x32xf32>
      %125 = arith.addf %122, %124 : vector<8x32xf32>
      %c0_55 = arith.constant 0 : index
      %126 = memref.load %arg15[%c0_55] : memref<1xf32, #tpu.memory_space<smem>>
      %127 = vector.broadcast %126 : f32 to vector<8x32xf32>
      %128 = arith.mulf %127, %120 : vector<8x32xf32>
      %129 = arith.negf %128 : vector<8x32xf32>
      %130 = math.exp %129 : vector<8x32xf32>
      %cst_56 = arith.constant 1.000000e+00 : f32
      %131 = vector.broadcast %cst_56 : f32 to vector<8x32xf32>
      %132 = arith.addf %131, %130 : vector<8x32xf32>
      %133 = arith.divf %131, %132 : vector<8x32xf32>
      %134 = arith.mulf %120, %133 : vector<8x32xf32>
      %135 = arith.mulf %134, %125 : vector<8x32xf32>
      %136 = arith.addf %110, %135 : vector<8x32xf32>
      %137 = arith.index_cast %arg1 : i32 to index
      %c0_57 = arith.constant 0 : index
      %c0_58 = arith.constant 0 : index
      %138 = vector.load %arg19[%137, %c0_57, %c0_58] : memref<2x8x32xf32, #tpu.memory_space<vmem>>, vector<1x8x32xf32>
      %139 = vector.shape_cast %138 : vector<1x8x32xf32> to vector<8x32xf32>
      %140 = vector.shape_cast %136 : vector<8x32xf32> to vector<1x8x32xf32>
      tpu.vector_store %arg19[%137, %c0_57, %c0_58], %140 {strides = array<i32>} : memref<2x8x32xf32, #tpu.memory_space<vmem>>, vector<1x8x32xf32>,
    } else {
    }
    %3 = arith.index_cast %arg1 : i32 to index
    %c0 = arith.constant 0 : index
    %c0_1 = arith.constant 0 : index
    %4 = vector.load %arg19[%3, %c0, %c0_1] : memref<2x8x32xf32, #tpu.memory_space<vmem>>, vector<1x8x32xf32>
    %5 = vector.shape_cast %4 : vector<1x8x32xf32> to vector<8x32xf32>
    %c0_2 = arith.constant 0 : index
    %c0_3 = arith.constant 0 : index
    %6 = vector.load %arg16[%c0_2, %c0_3] : memref<32x128xf32, #tpu.memory_space<vmem>>, vector<32x128xf32>
    %cst = arith.constant dense<0.000000e+00> : vector<8x128xf32>
    %7 = tpu.matmul %5, %6, %cst {dimension_numbers = #tpu.dot_dimension_numbers<[1], [0], [0], [1], [0, 0, 1, 1], [], []>} : vector<8x32xf32>, vector<32x128xf32>, vector<8x128xf32> -> vector<8x128xf32>
    %c0_4 = arith.constant 0 : index
    %c0_5 = arith.constant 0 : index
    %8 = vector.load %arg17[%c0_4, %c0_5] : memref<1x128xf32, #tpu.memory_space<vmem>>, vector<1x128xf32>
    %9 = vector.broadcast %8 : vector<1x128xf32> to vector<8x128xf32>
    %10 = arith.addf %7, %9 : vector<8x128xf32>
    %c0_6 = arith.constant 0 : index
    %c0_7 = arith.constant 0 : index
    %c0_8 = arith.constant 0 : index
    %11 = vector.load %arg18[%c0_6, %c0_7, %c0_8] : memref<1x8x128xf32, #tpu.memory_space<vmem>>, vector<1x8x128xf32>
    %12 = vector.shape_cast %11 : vector<1x8x128xf32> to vector<8x128xf32>
    %13 = vector.shape_cast %10 : vector<8x128xf32> to vector<1x8x128xf32>
    tpu.vector_store %arg18[%c0_6, %c0_7, %c0_8], %13 {strides = array<i32>} : memref<1x8x128xf32, #tpu.memory_space<vmem>>, vector<1x8x128xf32>,
    return
  }
  func.func @transform_0(%arg0: i32, %arg1: i32) -> (i32, i32, i32) {
    %c0_i32 = arith.constant 0 : i32
    %c0_i32_0 = arith.constant 0 : i32
    %c0_i32_1 = arith.constant 0 : i32
    return %arg1, %c0_i32, %c0_i32_0 : i32, i32, i32
  }
  func.func @transform_1(%arg0: i32, %arg1: i32) -> (i32, i32) {
    %c0_i32 = arith.constant 0 : i32
    %c0_i32_0 = arith.constant 0 : i32
    %c0_i32_1 = arith.constant 0 : i32
    return %c0_i32, %c0_i32_0 : i32, i32
  }
  func.func @transform_2(%arg0: i32, %arg1: i32) -> (i32, i32) {
    %c0_i32 = arith.constant 0 : i32
    %c0_i32_0 = arith.constant 0 : i32
    %c0_i32_1 = arith.constant 0 : i32
    return %c0_i32, %c0_i32_0 : i32, i32
  }
  func.func @transform_3(%arg0: i32, %arg1: i32) -> (i32, i32) {
    %c0_i32 = arith.constant 0 : i32
    %c0_i32_0 = arith.constant 0 : i32
    %c0_i32_1 = arith.constant 0 : i32
    return %c0_i32, %c0_i32_0 : i32, i32
  }
  func.func @transform_4(%arg0: i32, %arg1: i32) -> (i32, i32) {
    %c0_i32 = arith.constant 0 : i32
    %c0_i32_0 = arith.constant 0 : i32
    %c0_i32_1 = arith.constant 0 : i32
    return %c0_i32, %c0_i32_0 : i32, i32
  }
  func.func @transform_5(%arg0: i32, %arg1: i32) -> (i32, i32) {
    %c0_i32 = arith.constant 0 : i32
    %c0_i32_0 = arith.constant 0 : i32
    %c0_i32_1 = arith.constant 0 : i32
    return %c0_i32, %c0_i32_0 : i32, i32
  }
  func.func @transform_6(%arg0: i32, %arg1: i32) -> (i32, i32) {
    %c0_i32 = arith.constant 0 : i32
    %c0_i32_0 = arith.constant 0 : i32
    %c0_i32_1 = arith.constant 0 : i32
    return %c0_i32, %c0_i32_0 : i32, i32
  }
  func.func @transform_7(%arg0: i32, %arg1: i32) -> (i32, i32) {
    %c0_i32 = arith.constant 0 : i32
    %c0_i32_0 = arith.constant 0 : i32
    %c0_i32_1 = arith.constant 0 : i32
    return %c0_i32, %c0_i32_0 : i32, i32
  }
  func.func @transform_8(%arg0: i32, %arg1: i32) -> (i32, i32) {
    %c0_i32 = arith.constant 0 : i32
    %c0_i32_0 = arith.constant 0 : i32
    %c0_i32_1 = arith.constant 0 : i32
    return %c0_i32, %c0_i32_0 : i32, i32
  }
  func.func @transform_9(%arg0: i32, %arg1: i32) -> (i32, i32) {
    %c0_i32 = arith.constant 0 : i32
    %c0_i32_0 = arith.constant 0 : i32
    %c0_i32_1 = arith.constant 0 : i32
    return %c0_i32, %c0_i32_0 : i32, i32
  }
  func.func @transform_10(%arg0: i32, %arg1: i32) -> (i32, i32) {
    %c0_i32 = arith.constant 0 : i32
    %c0_i32_0 = arith.constant 0 : i32
    %c0_i32_1 = arith.constant 0 : i32
    return %c0_i32, %c0_i32_0 : i32, i32
  }
  func.func @transform_11(%arg0: i32, %arg1: i32) -> (i32, i32) {
    %c0_i32 = arith.constant 0 : i32
    %c0_i32_0 = arith.constant 0 : i32
    %c0_i32_1 = arith.constant 0 : i32
    return %c0_i32, %c0_i32_0 : i32, i32
  }
  func.func @transform_12(%arg0: i32, %arg1: i32) -> (i32, i32) {
    %c0_i32 = arith.constant 0 : i32
    %c0_i32_0 = arith.constant 0 : i32
    %c0_i32_1 = arith.constant 0 : i32
    return %c0_i32, %c0_i32_0 : i32, i32
  }
  func.func @transform_13(%arg0: i32, %arg1: i32) -> i32 {
    %c0_i32 = arith.constant 0 : i32
    %c0_i32_0 = arith.constant 0 : i32
    return %c0_i32 : i32
  }
  func.func @transform_14(%arg0: i32, %arg1: i32) -> (i32, i32) {
    %c0_i32 = arith.constant 0 : i32
    %c0_i32_0 = arith.constant 0 : i32
    return %c0_i32, %arg0 : i32, i32
  }
  func.func @transform_15(%arg0: i32, %arg1: i32) -> (i32, i32) {
    %c0_i32 = arith.constant 0 : i32
    %c0_i32_0 = arith.constant 0 : i32
    return %c0_i32, %arg0 : i32, i32
  }
  func.func @transform_16(%arg0: i32, %arg1: i32) -> (i32, i32, i32) {
    %c0_i32 = arith.constant 0 : i32
    %c0_i32_0 = arith.constant 0 : i32
    return %arg1, %c0_i32, %arg0 : i32, i32, i32
  }
}

</mosaic_0001>

<llo_original>
// kernel: tpu_custom_call.1
$region0: #{tpu_custom_call.1}
  #allocation0 [shape = 'u32[]', space=smem, size = 0x4, offset = 0x4, fixed_abs, tag = 'smem constant byte address 0x4 - core index']
  #allocation1 [shape = 'u32[72,128]{1,0:T(1,128)}', space=vmem, size = 0x9000, scoped, tag = 'internal scratch']
  #allocation2 [shape = 'f32[2,8,32]{2,1,0:T(8,128)}', space=vmem, size = 0x2000, scoped, tag = 'scratch operand']
  #allocation3 [shape = 'f32[1]{0:T(128)S(6)}', space=smem, size = 0x200, scoped, tag = 'scoped memory for tpu_custom_call.1']
  %s0 = inlined_call_operand.hbm [shape: f32[2,8,32], index: 0, kind: input, shape index: {}]
  %s1 = inlined_call_operand.hbm [shape: f32[8,32], index: 1, kind: input, shape index: {}]
  %s2 = inlined_call_operand.hbm [shape: f32[8,32], index: 2, kind: input, shape index: {}]
  %s3 = inlined_call_operand.hbm [shape: f32[8,32], index: 3, kind: input, shape index: {}]
  %s4 = inlined_call_operand.vmem [shape: f32[32,192], index: 4, kind: input, shape index: {}]
  %s5 = inlined_call_operand.vmem [shape: f32[64,32], index: 5, kind: input, shape index: {}]
  %s6 = inlined_call_operand.vmem [shape: f32[1,32], index: 6, kind: input, shape index: {}]
  %s7 = inlined_call_operand.vmem [shape: f32[32,32], index: 7, kind: input, shape index: {}]
  %s8 = inlined_call_operand.vmem [shape: f32[1,32], index: 8, kind: input, shape index: {}]
  %s9 = inlined_call_operand.hbm [shape: f32[32,32], index: 9, kind: input, shape index: {}]
  %s10 = inlined_call_operand.vmem [shape: f32[1,32], index: 10, kind: input, shape index: {}]
  %s11 = inlined_call_operand.hbm [shape: f32[32,32], index: 11, kind: input, shape index: {}]
  %s12 = inlined_call_operand.vmem [shape: f32[1,32], index: 12, kind: input, shape index: {}]
  %s13 = inlined_call_operand.<no memory space> [shape: f32[1], index: 13, kind: input, shape index: {}]
  %s14 = inlined_call_operand.hbm [shape: f32[32,128], index: 14, kind: input, shape index: {}]
  %s15 = inlined_call_operand.vmem [shape: f32[1,128], index: 15, kind: input, shape index: {}]
  %s16 = inlined_call_operand.hbm [shape: f32[2,8,128], index: 16, kind: output, shape index: {}]
  %s17 = sld [smem:[#allocation0]]
  $region129: #{tpu_custom_call.1} parent=0
    _
  %s19 = ssub.s32 1, %s17
  %s20 = scalar_select 0, %s19, %s17
  %21 = sst [smem:[#allocation3]] %s13
  $region1: #{tpu_custom_call.1} parent=0
    #allocation4 [shape = 'u8[8192]{0}', space=vmem, size = 0x2000, scoped, tag = 'input window, operand 0']
    #allocation5 [shape = 's32[2]{0}', space=sflag, size = 0x8, scoped, tag = 'scoped memory for tpu_custom_call.1']
    #allocation6 [shape = 's32[2]{0}', space=sflag, size = 0x8, scoped, tag = 'scoped memory for tpu_custom_call.1']
    #allocation7 [shape = 'u8[4096]{0}', space=vmem, size = 0x1000, scoped, tag = 'input window, operand 1, single buffered']
    #allocation8 [shape = 's32[1]{0}', space=sflag, size = 0x4, scoped, tag = 'scoped memory for tpu_custom_call.1']
    #allocation9 [shape = 'u8[4096]{0}', space=vmem, size = 0x1000, scoped, tag = 'input window, operand 2, single buffered']
    #allocation10 [shape = 'u8[4096]{0}', space=vmem, size = 0x1000, scoped, tag = 'input window, operand 3, single buffered']
    #allocation11 [shape = 's32[1]{0}', space=sflag, size = 0x4, scoped, tag = 'scoped memory for tpu_custom_call.1']
    #allocation12 [shape = 'u8[16384]{0}', space=vmem, size = 0x4000, scoped, tag = 'input window, operand 9, single buffered']
    #allocation13 [shape = 'u8[16384]{0}', space=vmem, size = 0x4000, scoped, tag = 'input window, operand 11, single buffered']
    #allocation14 [shape = 's32[1]{0}', space=sflag, size = 0x4, scoped, tag = 'scoped memory for tpu_custom_call.1']
    #allocation15 [shape = 'u8[16384]{0}', space=vmem, size = 0x4000, scoped, tag = 'input window, operand 14, single buffered']
    #allocation16 [shape = 'u8[8192]{0}', space=vmem, size = 0x2000, scoped, tag = 'output window, operand 0']
    %22 = vsyncpa [#allocation5], 0
    %s23 = scalar_lea.sflag [#allocation5], 1
    %24 = vsyncpa %s23, 0
    %25 = vsyncpa [#allocation8], 0
    %26 = vsyncpa [#allocation11], 0
    %27 = vsyncpa [#allocation14], 0
    %28 = vsyncpa [#allocation6], 0
    %s29 = scalar_lea.sflag [#allocation6], 1
    %30 = vsyncpa %s29, 0
    loop: start=0, step=1, limit=4
    $region2: #{tpu_custom_call.1} parent=1 // loop_pre_header
      _
    $region3: #{tpu_custom_call.1} parent=1 // loop_header
      %s32 = sphi 0, %s36
      %p33 = scmp.ge.s32.totalorder %s32, 4
      %s39 = sphi 0, %s51
      %s40 = sphi 0, %s47
      %s41 = sphi 0, %s39
      %s42 = sphi 0, %s40
      %s43 = sphi 0, %s41
      %s44 = sphi 0, %s42
      %s54 = sphi 0, %s56
      %s57 = sphi 0, %s54
      %s58 = sphi 0, %s57
      %s74 = sphi 0, %s58
      %s78 = sphi 0, %s78
      %s80 = sphi 0, %s78
      %s81 = sphi 0, %s80
      %s95 = sphi 0, %s81
      %s99 = sphi 0, %s99
      %s101 = sphi 0, %s99
      %s102 = sphi 0, %s101
      %s116 = sphi 0, %s102
      %s120 = sphi 0, %s120
      %s122 = sphi 0, %s120
      %s123 = sphi 0, %s122
      %s137 = sphi 0, %s123
      %s141 = sphi 0, %s141
      %s143 = sphi 0, %s141
      %s144 = sphi 0, %s143
      %s158 = sphi 0, %s144
      %s162 = sphi 0, %s162
      %s164 = sphi 0, %s162
      %s165 = sphi 0, %s164
      %s179 = sphi 0, %s165
      %s183 = sphi 0, %s183
      %s185 = sphi 0, %s183
      %s186 = sphi 0, %s185
      %s200 = sphi 0, %s186
      %s204 = sphi 0, %s204
      %s206 = sphi 0, %s204
      %s207 = sphi 0, %s206
      %s221 = sphi 0, %s207
      %s225 = sphi 0, %s225
      %s227 = sphi 0, %s225
      %s228 = sphi 0, %s227
      %s242 = sphi 0, %s228
      %s246 = sphi 0, %s246
      %s248 = sphi 0, %s246
      %s249 = sphi 0, %s248
      %s263 = sphi 0, %s249
      %s267 = sphi 0, %s267
      %s269 = sphi 0, %s267
      %s270 = sphi 0, %s269
      %s284 = sphi 0, %s270
      %s288 = sphi 0, %s288
      %s290 = sphi 0, %s288
      %s291 = sphi 0, %s290
      %s305 = sphi 0, %s291
      %s309 = sphi 0, %s309
      %s311 = sphi 0, %s309
      %s312 = sphi 0, %s311
      %s326 = sphi 0, %s312
      %s330 = sphi 0, %s330
      %s332 = sphi 0, %s330
      %s333 = sphi 0, %s332
      %s347 = sphi 0, %s333
      %s353 = sphi 0, %s355
      %s356 = sphi 0, %s353
      %s357 = sphi 0, %s356
      %s373 = sphi 0, %s357
      %s379 = sphi 0, %s381
      %s382 = sphi 0, %s379
      %s383 = sphi 0, %s382
      %s399 = sphi 0, %s383
      %s407 = sphi 0, %s409
      %s410 = sphi 0, %s407
      %s411 = sphi 0, %s410
      %s427 = sphi 0, %s411
    $region4: #{tpu_custom_call.1} parent=1 // loop_header_branch
      %35 = sbr.rel (%p33) target = $region8
    $region5: #{tpu_custom_call.1} parent=1 // loop_body
      %s37 = ssub.s32 %s32, 1
      %s38 = ssub.s32 %s32, 2
      %s45 = sadd.s32 1, %s40
      %p46 = scmp.ge.s32.totalorder %s45, 2
      %s47 = scalar_select %p46, 0, %s45
      %s48 = sadd.s32 1, %s39
      %s49 = scalar_select %p46, %s48, %s39
      %p50 = scmp.ge.s32.totalorder %s49, 1
      %s51 = scalar_select %p50, 0, %s49
      %s52 = ssub.s32 %s40, %s47
      %p53 = scmp.eq.s32.totalorder %s52, 0
      %s55 = sadd.s32 %s54, 1
      %s56 = scalar_select %p53, %s54, %s55
      %p59 = pneg %p53
      %p60 = scmp.eq.s32.totalorder %s32, 1
      %p61 = por %p59, %p60
      %p62 = scmp.ne.s32.totalorder %s54, %s57
      %p63 = scmp.eq.s32.totalorder %s32, 0
      %p64 = por %p62, %p63
      %p65 = scmp.ne.s32.totalorder %s54, %s57
      %p66 = scmp.eq.s32.totalorder %s37, 1
      %p67 = por %p65, %p66
      %p68 = scmp.ne.s32.totalorder %s57, %s58
      %p69 = scmp.eq.s32.totalorder %s37, 0
      %p70 = por %p68, %p69
      %p71 = scmp.ne.s32.totalorder %s57, %s58
      %p72 = scmp.eq.s32.totalorder %s38, 1
      %p73 = por %p71, %p72
      %p75 = scmp.ne.s32.totalorder %s58, %s74
      %p76 = scmp.eq.s32.totalorder %s38, 0
      %p77 = por %p75, %p76
      %s79 = sadd.s32 %s78, 1
      %p82 = scmp.eq.s32.totalorder %s32, 1
      %p83 = scmp.ne.s32.totalorder %s78, %s80
      %p84 = scmp.eq.s32.totalorder %s32, 0
      %p85 = por %p83, %p84
      %p86 = scmp.ne.s32.totalorder %s78, %s80
      %p87 = scmp.eq.s32.totalorder %s37, 1
      %p88 = por %p86, %p87
      %p89 = scmp.ne.s32.totalorder %s80, %s81
      %p90 = scmp.eq.s32.totalorder %s37, 0
      %p91 = por %p89, %p90
      %p92 = scmp.ne.s32.totalorder %s80, %s81
      %p93 = scmp.eq.s32.totalorder %s38, 1
      %p94 = por %p92, %p93
      %p96 = scmp.ne.s32.totalorder %s81, %s95
      %p97 = scmp.eq.s32.totalorder %s38, 0
      %p98 = por %p96, %p97
      %s100 = sadd.s32 %s99, 1
      %p103 = scmp.eq.s32.totalorder %s32, 1
      %p104 = scmp.ne.s32.totalorder %s99, %s101
      %p105 = scmp.eq.s32.totalorder %s32, 0
      %p106 = por %p104, %p105
      %p107 = scmp.ne.s32.totalorder %s99, %s101
      %p108 = scmp.eq.s32.totalorder %s37, 1
      %p109 = por %p107, %p108
      %p110 = scmp.ne.s32.totalorder %s101, %s102
      %p111 = scmp.eq.s32.totalorder %s37, 0
      %p112 = por %p110, %p111
      %p113 = scmp.ne.s32.totalorder %s101, %s102
      %p114 = scmp.eq.s32.totalorder %s38, 1
      %p115 = por %p113, %p114
      %p117 = scmp.ne.s32.totalorder %s102, %s116
      %p118 = scmp.eq.s32.totalorder %s38, 0
      %p119 = por %p117, %p118
      %s121 = sadd.s32 %s120, 1
      %p124 = scmp.eq.s32.totalorder %s32, 1
      %p125 = scmp.ne.s32.totalorder %s120, %s122
      %p126 = scmp.eq.s32.totalorder %s32, 0
      %p127 = por %p125, %p126
      %p128 = scmp.ne.s32.totalorder %s120, %s122
      %p129 = scmp.eq.s32.totalorder %s37, 1
      %p130 = por %p128, %p129
      %p131 = scmp.ne.s32.totalorder %s122, %s123
      %p132 = scmp.eq.s32.totalorder %s37, 0
      %p133 = por %p131, %p132
      %p134 = scmp.ne.s32.totalorder %s122, %s123
      %p135 = scmp.eq.s32.totalorder %s38, 1
      %p136 = por %p134, %p135
      %p138 = scmp.ne.s32.totalorder %s123, %s137
      %p139 = scmp.eq.s32.totalorder %s38, 0
      %p140 = por %p138, %p139
      %s142 = sadd.s32 %s141, 1
      %p145 = scmp.eq.s32.totalorder %s32, 1
      %p146 = scmp.ne.s32.totalorder %s141, %s143
      %p147 = scmp.eq.s32.totalorder %s32, 0
      %p148 = por %p146, %p147
      %p149 = scmp.ne.s32.totalorder %s141, %s143
      %p150 = scmp.eq.s32.totalorder %s37, 1
      %p151 = por %p149, %p150
      %p152 = scmp.ne.s32.totalorder %s143, %s144
      %p153 = scmp.eq.s32.totalorder %s37, 0
      %p154 = por %p152, %p153
      %p155 = scmp.ne.s32.totalorder %s143, %s144
      %p156 = scmp.eq.s32.totalorder %s38, 1
      %p157 = por %p155, %p156
      %p159 = scmp.ne.s32.totalorder %s144, %s158
      %p160 = scmp.eq.s32.totalorder %s38, 0
      %p161 = por %p159, %p160
      %s163 = sadd.s32 %s162, 1
      %p166 = scmp.eq.s32.totalorder %s32, 1
      %p167 = scmp.ne.s32.totalorder %s162, %s164
      %p168 = scmp.eq.s32.totalorder %s32, 0
      %p169 = por %p167, %p168
      %p170 = scmp.ne.s32.totalorder %s162, %s164
      %p171 = scmp.eq.s32.totalorder %s37, 1
      %p172 = por %p170, %p171
      %p173 = scmp.ne.s32.totalorder %s164, %s165
      %p174 = scmp.eq.s32.totalorder %s37, 0
      %p175 = por %p173, %p174
      %p176 = scmp.ne.s32.totalorder %s164, %s165
      %p177 = scmp.eq.s32.totalorder %s38, 1
      %p178 = por %p176, %p177
      %p180 = scmp.ne.s32.totalorder %s165, %s179
      %p181 = scmp.eq.s32.totalorder %s38, 0
      %p182 = por %p180, %p181
      %s184 = sadd.s32 %s183, 1
      %p187 = scmp.eq.s32.totalorder %s32, 1
      %p188 = scmp.ne.s32.totalorder %s183, %s185
      %p189 = scmp.eq.s32.totalorder %s32, 0
      %p190 = por %p188, %p189
      %p191 = scmp.ne.s32.totalorder %s183, %s185
      %p192 = scmp.eq.s32.totalorder %s37, 1
      %p193 = por %p191, %p192
      %p194 = scmp.ne.s32.totalorder %s185, %s186
      %p195 = scmp.eq.s32.totalorder %s37, 0
      %p196 = por %p194, %p195
      %p197 = scmp.ne.s32.totalorder %s185, %s186
      %p198 = scmp.eq.s32.totalorder %s38, 1
      %p199 = por %p197, %p198
      %p201 = scmp.ne.s32.totalorder %s186, %s200
      %p202 = scmp.eq.s32.totalorder %s38, 0
      %p203 = por %p201, %p202
      %s205 = sadd.s32 %s204, 1
      %p208 = scmp.eq.s32.totalorder %s32, 1
      %p209 = scmp.ne.s32.totalorder %s204, %s206
      %p210 = scmp.eq.s32.totalorder %s32, 0
      %p211 = por %p209, %p210
      %p212 = scmp.ne.s32.totalorder %s204, %s206
      %p213 = scmp.eq.s32.totalorder %s37, 1
      %p214 = por %p212, %p213
      %p215 = scmp.ne.s32.totalorder %s206, %s207
      %p216 = scmp.eq.s32.totalorder %s37, 0
      %p217 = por %p215, %p216
      %p218 = scmp.ne.s32.totalorder %s206, %s207
      %p219 = scmp.eq.s32.totalorder %s38, 1
      %p220 = por %p218, %p219
      %p222 = scmp.ne.s32.totalorder %s207, %s221
      %p223 = scmp.eq.s32.totalorder %s38, 0
      %p224 = por %p222, %p223
      %s226 = sadd.s32 %s225, 1
      %p229 = scmp.eq.s32.totalorder %s32, 1
      %p230 = scmp.ne.s32.totalorder %s225, %s227
      %p231 = scmp.eq.s32.totalorder %s32, 0
      %p232 = por %p230, %p231
      %p233 = scmp.ne.s32.totalorder %s225, %s227
      %p234 = scmp.eq.s32.totalorder %s37, 1
      %p235 = por %p233, %p234
      %p236 = scmp.ne.s32.totalorder %s227, %s228
      %p237 = scmp.eq.s32.totalorder %s37, 0
      %p238 = por %p236, %p237
      %p239 = scmp.ne.s32.totalorder %s227, %s228
      %p240 = scmp.eq.s32.totalorder %s38, 1
      %p241 = por %p239, %p240
      %p243 = scmp.ne.s32.totalorder %s228, %s242
      %p244 = scmp.eq.s32.totalorder %s38, 0
      %p245 = por %p243, %p244
      %s247 = sadd.s32 %s246, 1
      %p250 = scmp.eq.s32.totalorder %s32, 1
      %p251 = scmp.ne.s32.totalorder %s246, %s248
      %p252 = scmp.eq.s32.totalorder %s32, 0
      %p253 = por %p251, %p252
      %p254 = scmp.ne.s32.totalorder %s246, %s248
      %p255 = scmp.eq.s32.totalorder %s37, 1
      %p256 = por %p254, %p255
      %p257 = scmp.ne.s32.totalorder %s248, %s249
      %p258 = scmp.eq.s32.totalorder %s37, 0
      %p259 = por %p257, %p258
      %p260 = scmp.ne.s32.totalorder %s248, %s249
      %p261 = scmp.eq.s32.totalorder %s38, 1
      %p262 = por %p260, %p261
      %p264 = scmp.ne.s32.totalorder %s249, %s263
      %p265 = scmp.eq.s32.totalorder %s38, 0
      %p266 = por %p264, %p265
      %s268 = sadd.s32 %s267, 1
      %p271 = scmp.eq.s32.totalorder %s32, 1
      %p272 = scmp.ne.s32.totalorder %s267, %s269
      %p273 = scmp.eq.s32.totalorder %s32, 0
      %p274 = por %p272, %p273
      %p275 = scmp.ne.s32.totalorder %s267, %s269
      %p276 = scmp.eq.s32.totalorder %s37, 1
      %p277 = por %p275, %p276
      %p278 = scmp.ne.s32.totalorder %s269, %s270
      %p279 = scmp.eq.s32.totalorder %s37, 0
      %p280 = por %p278, %p279
      %p281 = scmp.ne.s32.totalorder %s269, %s270
      %p282 = scmp.eq.s32.totalorder %s38, 1
      %p283 = por %p281, %p282
      %p285 = scmp.ne.s32.totalorder %s270, %s284
      %p286 = scmp.eq.s32.totalorder %s38, 0
      %p287 = por %p285, %p286
      %s289 = sadd.s32 %s288, 1
      %p292 = scmp.eq.s32.totalorder %s32, 1
      %p293 = scmp.ne.s32.totalorder %s288, %s290
      %p294 = scmp.eq.s32.totalorder %s32, 0
      %p295 = por %p293, %p294
      %p296 = scmp.ne.s32.totalorder %s288, %s290
      %p297 = scmp.eq.s32.totalorder %s37, 1
      %p298 = por %p296, %p297
      %p299 = scmp.ne.s32.totalorder %s290, %s291
      %p300 = scmp.eq.s32.totalorder %s37, 0
      %p301 = por %p299, %p300
      %p302 = scmp.ne.s32.totalorder %s290, %s291
      %p303 = scmp.eq.s32.totalorder %s38, 1
      %p304 = por %p302, %p303
      %p306 = scmp.ne.s32.totalorder %s291, %s305
      %p307 = scmp.eq.s32.totalorder %s38, 0
      %p308 = por %p306, %p307
      %s310 = sadd.s32 %s309, 1
      %p313 = scmp.eq.s32.totalorder %s32, 1
      %p314 = scmp.ne.s32.totalorder %s309, %s311
      %p315 = scmp.eq.s32.totalorder %s32, 0
      %p316 = por %p314, %p315
      %p317 = scmp.ne.s32.totalorder %s309, %s311
      %p318 = scmp.eq.s32.totalorder %s37, 1
      %p319 = por %p317, %p318
      %p320 = scmp.ne.s32.totalorder %s311, %s312
      %p321 = scmp.eq.s32.totalorder %s37, 0
      %p322 = por %p320, %p321
      %p323 = scmp.ne.s32.totalorder %s311, %s312
      %p324 = scmp.eq.s32.totalorder %s38, 1
      %p325 = por %p323, %p324
      %p327 = scmp.ne.s32.totalorder %s312, %s326
      %p328 = scmp.eq.s32.totalorder %s38, 0
      %p329 = por %p327, %p328
      %s331 = sadd.s32 %s330, 1
      %p334 = scmp.eq.s32.totalorder %s32, 1
      %p335 = scmp.ne.s32.totalorder %s330, %s332
      %p336 = scmp.eq.s32.totalorder %s32, 0
      %p337 = por %p335, %p336
      %p338 = scmp.ne.s32.totalorder %s330, %s332
      %p339 = scmp.eq.s32.totalorder %s37, 1
      %p340 = por %p338, %p339
      %p341 = scmp.ne.s32.totalorder %s332, %s333
      %p342 = scmp.eq.s32.totalorder %s37, 0
      %p343 = por %p341, %p342
      %p344 = scmp.ne.s32.totalorder %s332, %s333
      %p345 = scmp.eq.s32.totalorder %s38, 1
      %p346 = por %p344, %p345
      %p348 = scmp.ne.s32.totalorder %s333, %s347
      %p349 = scmp.eq.s32.totalorder %s38, 0
      %p350 = por %p348, %p349
      %s351 = ssub.s32 %s39, %s51
      %p352 = scmp.eq.s32.totalorder %s351, 0
      %s354 = sadd.s32 %s353, 1
      %s355 = scalar_select %p352, %s353, %s354
      %p358 = pneg %p352
      %p359 = scmp.eq.s32.totalorder %s32, 1
      %p360 = por %p358, %p359
      %p361 = scmp.ne.s32.totalorder %s353, %s356
      %p362 = scmp.eq.s32.totalorder %s32, 0
      %p363 = por %p361, %p362
      %p364 = scmp.ne.s32.totalorder %s353, %s356
      %p365 = scmp.eq.s32.totalorder %s37, 1
      %p366 = por %p364, %p365
      %p367 = scmp.ne.s32.totalorder %s356, %s357
      %p368 = scmp.eq.s32.totalorder %s37, 0
      %p369 = por %p367, %p368
      %p370 = scmp.ne.s32.totalorder %s356, %s357
      %p371 = scmp.eq.s32.totalorder %s38, 1
      %p372 = por %p370, %p371
      %p374 = scmp.ne.s32.totalorder %s357, %s373
      %p375 = scmp.eq.s32.totalorder %s38, 0
      %p376 = por %p374, %p375
      %s377 = ssub.s32 %s39, %s51
      %p378 = scmp.eq.s32.totalorder %s377, 0
      %s380 = sadd.s32 %s379, 1
      %s381 = scalar_select %p378, %s379, %s380
      %p384 = pneg %p378
      %p385 = scmp.eq.s32.totalorder %s32, 1
      %p386 = por %p384, %p385
      %p387 = scmp.ne.s32.totalorder %s379, %s382
      %p388 = scmp.eq.s32.totalorder %s32, 0
      %p389 = por %p387, %p388
      %p390 = scmp.ne.s32.totalorder %s379, %s382
      %p391 = scmp.eq.s32.totalorder %s37, 1
      %p392 = por %p390, %p391
      %p393 = scmp.ne.s32.totalorder %s382, %s383
      %p394 = scmp.eq.s32.totalorder %s37, 0
      %p395 = por %p393, %p394
      %p396 = scmp.ne.s32.totalorder %s382, %s383
      %p397 = scmp.eq.s32.totalorder %s38, 1
      %p398 = por %p396, %p397
      %p400 = scmp.ne.s32.totalorder %s383, %s399
      %p401 = scmp.eq.s32.totalorder %s38, 0
      %p402 = por %p400, %p401
      %s403 = ssub.s32 %s40, %s47
      %s404 = ssub.s32 %s39, %s51
      %s405 = sor.u32 %s403, %s404
      %p406 = scmp.eq.s32.totalorder %s405, 0
      %s408 = sadd.s32 %s407, 1
      %s409 = scalar_select %p406, %s407, %s408
      %p412 = pneg %p406
      %p413 = scmp.eq.s32.totalorder %s32, 1
      %p414 = por %p412, %p413
      %p415 = scmp.ne.s32.totalorder %s407, %s410
      %p416 = scmp.eq.s32.totalorder %s32, 0
      %p417 = por %p415, %p416
      %p418 = scmp.ne.s32.totalorder %s407, %s410
      %p419 = scmp.eq.s32.totalorder %s37, 1
      %p420 = por %p418, %p419
      %p421 = scmp.ne.s32.totalorder %s410, %s411
      %p422 = scmp.eq.s32.totalorder %s37, 0
      %p423 = por %p421, %p422
      %p424 = scmp.ne.s32.totalorder %s410, %s411
      %p425 = scmp.eq.s32.totalorder %s38, 1
      %p426 = por %p424, %p425
      %p428 = scmp.ne.s32.totalorder %s411, %s427
      %p429 = scmp.eq.s32.totalorder %s38, 0
      %p430 = por %p428, %p429
      %p431 = scmp.le.s32.totalorder 1, %s32
      %p432 = scmp.lt.s32.totalorder %s32, 3
      %p433 = pnand %p431, %p432
      %p434 = pneg %p433
      // Predicated region
      $region9: #{tpu_custom_call.1} parent=5 // pred_check
        _
      $region10: #{tpu_custom_call.1} parent=5 // pred_check_branch
        %436 = sbr.rel (%p433) target = $region12
      $region11: #{tpu_custom_call.1} parent=5 // pred_region
        %s437 = ssub.s32 %s32, 1
        // Predicated region
        $region13: #{tpu_custom_call.1} parent=11 // pred_check
          %p438 = pneg %p91
        $region14: #{tpu_custom_call.1} parent=11 // pred_check_branch
          %440 = sbr.rel (%p438) target = $region16
        $region15: #{tpu_custom_call.1} parent=11 // pred_region
          %442 = vsyncadd [#allocation8], 0
          %s444 = sshll.u32 %s1, 4
          %s445 = int_to_ptr.hbm [resolvable:$true] %s444
          %s446 = sshll.u32 [#allocation7], 4
          %s447 = int_to_ptr.vmem [resolvable:$true] %s446
          %449 = dma.hbm_to_vmem [thread:$0]  %s445, 128, %s447, [#allocation8]
        $region16: #{tpu_custom_call.1} parent=11 // pred_fallthru
          _
        // Predicated region
        $region17: #{tpu_custom_call.1} parent=11 // pred_check
          %p450 = pneg %p112
        $region18: #{tpu_custom_call.1} parent=11 // pred_check_branch
          %452 = sbr.rel (%p450) target = $region20
        $region19: #{tpu_custom_call.1} parent=11 // pred_region
          %454 = vsyncadd [#allocation8], 0
          %s456 = sshll.u32 %s2, 4
          %s457 = int_to_ptr.hbm [resolvable:$true] %s456
          %s458 = sshll.u32 [#allocation9], 4
          %s459 = int_to_ptr.vmem [resolvable:$true] %s458
          %461 = dma.hbm_to_vmem [thread:$0]  %s457, 128, %s459, [#allocation8]
        $region20: #{tpu_custom_call.1} parent=11 // pred_fallthru
          _
        // Predicated region
        $region21: #{tpu_custom_call.1} parent=11 // pred_check
          %p462 = pneg %p133
        $region22: #{tpu_custom_call.1} parent=11 // pred_check_branch
          %464 = sbr.rel (%p462) target = $region24
        $region23: #{tpu_custom_call.1} parent=11 // pred_region
          %466 = vsyncadd [#allocation11], 0
          %s468 = sshll.u32 %s3, 4
          %s469 = int_to_ptr.hbm [resolvable:$true] %s468
          %s470 = sshll.u32 [#allocation10], 4
          %s471 = int_to_ptr.vmem [resolvable:$true] %s470
          %473 = dma.hbm_to_vmem [thread:$0]  %s469, 128, %s471, [#allocation11]
        $region24: #{tpu_custom_call.1} parent=11 // pred_fallthru
          _
        // Predicated region
        $region25: #{tpu_custom_call.1} parent=11 // pred_check
          %p474 = pneg %p154
        $region26: #{tpu_custom_call.1} parent=11 // pred_check_branch
          %476 = sbr.rel (%p474) target = $region28
        $region27: #{tpu_custom_call.1} parent=11 // pred_region
          _
        $region28: #{tpu_custom_call.1} parent=11 // pred_fallthru
          _
        // Predicated region
        $region29: #{tpu_custom_call.1} parent=11 // pred_check
          %p477 = pneg %p175
        $region30: #{tpu_custom_call.1} parent=11 // pred_check_branch
          %479 = sbr.rel (%p477) target = $region32
        $region31: #{tpu_custom_call.1} parent=11 // pred_region
          _
        $region32: #{tpu_custom_call.1} parent=11 // pred_fallthru
          _
        // Predicated region
        $region33: #{tpu_custom_call.1} parent=11 // pred_check
          %p480 = pneg %p196
        $region34: #{tpu_custom_call.1} parent=11 // pred_check_branch
          %482 = sbr.rel (%p480) target = $region36
        $region35: #{tpu_custom_call.1} parent=11 // pred_region
          _
        $region36: #{tpu_custom_call.1} parent=11 // pred_fallthru
          _
        // Predicated region
        $region37: #{tpu_custom_call.1} parent=11 // pred_check
          %p483 = pneg %p217
        $region38: #{tpu_custom_call.1} parent=11 // pred_check_branch
          %485 = sbr.rel (%p483) target = $region40
        $region39: #{tpu_custom_call.1} parent=11 // pred_region
          _
        $region40: #{tpu_custom_call.1} parent=11 // pred_fallthru
          _
        // Predicated region
        $region41: #{tpu_custom_call.1} parent=11 // pred_check
          %p486 = pneg %p238
        $region42: #{tpu_custom_call.1} parent=11 // pred_check_branch
          %488 = sbr.rel (%p486) target = $region44
        $region43: #{tpu_custom_call.1} parent=11 // pred_region
          _
        $region44: #{tpu_custom_call.1} parent=11 // pred_fallthru
          _
        // Predicated region
        $region45: #{tpu_custom_call.1} parent=11 // pred_check
          %p489 = pneg %p259
        $region46: #{tpu_custom_call.1} parent=11 // pred_check_branch
          %491 = sbr.rel (%p489) target = $region48
        $region47: #{tpu_custom_call.1} parent=11 // pred_region
          %493 = vsyncadd [#allocation11], 0
          %s494 = sshll.u32 %s9, 4
          %s495 = int_to_ptr.hbm [resolvable:$true] %s494
          %s496 = sshll.u32 [#allocation12], 4
          %s497 = int_to_ptr.vmem [resolvable:$true] %s496
          %502 = dma.hbm_to_vmem [thread:$0]  %s495, 512, %s497, [#allocation11], 128, 128, 8
        $region48: #{tpu_custom_call.1} parent=11 // pred_fallthru
          _
        // Predicated region
        $region49: #{tpu_custom_call.1} parent=11 // pred_check
          %p503 = pneg %p280
        $region50: #{tpu_custom_call.1} parent=11 // pred_check_branch
          %505 = sbr.rel (%p503) target = $region52
        $region51: #{tpu_custom_call.1} parent=11 // pred_region
          _
        $region52: #{tpu_custom_call.1} parent=11 // pred_fallthru
          _
        // Predicated region
        $region53: #{tpu_custom_call.1} parent=11 // pred_check
          %p506 = pneg %p301
        $region54: #{tpu_custom_call.1} parent=11 // pred_check_branch
          %508 = sbr.rel (%p506) target = $region56
        $region55: #{tpu_custom_call.1} parent=11 // pred_region
          %510 = vsyncadd [#allocation14], 0
          %s511 = sshll.u32 %s11, 4
          %s512 = int_to_ptr.hbm [resolvable:$true] %s511
          %s513 = sshll.u32 [#allocation13], 4
          %s514 = int_to_ptr.vmem [resolvable:$true] %s513
          %519 = dma.hbm_to_vmem [thread:$0]  %s512, 512, %s514, [#allocation14], 128, 128, 8
        $region56: #{tpu_custom_call.1} parent=11 // pred_fallthru
          _
        // Predicated region
        $region57: #{tpu_custom_call.1} parent=11 // pred_check
          %p520 = pneg %p322
        $region58: #{tpu_custom_call.1} parent=11 // pred_check_branch
          %522 = sbr.rel (%p520) target = $region60
        $region59: #{tpu_custom_call.1} parent=11 // pred_region
          _
        $region60: #{tpu_custom_call.1} parent=11 // pred_fallthru
          _
        // Predicated region
        $region61: #{tpu_custom_call.1} parent=11 // pred_check
          %p523 = pneg %p343
        $region62: #{tpu_custom_call.1} parent=11 // pred_check_branch
          %525 = sbr.rel (%p523) target = $region64
        $region63: #{tpu_custom_call.1} parent=11 // pred_region
          _
        $region64: #{tpu_custom_call.1} parent=11 // pred_fallthru
          _
        // Predicated region
        $region65: #{tpu_custom_call.1} parent=11 // pred_check
          %p526 = pneg %p369
        $region66: #{tpu_custom_call.1} parent=11 // pred_check_branch
          %528 = sbr.rel (%p526) target = $region68
        $region67: #{tpu_custom_call.1} parent=11 // pred_region
          %530 = vsyncadd [#allocation14], 0
          %s531 = smul.addr %s41, 8
          %s532 = scalar_lea.hbm %s14, %s531
          %s533 = sshll.u32 %s532, 4
          %s534 = int_to_ptr.hbm [resolvable:$true] %s533
          %s535 = sshll.u32 [#allocation15], 4
          %s536 = int_to_ptr.vmem [resolvable:$true] %s535
          %541 = dma.hbm_to_vmem [thread:$0]  %s534, 512, %s536, [#allocation14], 128, 128, 8
        $region68: #{tpu_custom_call.1} parent=11 // pred_fallthru
          _
        // Predicated region
        $region69: #{tpu_custom_call.1} parent=11 // pred_check
          %p542 = pneg %p395
        $region70: #{tpu_custom_call.1} parent=11 // pred_check_branch
          %544 = sbr.rel (%p542) target = $region72
        $region71: #{tpu_custom_call.1} parent=11 // pred_region
          %p545 = scmp.lt.s32.totalorder %s41, 0
          %s546 = scalar_select %p545, %s41, 0
          %s547 = scalar_lea.vmem %s15, %s546
        $region72: #{tpu_custom_call.1} parent=11 // pred_fallthru
          _
      $region12: #{tpu_custom_call.1} parent=5 // pred_fallthru
        _
      %p548 = scmp.lt.s32.totalorder %s32, 2
      // Predicated region
      $region73: #{tpu_custom_call.1} parent=5 // pred_check
        %p549 = pneg %p548
      $region74: #{tpu_custom_call.1} parent=5 // pred_check_branch
        %551 = sbr.rel (%p549) target = $region76
      $region75: #{tpu_custom_call.1} parent=5 // pred_region
        // Predicated region
        $region77: #{tpu_custom_call.1} parent=75 // pred_check
          %p552 = pneg %p64
        $region78: #{tpu_custom_call.1} parent=75 // pred_check_branch
          %554 = sbr.rel (%p552) target = $region80
        $region79: #{tpu_custom_call.1} parent=75 // pred_region
          %s555 = sand.u32 %s54, 1
          %s556 = scalar_lea.sflag [#allocation5], %s555
          %s557 = sand.u32 %s54, 1
          %s558 = smul.addr %s557, 8
          %s559 = scalar_lea.vmem [#allocation4], %s558
          %561 = vsyncadd %s556, 0
          %s562 = smul.addr %s40, 8
          %s563 = scalar_lea.hbm %s0, %s562
          %s565 = sshll.u32 %s563, 4
          %s566 = int_to_ptr.hbm [resolvable:$true] %s565
          %s567 = sshll.u32 %s559, 4
          %s568 = int_to_ptr.vmem [resolvable:$true] %s567
          %570 = dma.hbm_to_vmem [thread:$0]  %s566, 128, %s568, %s556
        $region80: #{tpu_custom_call.1} parent=75 // pred_fallthru
          _
      $region76: #{tpu_custom_call.1} parent=5 // pred_fallthru
        _
      %p571 = scmp.le.s32.totalorder 1, %s32
      %p572 = scmp.lt.s32.totalorder %s32, 3
      %p573 = pnand %p571, %p572
      %p574 = pneg %p573
      // Predicated region
      $region81: #{tpu_custom_call.1} parent=5 // pred_check
        _
      $region82: #{tpu_custom_call.1} parent=5 // pred_check_branch
        %576 = sbr.rel (%p573) target = $region84
      $region83: #{tpu_custom_call.1} parent=5 // pred_region
        %s577 = ssub.s32 %s32, 1
        %s578 = sand.u32 %s57, 1
        %s579 = scalar_lea.sflag [#allocation5], %s578
        %s580 = sand.u32 %s57, 1
        %s581 = smul.addr %s580, 8
        %s582 = scalar_lea.vmem [#allocation4], %s581
        // Predicated region
        $region85: #{tpu_custom_call.1} parent=83 // pred_check
          %p583 = pneg %p70
        $region86: #{tpu_custom_call.1} parent=83 // pred_check_branch
          %585 = sbr.rel (%p583) target = $region88
        $region87: #{tpu_custom_call.1} parent=83 // pred_region
          %587 = dma.done %s579, 128
        $region88: #{tpu_custom_call.1} parent=83 // pred_fallthru
          _
        // Predicated region
        $region89: #{tpu_custom_call.1} parent=83 // pred_check
          %p588 = pneg %p91
        $region90: #{tpu_custom_call.1} parent=83 // pred_check_branch
          %590 = sbr.rel (%p588) target = $region92
        $region91: #{tpu_custom_call.1} parent=83 // pred_region
          %592 = dma.done [#allocation8], 128
        $region92: #{tpu_custom_call.1} parent=83 // pred_fallthru
          _
        // Predicated region
        $region93: #{tpu_custom_call.1} parent=83 // pred_check
          %p593 = pneg %p112
        $region94: #{tpu_custom_call.1} parent=83 // pred_check_branch
          %595 = sbr.rel (%p593) target = $region96
        $region95: #{tpu_custom_call.1} parent=83 // pred_region
          %597 = dma.done [#allocation8], 128
        $region96: #{tpu_custom_call.1} parent=83 // pred_fallthru
          _
        // Predicated region
        $region97: #{tpu_custom_call.1} parent=83 // pred_check
          %p598 = pneg %p133
        $region98: #{tpu_custom_call.1} parent=83 // pred_check_branch
          %600 = sbr.rel (%p598) target = $region100
        $region99: #{tpu_custom_call.1} parent=83 // pred_region
          %602 = dma.done [#allocation11], 128
        $region100: #{tpu_custom_call.1} parent=83 // pred_fallthru
          _
        // Predicated region
        $region101: #{tpu_custom_call.1} parent=83 // pred_check
          %p603 = pneg %p259
        $region102: #{tpu_custom_call.1} parent=83 // pred_check_branch
          %605 = sbr.rel (%p603) target = $region104
        $region103: #{tpu_custom_call.1} parent=83 // pred_region
          %607 = dma.done [#allocation11], 512
        $region104: #{tpu_custom_call.1} parent=83 // pred_fallthru
          _
        // Predicated region
        $region105: #{tpu_custom_call.1} parent=83 // pred_check
          %p608 = pneg %p301
        $region106: #{tpu_custom_call.1} parent=83 // pred_check_branch
          %610 = sbr.rel (%p608) target = $region108
        $region107: #{tpu_custom_call.1} parent=83 // pred_region
          %612 = dma.done [#allocation14], 512
        $region108: #{tpu_custom_call.1} parent=83 // pred_fallthru
          _
        // Predicated region
        $region109: #{tpu_custom_call.1} parent=83 // pred_check
          %p613 = pneg %p369
        $region110: #{tpu_custom_call.1} parent=83 // pred_check_branch
          %615 = sbr.rel (%p613) target = $region112
        $region111: #{tpu_custom_call.1} parent=83 // pred_region
          %617 = dma.done [#allocation14], 512
        $region112: #{tpu_custom_call.1} parent=83 // pred_fallthru
          _
        %s618 = sand.u32 %s57, 1
        %s619 = scalar_lea.sflag [#allocation5], %s618
        %s620 = sand.u32 %s57, 1
        %s621 = smul.addr %s620, 8
        %s622 = scalar_lea.vmem [#allocation4], %s621
        %p623 = pneg %p70
        %p624 = pneg %p67
        %p625 = pneg %p91
        %p626 = pneg %p88
        %p627 = pneg %p112
        %p628 = pneg %p109
        %p629 = pneg %p133
        %p630 = pneg %p130
        %p631 = pneg %p154
        %p632 = pneg %p151
        %p633 = pneg %p175
        %p634 = pneg %p172
        %p635 = pneg %p196
        %p636 = pneg %p193
        %p637 = pneg %p217
        %p638 = pneg %p214
        %p639 = pneg %p238
        %p640 = pneg %p235
        %p641 = pneg %p259
        %p642 = pneg %p256
        %p643 = pneg %p280
        %p644 = pneg %p277
        %p645 = pneg %p301
        %p646 = pneg %p298
        %p647 = pneg %p322
        %p648 = pneg %p319
        %p649 = pneg %p343
        %p650 = pneg %p340
        %p651 = pneg %p369
        %p652 = pneg %p366
        %p653 = scmp.lt.s32.totalorder %s41, 0
        %s654 = scalar_select %p653, %s41, 0
        %s655 = scalar_lea.vmem %s15, %s654
        %p656 = pneg %p395
        %p657 = pneg %p392
        %p658 = pneg %p423
        %p659 = pneg %p420
        %s660 = sand.u32 %s410, 1
        %s661 = scalar_lea.sflag [#allocation6], %s660
        %s662 = sand.u32 %s410, 1
        %s663 = smul.addr %s662, 8
        %s664 = scalar_lea.vmem [#allocation16], %s663
        %p665 = scmp.lt.s32.totalorder %s41, 0
        %s666 = scalar_select %p665, %s41, 0
        %s667 = scalar_lea.vmem %s15, %s666
        %p668 = scmp.eq.s32.totalorder %s41, 0
        // Predicated region
        $region113: #{tpu_custom_call.1} parent=83 // pred_check
          %p669 = pneg %p668
        $region114: #{tpu_custom_call.1} parent=83 // pred_check_branch
          %671 = sbr.rel (%p669) target = $region116
        $region115: #{tpu_custom_call.1} parent=83 // pred_region
          %v672 = vld [vmem:[%s582] sm:$0xff]
          %v673 = vld [vmem:[#allocation7] sm:$0xff]
          %v674 = vld [vmem:[#allocation9] sm:$0xff]
          %v675 = vld [vmem:[#allocation10] sm:$0xff]
          %v676 = vmul.f32 %v672, %v672
          %vm677 = vcmask 261120
          %v678 = vsel %vm677, %v676, 0.0
          %679 = vadd.xlane.f32.xlu0 %v678
          %v680 = vpop.xlane.xlu0 %679
          %v681 = vrot.slane %v680, 4
          %v682 = vadd.f32 %v680, %v681
          %v683 = vrot.slane %v682, 2
          %v684 = vadd.f32 %v682, %v683
          %v685 = vrot.slane %v684, 1
          %v686 = vadd.f32 %v684, %v685
          %s687 = vtos %v686
          %s688 = smul.f32 %s687, 0.00390625
          %v689 = vstv %s688
          %v690 = vrsqrt.pop %v689
          %v691 = vmul.f32 %v690, %v689
          %v692 = vmul.f32 %v691, %v690
          %v693 = vmul.f32 0.5, %v692
          %v694 = vsub.f32 1.5, %v693
          %v695 = vmul.f32 %v690, %v694
          %vm696 = vweird.f32 %v689
          %vm697 = vweird.f32 %v690
          %vm698 = vmor %vm696, %vm697
          %v699 = vsel %vm698, %v690, %v695
          %s700 = vtos %v699
          %v701 = vstv %s700
          %v702 = vmul.f32 %v672, %v701
          %v703 = vmul.f32 %v673, %v702
          %v704 = vld [vmem:[%s4] sm:$0xff]
          %v705 = vld [vmem:[%s4 + $0x8] sm:$0xff]
          %v706 = vld [vmem:[%s4 + $0x10] sm:$0xff]
          %v707 = vld [vmem:[%s4 + $0x18] sm:$0xff]
          %v708 = vld [vmem:[%s4 + $0x20] sm:$0xff]
          %v709 = vld [vmem:[%s4 + $0x28] sm:$0xff]
          %v710 = vld [vmem:[%s4 + $0x30] sm:$0xff]
          %v711 = vld [vmem:[%s4 + $0x38] sm:$0xff]
          %v713 = vsel %vm677, %v703, 0
          %715 = vmatpush.msra.mxu0 0.0
          %716 = vmatpush.msra.mxu0 0.0
          %717 = vmatpush.msra.mxu0 0.0
          %718 = vmatpush.msra.mxu0 0.0
          %719 = vmatpush.msra.mxu0 0.0
          %720 = vmatpush.msra.mxu0 0.0
          %721 = vmatpush.msra.mxu0 0.0
          %722 = vmatpush.msra.mxu0 0.0
          %723 = vmatpush.msra.mxu0 0.0
          %724 = vmatpush.msra.mxu0 0.0
          %725 = vmatpush.msra.mxu0 0.0
          %726 = vmatpush.msra.mxu0 0.0
          %727 = vmatpush.msra.mxu0 %v710
          %728 = vmatpush.msra.mxu0 %v708
          %729 = vmatpush.msra.mxu0 %v706
          %730 = vmatpush.msra.mxu0 %v704
          %731 = vmatmul.f32.gmra.mxu0 %v713
          %v732 = vpop.f32.mrf.mxu0
          %v733 = vadd.f32 0.0, %v732
          %734 = vdwg.mxu0
          %735 = vmatpush.msra.mxu0 0.0
          %736 = vmatpush.msra.mxu0 0.0
          %737 = vmatpush.msra.mxu0 0.0
          %738 = vmatpush.msra.mxu0 0.0
          %739 = vmatpush.msra.mxu0 0.0
          %740 = vmatpush.msra.mxu0 0.0
          %741 = vmatpush.msra.mxu0 0.0
          %742 = vmatpush.msra.mxu0 0.0
          %743 = vmatpush.msra.mxu0 0.0
          %744 = vmatpush.msra.mxu0 0.0
          %745 = vmatpush.msra.mxu0 0.0
          %746 = vmatpush.msra.mxu0 0.0
          %747 = vmatpush.msra.mxu0 %v711
          %748 = vmatpush.msra.mxu0 %v709
          %749 = vmatpush.msra.mxu0 %v707
          %750 = vmatpush.msra.mxu0 %v705
          %751 = vmatmul.f32.gmra.mxu0 %v713
          %v752 = vpop.f32.mrf.mxu0
          %v753 = vadd.f32 0.0, %v752
          %754 = vdwg.mxu0
          %v755 = vlaneseq
          %v756 = vshrl.u32 %v755, 7
          %v757 = vlaneseq
          %v758 = vand.u32 %v757, 127
          %vm759 = vcmp.ge.s32.totalorder %v756, %v758
          %v760 = vmul.f32 %v733, %v674
          %762 = vrot.lane.b32.xlu0 %v733, 112
          %v763 = vpop.permute.xlu0 %762
          %765 = vrot.lane.b32.xlu0 %v733, 16
          %v766 = vpop.permute.xlu0 %765
          %vm768 = vcmask 130048
          %v769 = vsel %vm768, %v763, %v766
          %v770 = vmul.f32 %v769, %v675
          %v771 = vadd.f32 %v760, %v770
          %773 = vrot.lane.b32.xlu0 %v674, 64
          %v774 = vpop.permute.xlu0 %773
          %v776 = vmul.f32 %v733, %v774
          %777 = vrot.lane.b32.xlu0 %v733, 48
          %v778 = vpop.permute.xlu0 %777
          %780 = vrot.lane.b32.xlu0 %v733, 80
          %v781 = vpop.permute.xlu0 %780
          %v783 = vsel %vm768, %v778, %v781
          %v784 = vmul.f32 %v783, %v675
          %786 = vrot.lane.b32.xlu0 %v784, 64
          %v787 = vpop.permute.xlu0 %786
          %v789 = vadd.f32 %v776, %v787
          %791 = vrot.lane.b32.xlu0 %v789, 64
          %v792 = vpop.permute.xlu0 %791
          %v794 = vsel %vm677, %v771, 0
          %v796 = vsel %vm677, %v792, 0
          %798 = vmatpush.xpose.msra.mxu0 0.0
          %799 = vmatpush.xpose.msra.mxu0 0.0
          %800 = vmatpush.xpose.msra.mxu0 0.0
          %801 = vmatpush.xpose.msra.mxu0 0.0
          %802 = vmatpush.xpose.msra.mxu0 0.0
          %803 = vmatpush.xpose.msra.mxu0 0.0
          %804 = vmatpush.xpose.msra.mxu0 0.0
          %805 = vmatpush.xpose.msra.mxu0 0.0
          %806 = vmatpush.xpose.msra.mxu0 0.0
          %807 = vmatpush.xpose.msra.mxu0 0.0
          %808 = vmatpush.xpose.msra.mxu0 0.0
          %809 = vmatpush.xpose.msra.mxu0 0.0
          %810 = vmatpush.xpose.msra.mxu0 0.0
          %811 = vmatpush.xpose.msra.mxu0 0.0
          %812 = vmatpush.xpose.msra.mxu0 0.0
          %813 = vmatpush.xpose.msra.mxu0 %v796
          %814 = vmatmul.f32.gmra.mxu0 %v794
          %v815 = vpop.f32.mrf.mxu0
          %v816 = vadd.f32 0.0, %v815
          %817 = vdwg.mxu0
          %v818 = vsel %vm759, %v816, -1e+30
          %vm819 = vcmask 64512
          %v820 = vsel %vm819, %v818, -inf
          %821 = vmax.xlane.f32.xlu0 %v820
          %v822 = vpop.xlane.xlu0 %821
          %v823 = vsub.f32 %v818, %v822
          %v824 = vmul.f32 %v823, 1.442695
          %v825 = vpow.pop %v824
          %v826 = vsel %vm819, %v825, 0.0
          %827 = vadd.xlane.f32.xlu0 %v826
          %v828 = vpop.xlane.xlu0 %827
          %v829 = vrcp.pop %v828
          %v830 = vmul.f32 %v825, %v829
          %v832 = vsel %vm819, %v830, 0
          %834 = vmatpush.msra.mxu0 0.0
          %835 = vmatpush.msra.mxu0 0.0
          %836 = vmatpush.msra.mxu0 0.0
          %837 = vmatpush.msra.mxu0 0.0
          %838 = vmatpush.msra.mxu0 0.0
          %839 = vmatpush.msra.mxu0 0.0
          %840 = vmatpush.msra.mxu0 0.0
          %841 = vmatpush.msra.mxu0 0.0
          %842 = vmatpush.msra.mxu0 0.0
          %843 = vmatpush.msra.mxu0 0.0
          %844 = vmatpush.msra.mxu0 0.0
          %845 = vmatpush.msra.mxu0 0.0
          %846 = vmatpush.msra.mxu0 0.0
          %847 = vmatpush.msra.mxu0 0.0
          %848 = vmatpush.msra.mxu0 0.0
          %849 = vmatpush.msra.mxu0 %v753
          %850 = vmatmul.f32.gmra.mxu0 %v832
          %v851 = vpop.f32.mrf.mxu0
          %v852 = vadd.f32 0.0, %v851
          %853 = vdwg.mxu0
          %854 = vrot.lane.b32.xlu0 %v674, 32
          %v855 = vpop.permute.xlu0 %854
          %v857 = vmul.f32 %v733, %v855
          %v858 = vsel %vm768, %v781, %v763
          %v859 = vmul.f32 %v858, %v675
          %861 = vrot.lane.b32.xlu0 %v859, 32
          %v862 = vpop.permute.xlu0 %861
          %v864 = vadd.f32 %v857, %v862
          %865 = vrot.lane.b32.xlu0 %v674, 96
          %v866 = vpop.permute.xlu0 %865
          %v868 = vmul.f32 %v733, %v866
          %v869 = vsel %vm768, %v766, %v778
          %v870 = vmul.f32 %v869, %v675
          %872 = vrot.lane.b32.xlu0 %v870, 96
          %v873 = vpop.permute.xlu0 %872
          %v875 = vadd.f32 %v868, %v873
          %877 = vrot.lane.b32.xlu0 %v864, 96
          %v878 = vpop.permute.xlu0 %877
          %880 = vrot.lane.b32.xlu0 %v875, 32
          %v881 = vpop.permute.xlu0 %880
          %v882 = vsel %vm677, %v878, 0
          %v884 = vsel %vm677, %v881, 0
          %886 = vmatpush.xpose.msra.mxu0 0.0
          %887 = vmatpush.xpose.msra.mxu0 0.0
          %888 = vmatpush.xpose.msra.mxu0 0.0
          %889 = vmatpush.xpose.msra.mxu0 0.0
          %890 = vmatpush.xpose.msra.mxu0 0.0
          %891 = vmatpush.xpose.msra.mxu0 0.0
          %892 = vmatpush.xpose.msra.mxu0 0.0
          %893 = vmatpush.xpose.msra.mxu0 0.0
          %894 = vmatpush.xpose.msra.mxu0 0.0
          %895 = vmatpush.xpose.msra.mxu0 0.0
          %896 = vmatpush.xpose.msra.mxu0 0.0
          %897 = vmatpush.xpose.msra.mxu0 0.0
          %898 = vmatpush.xpose.msra.mxu0 0.0
          %899 = vmatpush.xpose.msra.mxu0 0.0
          %900 = vmatpush.xpose.msra.mxu0 0.0
          %901 = vmatpush.xpose.msra.mxu0 %v884
          %902 = vmatmul.f32.gmra.mxu0 %v882
          %v903 = vpop.f32.mrf.mxu0
          %v904 = vadd.f32 0.0, %v903
          %905 = vdwg.mxu0
          %v906 = vsel %vm759, %v904, -1e+30
          %v907 = vsel %vm819, %v906, -inf
          %908 = vmax.xlane.f32.xlu0 %v907
          %v909 = vpop.xlane.xlu0 %908
          %v910 = vsub.f32 %v906, %v909
          %v911 = vmul.f32 %v910, 1.442695
          %v912 = vpow.pop %v911
          %v913 = vsel %vm819, %v912, 0.0
          %914 = vadd.xlane.f32.xlu0 %v913
          %v915 = vpop.xlane.xlu0 %914
          %v916 = vrcp.pop %v915
          %v917 = vmul.f32 %v912, %v916
          %919 = vrot.lane.b32.xlu0 %v753, 96
          %v920 = vpop.permute.xlu0 %919
          %v923 = vsel %vm819, %v917, 0
          %925 = vmatpush.msra.mxu0 0.0
          %926 = vmatpush.msra.mxu0 0.0
          %927 = vmatpush.msra.mxu0 0.0
          %928 = vmatpush.msra.mxu0 0.0
          %929 = vmatpush.msra.mxu0 0.0
          %930 = vmatpush.msra.mxu0 0.0
          %931 = vmatpush.msra.mxu0 0.0
          %932 = vmatpush.msra.mxu0 0.0
          %933 = vmatpush.msra.mxu0 0.0
          %934 = vmatpush.msra.mxu0 0.0
          %935 = vmatpush.msra.mxu0 0.0
          %936 = vmatpush.msra.mxu0 0.0
          %937 = vmatpush.msra.mxu0 0.0
          %938 = vmatpush.msra.mxu0 0.0
          %939 = vmatpush.msra.mxu0 0.0
          %940 = vmatpush.msra.mxu0 %v920
          %941 = vmatmul.f32.gmra.mxu0 %v923
          %v942 = vpop.f32.mrf.mxu0
          %v943 = vadd.f32 0.0, %v942
          %944 = vdwg.mxu0
          %946 = vrot.lane.b32.xlu0 %v943, 32
          %v947 = vpop.permute.xlu0 %946
          %v949 = vsel %vm677, %v852, %v947
          %v950 = vld [vmem:[%s5] sm:$0xff]
          %v951 = vld [vmem:[%s5 + $0x8] sm:$0xff]
          %v952 = vld [vmem:[%s5 + $0x10] sm:$0xff]
          %v953 = vld [vmem:[%s5 + $0x18] sm:$0xff]
          %v954 = vld [vmem:[%s5 + $0x20] sm:$0xff]
          %v955 = vld [vmem:[%s5 + $0x28] sm:$0xff]
          %v956 = vld [vmem:[%s5 + $0x30] sm:$0xff]
          %v957 = vld [vmem:[%s5 + $0x38] sm:$0xff]
          %v958 = vld [vmem:[%s6] sm:$0x1]
          %v960 = vperm.slane %v958, 0
          %vm962 = vcmask 523264
          %v964 = vsel %vm962, %v949, 0
          %966 = vmatpush.msra.mxu0 0.0
          %967 = vmatpush.msra.mxu0 0.0
          %968 = vmatpush.msra.mxu0 0.0
          %969 = vmatpush.msra.mxu0 0.0
          %970 = vmatpush.msra.mxu0 0.0
          %971 = vmatpush.msra.mxu0 0.0
          %972 = vmatpush.msra.mxu0 0.0
          %973 = vmatpush.msra.mxu0 0.0
          %974 = vmatpush.msra.mxu0 %v957
          %975 = vmatpush.msra.mxu0 %v956
          %976 = vmatpush.msra.mxu0 %v955
          %977 = vmatpush.msra.mxu0 %v954
          %978 = vmatpush.msra.mxu0 %v953
          %979 = vmatpush.msra.mxu0 %v952
          %980 = vmatpush.msra.mxu0 %v951
          %981 = vmatpush.msra.mxu0 %v950
          %982 = vmatmul.f32.gmra.mxu0 %v964
          %v983 = vpop.f32.mrf.mxu0
          %v984 = vadd.f32 %v960, %v983
          %985 = vdwg.mxu0
          %v986 = vadd.f32 %v703, %v984
          %v987 = vmul.f32 %v986, %v986
          %v988 = vsel %vm677, %v987, 0.0
          %989 = vadd.xlane.f32.xlu0 %v988
          %v990 = vpop.xlane.xlu0 %989
          %v991 = vrot.slane %v990, 4
          %v992 = vadd.f32 %v990, %v991
          %v993 = vrot.slane %v992, 2
          %v994 = vadd.f32 %v992, %v993
          %v995 = vrot.slane %v994, 1
          %v996 = vadd.f32 %v994, %v995
          %s997 = vtos %v996
          %s998 = smul.f32 %s997, 0.00390625
          %v999 = vstv %s998
          %v1000 = vrsqrt.pop %v999
          %v1001 = vmul.f32 %v1000, %v999
          %v1002 = vmul.f32 %v1001, %v1000
          %v1003 = vmul.f32 0.5, %v1002
          %v1004 = vsub.f32 1.5, %v1003
          %v1005 = vmul.f32 %v1000, %v1004
          %vm1006 = vweird.f32 %v999
          %vm1007 = vweird.f32 %v1000
          %vm1008 = vmor %vm1006, %vm1007
          %v1009 = vsel %vm1008, %v1000, %v1005
          %s1010 = vtos %v1009
          %v1011 = vstv %s1010
          %v1012 = vmul.f32 %v986, %v1011
          %v1013 = vmul.f32 %v673, %v1012
          %v1014 = vld [vmem:[%s7] sm:$0xff]
          %v1015 = vld [vmem:[%s7 + $0x8] sm:$0xff]
          %v1016 = vld [vmem:[%s7 + $0x10] sm:$0xff]
          %v1017 = vld [vmem:[%s7 + $0x18] sm:$0xff]
          %v1018 = vld [vmem:[%s8] sm:$0x1]
          %v1020 = vperm.slane %v1018, 0
          %v1023 = vsel %vm677, %v1013, 0
          %1025 = vmatpush.msra.mxu0 0.0
          %1026 = vmatpush.msra.mxu0 0.0
          %1027 = vmatpush.msra.mxu0 0.0
          %1028 = vmatpush.msra.mxu0 0.0
          %1029 = vmatpush.msra.mxu0 0.0
          %1030 = vmatpush.msra.mxu0 0.0
          %1031 = vmatpush.msra.mxu0 0.0
          %1032 = vmatpush.msra.mxu0 0.0
          %1033 = vmatpush.msra.mxu0 0.0
          %1034 = vmatpush.msra.mxu0 0.0
          %1035 = vmatpush.msra.mxu0 0.0
          %1036 = vmatpush.msra.mxu0 0.0
          %1037 = vmatpush.msra.mxu0 %v1017
          %1038 = vmatpush.msra.mxu0 %v1016
          %1039 = vmatpush.msra.mxu0 %v1015
          %1040 = vmatpush.msra.mxu0 %v1014
          %1041 = vmatmul.f32.gmra.mxu0 %v1023
          %v1042 = vpop.f32.mrf.mxu0
          %v1043 = vadd.f32 %v1020, %v1042
          %1044 = vdwg.mxu0
          %v1045 = vld [vmem:[#allocation12] sm:$0xff]
          %v1046 = vld [vmem:[#allocation12 + $0x8] sm:$0xff]
          %v1047 = vld [vmem:[#allocation12 + $0x10] sm:$0xff]
          %v1048 = vld [vmem:[#allocation12 + $0x18] sm:$0xff]
          %v1049 = vld [vmem:[%s10] sm:$0x1]
          %v1051 = vperm.slane %v1049, 0
          %v1054 = vsel %vm677, %v1043, 0
          %1056 = vmatpush.msra.mxu0 0.0
          %1057 = vmatpush.msra.mxu0 0.0
          %1058 = vmatpush.msra.mxu0 0.0
          %1059 = vmatpush.msra.mxu0 0.0
          %1060 = vmatpush.msra.mxu0 0.0
          %1061 = vmatpush.msra.mxu0 0.0
          %1062 = vmatpush.msra.mxu0 0.0
          %1063 = vmatpush.msra.mxu0 0.0
          %1064 = vmatpush.msra.mxu0 0.0
          %1065 = vmatpush.msra.mxu0 0.0
          %1066 = vmatpush.msra.mxu0 0.0
          %1067 = vmatpush.msra.mxu0 0.0
          %1068 = vmatpush.msra.mxu0 %v1048
          %1069 = vmatpush.msra.mxu0 %v1047
          %1070 = vmatpush.msra.mxu0 %v1046
          %1071 = vmatpush.msra.mxu0 %v1045
          %1072 = vmatmul.f32.gmra.mxu0 %v1054
          %v1073 = vpop.f32.mrf.mxu0
          %v1074 = vadd.f32 %v1051, %v1073
          %1075 = vdwg.mxu0
          %v1076 = vld [vmem:[#allocation13] sm:$0xff]
          %v1077 = vld [vmem:[#allocation13 + $0x8] sm:$0xff]
          %v1078 = vld [vmem:[#allocation13 + $0x10] sm:$0xff]
          %v1079 = vld [vmem:[#allocation13 + $0x18] sm:$0xff]
          %v1080 = vld [vmem:[%s12] sm:$0x1]
          %v1082 = vperm.slane %v1080, 0
          %1084 = vmatpush.msra.mxu0 0.0
          %1085 = vmatpush.msra.mxu0 0.0
          %1086 = vmatpush.msra.mxu0 0.0
          %1087 = vmatpush.msra.mxu0 0.0
          %1088 = vmatpush.msra.mxu0 0.0
          %1089 = vmatpush.msra.mxu0 0.0
          %1090 = vmatpush.msra.mxu0 0.0
          %1091 = vmatpush.msra.mxu0 0.0
          %1092 = vmatpush.msra.mxu0 0.0
          %1093 = vmatpush.msra.mxu0 0.0
          %1094 = vmatpush.msra.mxu0 0.0
          %1095 = vmatpush.msra.mxu0 0.0
          %1096 = vmatpush.msra.mxu0 %v1079
          %1097 = vmatpush.msra.mxu0 %v1078
          %1098 = vmatpush.msra.mxu0 %v1077
          %1099 = vmatpush.msra.mxu0 %v1076
          %1100 = vmatmul.f32.gmra.mxu0 %v1054
          %v1101 = vpop.f32.mrf.mxu0
          %v1102 = vadd.f32 %v1082, %v1101
          %1103 = vdwg.mxu0
          %s1104 = sld [smem:[#allocation3]]
          %v1105 = vstv %s1104
          %v1106 = vmul.f32 %v1105, %v1074
          %v1107 = vxor.u32 %v1106, 2147483648
          %v1108 = vmul.f32 %v1107, 1.442695
          %v1109 = vpow.pop %v1108
          %v1110 = vadd.f32 %v1109, 1.0
          %v1111 = vrcp.pop %v1110
          %v1112 = vmul.f32 %v1110, %v1111
          %v1113 = vsub.f32 1.0, %v1112
          %v1114 = vmul.f32 %v1111, %v1113
          %v1115 = vadd.f32 %v1111, %v1114
          %vm1116 = vweird.f32 %v1110
          %vm1117 = vweird.f32 %v1111
          %vm1118 = vmor %vm1116, %vm1117
          %v1119 = vsel %vm1118, %v1111, %v1115
          %v1120 = vand.u32 2147483647, %v1110
          %vm1121 = vcmp.eq.f32.partialorder %v1120, 8.507059e+37
          %v1122 = vand.u32 %v1110, 2147483648
          %v1123 = vor.u32 1.1754944e-38, %v1122
          %v1124 = vsel %vm1121, %v1123, %v1119
          %v1125 = vmul.f32 1.0, %v1124
          %v1126 = vmul.f32 %v1074, %v1125
          %v1127 = vmul.f32 %v1126, %v1102
          %v1128 = vadd.f32 %v1013, %v1127
          %s1129 = smul.u32 %s42, 8
          %s1130 = scalar_lea.vmem [#allocation2], %s1129
          %1131 = vst.msk [vmem:[%s1130] sm:$0xff] %vm677, %v1128
        $region116: #{tpu_custom_call.1} parent=83 // pred_fallthru
          _
        %s1132 = smul.u32 %s42, 8
        %s1133 = scalar_lea.vmem [#allocation2], %s1132
        %v1134 = vld [vmem:[%s1133] sm:$0xff]
        %v1135 = vld [vmem:[#allocation15] sm:$0xff]
        %v1136 = vld [vmem:[#allocation15 + $0x8] sm:$0xff]
        %v1137 = vld [vmem:[#allocation15 + $0x10] sm:$0xff]
        %v1138 = vld [vmem:[#allocation15 + $0x18] sm:$0xff]
        %v1139 = vld [vmem:[%s667] sm:$0x1]
        %v1141 = vperm.slane %v1139, 0
        %vm1143 = vcmask 261120
        %v1145 = vsel %vm1143, %v1134, 0
        %1147 = vmatpush.msra.mxu0 0.0
        %1148 = vmatpush.msra.mxu0 0.0
        %1149 = vmatpush.msra.mxu0 0.0
        %1150 = vmatpush.msra.mxu0 0.0
        %1151 = vmatpush.msra.mxu0 0.0
        %1152 = vmatpush.msra.mxu0 0.0
        %1153 = vmatpush.msra.mxu0 0.0
        %1154 = vmatpush.msra.mxu0 0.0
        %1155 = vmatpush.msra.mxu0 0.0
        %1156 = vmatpush.msra.mxu0 0.0
        %1157 = vmatpush.msra.mxu0 0.0
        %1158 = vmatpush.msra.mxu0 0.0
        %1159 = vmatpush.msra.mxu0 %v1138
        %1160 = vmatpush.msra.mxu0 %v1137
        %1161 = vmatpush.msra.mxu0 %v1136
        %1162 = vmatpush.msra.mxu0 %v1135
        %1163 = vmatmul.f32.gmra.mxu0 %v1145
        %v1164 = vpop.f32.mrf.mxu0
        %v1165 = vadd.f32 %v1141, %v1164
        %1166 = vdwg.mxu0
        %1167 = vst [vmem:[%s664] sm:$0xff] %v1165
        %s1168 = sand.u32 %s410, 1
        %s1169 = scalar_lea.sflag [#allocation6], %s1168
        %s1170 = sand.u32 %s410, 1
        %s1171 = smul.addr %s1170, 8
        %s1172 = scalar_lea.vmem [#allocation16], %s1171
        // Predicated region
        $region117: #{tpu_custom_call.1} parent=83 // pred_check
          %p1173 = pneg %p420
        $region118: #{tpu_custom_call.1} parent=83 // pred_check_branch
          %1175 = sbr.rel (%p1173) target = $region120
        $region119: #{tpu_custom_call.1} parent=83 // pred_region
          %1177 = vsyncadd %s1169, 0
          %s1178 = sadd.s32 %s41, %s42
          %s1179 = smul.addr %s1178, 8
          %s1180 = scalar_lea.hbm %s16, %s1179
          %s1182 = sshll.u32 %s1172, 4
          %s1183 = int_to_ptr.vmem [resolvable:$true] %s1182
          %s1184 = sshll.u32 %s1180, 4
          %s1185 = int_to_ptr.hbm [resolvable:$true] %s1184
          %1187 = dma.vmem_to_hbm [thread:$0]  %s1183, 128, %s1185, %s1169
        $region120: #{tpu_custom_call.1} parent=83 // pred_fallthru
          _
      $region84: #{tpu_custom_call.1} parent=5 // pred_fallthru
        _
      %p1188 = scmp.le.s32.totalorder 2, %s32
      // Predicated region
      $region121: #{tpu_custom_call.1} parent=5 // pred_check
        %p1189 = pneg %p1188
      $region122: #{tpu_custom_call.1} parent=5 // pred_check_branch
        %1191 = sbr.rel (%p1189) target = $region124
      $region123: #{tpu_custom_call.1} parent=5 // pred_region
        %s1192 = ssub.s32 %s32, 2
        // Predicated region
        $region125: #{tpu_custom_call.1} parent=123 // pred_check
          %p1193 = pneg %p426
        $region126: #{tpu_custom_call.1} parent=123 // pred_check_branch
          %1195 = sbr.rel (%p1193) target = $region128
        $region127: #{tpu_custom_call.1} parent=123 // pred_region
          %s1196 = sand.u32 %s411, 1
          %s1197 = scalar_lea.sflag [#allocation6], %s1196
          %s1198 = sand.u32 %s411, 1
          %s1199 = smul.addr %s1198, 8
          %s1200 = scalar_lea.vmem [#allocation16], %s1199
          %1202 = dma.done %s1197, 128
        $region128: #{tpu_custom_call.1} parent=123 // pred_fallthru
          _
      $region124: #{tpu_custom_call.1} parent=5 // pred_fallthru
        _
    $region6: #{tpu_custom_call.1} parent=1 // loop_footer
      %s36 = sadd.s32 1, %s32
    $region7: #{tpu_custom_call.1} parent=1 // loop_footer_branch
      %31 = sbr.rel target = $region3
    $region8: #{tpu_custom_call.1} parent=1 // loop_exit
      _
    %1203 = vsyncpa [#allocation5], 1
    %s1204 = scalar_lea.sflag [#allocation5], 1
    %1205 = vsyncpa %s1204, 1
    %1206 = vsyncpa [#allocation8], 1
    %1207 = vsyncpa [#allocation11], 1
    %1208 = vsyncpa [#allocation14], 1
    %1209 = vsyncpa [#allocation6], 1
    %s1210 = scalar_lea.sflag [#allocation6], 1
    %1211 = vsyncpa %s1210, 1

// kernel: tpu_custom_call.1
$region0: #{tpu_custom_call.1}
  #allocation0 [shape = 'u32[]', space=smem, size = 0x4, offset = 0x4, fixed_abs, tag = 'smem constant byte address 0x4 - core index']
  #allocation1 [shape = 'u32[72,128]{1,0:T(1,128)}', space=vmem, size = 0x9000, scoped, tag = 'internal scratch']
  #allocation2 [shape = 'f32[2,8,32]{2,1,0:T(8,128)}', space=vmem, size = 0x2000, scoped, tag = 'scratch operand']
  #allocation3 [shape = 'f32[1]{0:T(128)S(6)}', space=smem, size = 0x200, scoped, tag = 'scoped memory for tpu_custom_call.1']
  %s0 = inlined_call_operand.hbm [shape: f32[2,8,32], index: 0, kind: input, shape index: {}]
  %s1 = inlined_call_operand.hbm [shape: f32[8,32], index: 1, kind: input, shape index: {}]
  %s2 = inlined_call_operand.hbm [shape: f32[8,32], index: 2, kind: input, shape index: {}]
  %s3 = inlined_call_operand.hbm [shape: f32[8,32], index: 3, kind: input, shape index: {}]
  %s4 = inlined_call_operand.vmem [shape: f32[32,192], index: 4, kind: input, shape index: {}]
  %s5 = inlined_call_operand.vmem [shape: f32[64,32], index: 5, kind: input, shape index: {}]
  %s6 = inlined_call_operand.vmem [shape: f32[1,32], index: 6, kind: input, shape index: {}]
  %s7 = inlined_call_operand.vmem [shape: f32[32,32], index: 7, kind: input, shape index: {}]
  %s8 = inlined_call_operand.vmem [shape: f32[1,32], index: 8, kind: input, shape index: {}]
  %s9 = inlined_call_operand.hbm [shape: f32[32,32], index: 9, kind: input, shape index: {}]
  %s10 = inlined_call_operand.vmem [shape: f32[1,32], index: 10, kind: input, shape index: {}]
  %s11 = inlined_call_operand.hbm [shape: f32[32,32], index: 11, kind: input, shape index: {}]
  %s12 = inlined_call_operand.vmem [shape: f32[1,32], index: 12, kind: input, shape index: {}]
  %s13 = inlined_call_operand.<no memory space> [shape: f32[1], index: 13, kind: input, shape index: {}]
  %s14 = inlined_call_operand.hbm [shape: f32[32,128], index: 14, kind: input, shape index: {}]
  %s15 = inlined_call_operand.vmem [shape: f32[1,128], index: 15, kind: input, shape index: {}]
  %s16 = inlined_call_operand.hbm [shape: f32[2,8,128], index: 16, kind: output, shape index: {}]
  %s17 = sld [smem:[#allocation0]]
  $region129: #{tpu_custom_call.1} parent=0
    _
  %s19 = ssub.s32 1, %s17
  %s20 = scalar_select 0, %s19, %s17
  %21 = sst [smem:[#allocation3]] %s13
  $region1: #{tpu_custom_call.1} parent=0
    #allocation4 [shape = 'u8[8192]{0}', space=vmem, size = 0x2000, scoped, tag = 'input window, operand 0']
    #allocation5 [shape = 's32[2]{0}', space=sflag, size = 0x8, scoped, tag = 'scoped memory for tpu_custom_call.1']
    #allocation6 [shape = 's32[2]{0}', space=sflag, size = 0x8, scoped, tag = 'scoped memory for tpu_custom_call.1']
    #allocation7 [shape = 'u8[4096]{0}', space=vmem, size = 0x1000, scoped, tag = 'input window, operand 1, single buffered']
    #allocation8 [shape = 's32[1]{0}', space=sflag, size = 0x4, scoped, tag = 'scoped memory for tpu_custom_call.1']
    #allocation9 [shape = 'u8[4096]{0}', space=vmem, size = 0x1000, scoped, tag = 'input window, operand 2, single buffered']
    #allocation10 [shape = 'u8[4096]{0}', space=vmem, size = 0x1000, scoped, tag = 'input window, operand 3, single buffered']
    #allocation11 [shape = 's32[1]{0}', space=sflag, size = 0x4, scoped, tag = 'scoped memory for tpu_custom_call.1']
    #allocation12 [shape = 'u8[16384]{0}', space=vmem, size = 0x4000, scoped, tag = 'input window, operand 9, single buffered']
    #allocation13 [shape = 'u8[16384]{0}', space=vmem, size = 0x4000, scoped, tag = 'input window, operand 11, single buffered']
    #allocation14 [shape = 's32[1]{0}', space=sflag, size = 0x4, scoped, tag = 'scoped memory for tpu_custom_call.1']
    #allocation15 [shape = 'u8[16384]{0}', space=vmem, size = 0x4000, scoped, tag = 'input window, operand 14, single buffered']
    #allocation16 [shape = 'u8[8192]{0}', space=vmem, size = 0x2000, scoped, tag = 'output window, operand 0']
    %22 = vsyncpa [#allocation5], 0
    %s23 = scalar_lea.sflag [#allocation5], 1
    %24 = vsyncpa %s23, 0
    %25 = vsyncpa [#allocation8], 0
    %26 = vsyncpa [#allocation11], 0
    %27 = vsyncpa [#allocation14], 0
    %28 = vsyncpa [#allocation6], 0
    %s29 = scalar_lea.sflag [#allocation6], 1
    %30 = vsyncpa %s29, 0
    loop: start=0, step=1, limit=4
    $region2: #{tpu_custom_call.1} parent=1 // loop_pre_header
      _
    $region3: #{tpu_custom_call.1} parent=1 // loop_header
      %s32 = sphi 0, %s36
      %p33 = scmp.ge.s32.totalorder %s32, 4
      %s39 = sphi 0, %s51
      %s40 = sphi 0, %s47
      %s41 = sphi 0, %s39
      %s42 = sphi 0, %s40
      %s43 = sphi 0, %s41
      %s44 = sphi 0, %s42
      %s54 = sphi 0, %s56
      %s57 = sphi 0, %s54
      %s58 = sphi 0, %s57
      %s74 = sphi 0, %s58
      %s78 = sphi 0, %s78
      %s80 = sphi 0, %s78
      %s81 = sphi 0, %s80
      %s95 = sphi 0, %s81
      %s99 = sphi 0, %s99
      %s101 = sphi 0, %s99
      %s102 = sphi 0, %s101
      %s116 = sphi 0, %s102
      %s120 = sphi 0, %s120
      %s122 = sphi 0, %s120
      %s123 = sphi 0, %s122
      %s137 = sphi 0, %s123
      %s141 = sphi 0, %s141
      %s143 = sphi 0, %s141
      %s144 = sphi 0, %s143
      %s158 = sphi 0, %s144
      %s162 = sphi 0, %s162
      %s164 = sphi 0, %s162
      %s165 = sphi 0, %s164
      %s179 = sphi 0, %s165
      %s183 = sphi 0, %s183
      %s185 = sphi 0, %s183
      %s186 = sphi 0, %s185
      %s200 = sphi 0, %s186
      %s204 = sphi 0, %s204
      %s206 = sphi 0, %s204
      %s207 = sphi 0, %s206
      %s221 = sphi 0, %s207
      %s225 = sphi 0, %s225
      %s227 = sphi 0, %s225
      %s228 = sphi 0, %s227
      %s242 = sphi 0, %s228
      %s246 = sphi 0, %s246
      %s248 = sphi 0, %s246
      %s249 = sphi 0, %s248
      %s263 = sphi 0, %s249
      %s267 = sphi 0, %s267
      %s269 = sphi 0, %s267
      %s270 = sphi 0, %s269
      %s284 = sphi 0, %s270
      %s288 = sphi 0, %s288
      %s290 = sphi 0, %s288
      %s291 = sphi 0, %s290
      %s305 = sphi 0, %s291
      %s309 = sphi 0, %s309
      %s311 = sphi 0, %s309
      %s312 = sphi 0, %s311
      %s326 = sphi 0, %s312
      %s330 = sphi 0, %s330
      %s332 = sphi 0, %s330
      %s333 = sphi 0, %s332
      %s347 = sphi 0, %s333
      %s353 = sphi 0, %s355
      %s356 = sphi 0, %s353
      %s357 = sphi 0, %s356
      %s373 = sphi 0, %s357
      %s379 = sphi 0, %s381
      %s382 = sphi 0, %s379
      %s383 = sphi 0, %s382
      %s399 = sphi 0, %s383
      %s407 = sphi 0, %s409
      %s410 = sphi 0, %s407
      %s411 = sphi 0, %s410
      %s427 = sphi 0, %s411
    $region4: #{tpu_custom_call.1} parent=1 // loop_header_branch
      %35 = sbr.rel (%p33) target = $region8
    $region5: #{tpu_custom_call.1} parent=1 // loop_body
      %s37 = ssub.s32 %s32, 1
      %s38 = ssub.s32 %s32, 2
      %s45 = sadd.s32 1, %s40
      %p46 = scmp.ge.s32.totalorder %s45, 2
      %s47 = scalar_select %p46, 0, %s45
      %s48 = sadd.s32 1, %s39
      %s49 = scalar_select %p46, %s48, %s39
      %p50 = scmp.ge.s32.totalorder %s49, 1
      %s51 = scalar_select %p50, 0, %s49
      %s52 = ssub.s32 %s40, %s47
      %p53 = scmp.eq.s32.totalorder %s52, 0
      %s55 = sadd.s32 %s54, 1
      %s56 = scalar_select %p53, %s54, %s55
      %p59 = pneg %p53
      %p60 = scmp.eq.s32.totalorder %s32, 1
      %p61 = por %p59, %p60
      %p62 = scmp.ne.s32.totalorder %s54, %s57
      %p63 = scmp.eq.s32.totalorder %s32, 0
      %p64 = por %p62, %p63
      %p65 = scmp.ne.s32.totalorder %s54, %s57
      %p66 = scmp.eq.s32.totalorder %s37, 1
      %p67 = por %p65, %p66
      %p68 = scmp.ne.s32.totalorder %s57, %s58
      %p69 = scmp.eq.s32.totalorder %s37, 0
      %p70 = por %p68, %p69
      %p71 = scmp.ne.s32.totalorder %s57, %s58
      %p72 = scmp.eq.s32.totalorder %s38, 1
      %p73 = por %p71, %p72
      %p75 = scmp.ne.s32.totalorder %s58, %s74
      %p76 = scmp.eq.s32.totalorder %s38, 0
      %p77 = por %p75, %p76
      %s79 = sadd.s32 %s78, 1
      %p82 = scmp.eq.s32.totalorder %s32, 1
      %p83 = scmp.ne.s32.totalorder %s78, %s80
      %p84 = scmp.eq.s32.totalorder %s32, 0
      %p85 = por %p83, %p84
      %p86 = scmp.ne.s32.totalorder %s78, %s80
      %p87 = scmp.eq.s32.totalorder %s37, 1
      %p88 = por %p86, %p87
      %p89 = scmp.ne.s32.totalorder %s80, %s81
      %p90 = scmp.eq.s32.totalorder %s37, 0
      %p91 = por %p89, %p90
      %p92 = scmp.ne.s32.totalorder %s80, %s81
      %p93 = scmp.eq.s32.totalorder %s38, 1
      %p94 = por %p92, %p93
      %p96 = scmp.ne.s32.totalorder %s81, %s95
      %p97 = scmp.eq.s32.totalorder %s38, 0
      %p98 = por %p96, %p97
      %s100 = sadd.s32 %s99, 1
      %p103 = scmp.eq.s32.totalorder %s32, 1
      %p104 = scmp.ne.s32.totalorder %s99, %s101
      %p105 = scmp.eq.s32.totalorder %s32, 0
      %p106 = por %p104, %p105
      %p107 = scmp.ne.s32.totalorder %s99, %s101
      %p108 = scmp.eq.s32.totalorder %s37, 1
      %p109 = por %p107, %p108
      %p110 = scmp.ne.s32.totalorder %s101, %s102
      %p111 = scmp.eq.s32.totalorder %s37, 0
      %p112 = por %p110, %p111
      %p113 = scmp.ne.s32.totalorder %s101, %s102
      %p114 = scmp.eq.s32.totalorder %s38, 1
      %p115 = por %p113, %p114
      %p117 = scmp.ne.s32.totalorder %s102, %s116
      %p118 = scmp.eq.s32.totalorder %s38, 0
      %p119 = por %p117, %p118
      %s121 = sadd.s32 %s120, 1
      %p124 = scmp.eq.s32.totalorder %s32, 1
      %p125 = scmp.ne.s32.totalorder %s120, %s122
      %p126 = scmp.eq.s32.totalorder %s32, 0
      %p127 = por %p125, %p126
      %p128 = scmp.ne.s32.totalorder %s120, %s122
      %p129 = scmp.eq.s32.totalorder %s37, 1
      %p130 = por %p128, %p129
      %p131 = scmp.ne.s32.totalorder %s122, %s123
      %p132 = scmp.eq.s32.totalorder %s37, 0
      %p133 = por %p131, %p132
      %p134 = scmp.ne.s32.totalorder %s122, %s123
      %p135 = scmp.eq.s32.totalorder %s38, 1
      %p136 = por %p134, %p135
      %p138 = scmp.ne.s32.totalorder %s123, %s137
      %p139 = scmp.eq.s32.totalorder %s38, 0
      %p140 = por %p138, %p139
      %s142 = sadd.s32 %s141, 1
      %p145 = scmp.eq.s32.totalorder %s32, 1
      %p146 = scmp.ne.s32.totalorder %s141, %s143
      %p147 = scmp.eq.s32.totalorder %s32, 0
      %p148 = por %p146, %p147
      %p149 = scmp.ne.s32.totalorder %s141, %s143
      %p150 = scmp.eq.s32.totalorder %s37, 1
      %p151 = por %p149, %p150
      %p152 = scmp.ne.s32.totalorder %s143, %s144
      %p153 = scmp.eq.s32.totalorder %s37, 0
      %p154 = por %p152, %p153
      %p155 = scmp.ne.s32.totalorder %s143, %s144
      %p156 = scmp.eq.s32.totalorder %s38, 1
      %p157 = por %p155, %p156
      %p159 = scmp.ne.s32.totalorder %s144, %s158
      %p160 = scmp.eq.s32.totalorder %s38, 0
      %p161 = por %p159, %p160
      %s163 = sadd.s32 %s162, 1
      %p166 = scmp.eq.s32.totalorder %s32, 1
      %p167 = scmp.ne.s32.totalorder %s162, %s164
      %p168 = scmp.eq.s32.totalorder %s32, 0
      %p169 = por %p167, %p168
      %p170 = scmp.ne.s32.totalorder %s162, %s164
      %p171 = scmp.eq.s32.totalorder %s37, 1
      %p172 = por %p170, %p171
      %p173 = scmp.ne.s32.totalorder %s164, %s165
      %p174 = scmp.eq.s32.totalorder %s37, 0
      %p175 = por %p173, %p174
      %p176 = scmp.ne.s32.totalorder %s164, %s165
      %p177 = scmp.eq.s32.totalorder %s38, 1
      %p178 = por %p176, %p177
      %p180 = scmp.ne.s32.totalorder %s165, %s179
      %p181 = scmp.eq.s32.totalorder %s38, 0
      %p182 = por %p180, %p181
      %s184 = sadd.s32 %s183, 1
      %p187 = scmp.eq.s32.totalorder %s32, 1
      %p188 = scmp.ne.s32.totalorder %s183, %s185
      %p189 = scmp.eq.s32.totalorder %s32, 0
      %p190 = por %p188, %p189
      %p191 = scmp.ne.s32.totalorder %s183, %s185
      %p192 = scmp.eq.s32.totalorder %s37, 1
      %p193 = por %p191, %p192
      %p194 = scmp.ne.s32.totalorder %s185, %s186
      %p195 = scmp.eq.s32.totalorder %s37, 0
      %p196 = por %p194, %p195
      %p197 = scmp.ne.s32.totalorder %s185, %s186
      %p198 = scmp.eq.s32.totalorder %s38, 1
      %p199 = por %p197, %p198
      %p201 = scmp.ne.s32.totalorder %s186, %s200
      %p202 = scmp.eq.s32.totalorder %s38, 0
      %p203 = por %p201, %p202
      %s205 = sadd.s32 %s204, 1
      %p208 = scmp.eq.s32.totalorder %s32, 1
      %p209 = scmp.ne.s32.totalorder %s204, %s206
      %p210 = scmp.eq.s32.totalorder %s32, 0
      %p211 = por %p209, %p210
      %p212 = scmp.ne.s32.totalorder %s204, %s206
      %p213 = scmp.eq.s32.totalorder %s37, 1
      %p214 = por %p212, %p213
      %p215 = scmp.ne.s32.totalorder %s206, %s207
      %p216 = scmp.eq.s32.totalorder %s37, 0
      %p217 = por %p215, %p216
      %p218 = scmp.ne.s32.totalorder %s206, %s207
      %p219 = scmp.eq.s32.totalorder %s38, 1
      %p220 = por %p218, %p219
      %p222 = scmp.ne.s32.totalorder %s207, %s221
      %p223 = scmp.eq.s32.totalorder %s38, 0
      %p224 = por %p222, %p223
      %s226 = sadd.s32 %s225, 1
      %p229 = scmp.eq.s32.totalorder %s32, 1
      %p230 = scmp.ne.s32.totalorder %s225, %s227
      %p231 = scmp.eq.s32.totalorder %s32, 0
      %p232 = por %p230, %p231
      %p233 = scmp.ne.s32.totalorder %s225, %s227
      %p234 = scmp.eq.s32.totalorder %s37, 1
      %p235 = por %p233, %p234
      %p236 = scmp.ne.s32.totalorder %s227, %s228
      %p237 = scmp.eq.s32.totalorder %s37, 0
      %p238 = por %p236, %p237
      %p239 = scmp.ne.s32.totalorder %s227, %s228
      %p240 = scmp.eq.s32.totalorder %s38, 1
      %p241 = por %p239, %p240
      %p243 = scmp.ne.s32.totalorder %s228, %s242
      %p244 = scmp.eq.s32.totalorder %s38, 0
      %p245 = por %p243, %p244
      %s247 = sadd.s32 %s246, 1
      %p250 = scmp.eq.s32.totalorder %s32, 1
      %p251 = scmp.ne.s32.totalorder %s246, %s248
      %p252 = scmp.eq.s32.totalorder %s32, 0
      %p253 = por %p251, %p252
      %p254 = scmp.ne.s32.totalorder %s246, %s248
      %p255 = scmp.eq.s32.totalorder %s37, 1
      %p256 = por %p254, %p255
      %p257 = scmp.ne.s32.totalorder %s248, %s249
      %p258 = scmp.eq.s32.totalorder %s37, 0
      %p259 = por %p257, %p258
      %p260 = scmp.ne.s32.totalorder %s248, %s249
      %p261 = scmp.eq.s32.totalorder %s38, 1
      %p262 = por %p260, %p261
      %p264 = scmp.ne.s32.totalorder %s249, %s263
      %p265 = scmp.eq.s32.totalorder %s38, 0
      %p266 = por %p264, %p265
      %s268 = sadd.s32 %s267, 1
      %p271 = scmp.eq.s32.totalorder %s32, 1
      %p272 = scmp.ne.s32.totalorder %s267, %s269
      %p273 = scmp.eq.s32.totalorder %s32, 0
      %p274 = por %p272, %p273
      %p275 = scmp.ne.s32.totalorder %s267, %s269
      %p276 = scmp.eq.s32.totalorder %s37, 1
      %p277 = por %p275, %p276
      %p278 = scmp.ne.s32.totalorder %s269, %s270
      %p279 = scmp.eq.s32.totalorder %s37, 0
      %p280 = por %p278, %p279
      %p281 = scmp.ne.s32.totalorder %s269, %s270
      %p282 = scmp.eq.s32.totalorder %s38, 1
      %p283 = por %p281, %p282
      %p285 = scmp.ne.s32.totalorder %s270, %s284
      %p286 = scmp.eq.s32.totalorder %s38, 0
      %p287 = por %p285, %p286
      %s289 = sadd.s32 %s288, 1
      %p292 = scmp.eq.s32.totalorder %s32, 1
      %p293 = scmp.ne.s32.totalorder %s288, %s290
      %p294 = scmp.eq.s32.totalorder %s32, 0
      %p295 = por %p293, %p294
      %p296 = scmp.ne.s32.totalorder %s288, %s290
      %p297 = scmp.eq.s32.totalorder %s37, 1
      %p298 = por %p296, %p297
      %p299 = scmp.ne.s32.totalorder %s290, %s291
      %p300 = scmp.eq.s32.totalorder %s37, 0
      %p301 = por %p299, %p300
      %p302 = scmp.ne.s32.totalorder %s290, %s291
      %p303 = scmp.eq.s32.totalorder %s38, 1
      %p304 = por %p302, %p303
      %p306 = scmp.ne.s32.totalorder %s291, %s305
      %p307 = scmp.eq.s32.totalorder %s38, 0
      %p308 = por %p306, %p307
      %s310 = sadd.s32 %s309, 1
      %p313 = scmp.eq.s32.totalorder %s32, 1
      %p314 = scmp.ne.s32.totalorder %s309, %s311
      %p315 = scmp.eq.s32.totalorder %s32, 0
      %p316 = por %p314, %p315
      %p317 = scmp.ne.s32.totalorder %s309, %s311
      %p318 = scmp.eq.s32.totalorder %s37, 1
      %p319 = por %p317, %p318
      %p320 = scmp.ne.s32.totalorder %s311, %s312
      %p321 = scmp.eq.s32.totalorder %s37, 0
      %p322 = por %p320, %p321
      %p323 = scmp.ne.s32.totalorder %s311, %s312
      %p324 = scmp.eq.s32.totalorder %s38, 1
      %p325 = por %p323, %p324
      %p327 = scmp.ne.s32.totalorder %s312, %s326
      %p328 = scmp.eq.s32.totalorder %s38, 0
      %p329 = por %p327, %p328
      %s331 = sadd.s32 %s330, 1
      %p334 = scmp.eq.s32.totalorder %s32, 1
      %p335 = scmp.ne.s32.totalorder %s330, %s332
      %p336 = scmp.eq.s32.totalorder %s32, 0
      %p337 = por %p335, %p336
      %p338 = scmp.ne.s32.totalorder %s330, %s332
      %p339 = scmp.eq.s32.totalorder %s37, 1
      %p340 = por %p338, %p339
      %p341 = scmp.ne.s32.totalorder %s332, %s333
      %p342 = scmp.eq.s32.totalorder %s37, 0
      %p343 = por %p341, %p342
      %p344 = scmp.ne.s32.totalorder %s332, %s333
      %p345 = scmp.eq.s32.totalorder %s38, 1
      %p346 = por %p344, %p345
      %p348 = scmp.ne.s32.totalorder %s333, %s347
      %p349 = scmp.eq.s32.totalorder %s38, 0
      %p350 = por %p348, %p349
      %s351 = ssub.s32 %s39, %s51
      %p352 = scmp.eq.s32.totalorder %s351, 0
      %s354 = sadd.s32 %s353, 1
      %s355 = scalar_select %p352, %s353, %s354
      %p358 = pneg %p352
      %p359 = scmp.eq.s32.totalorder %s32, 1
      %p360 = por %p358, %p359
      %p361 = scmp.ne.s32.totalorder %s353, %s356
      %p362 = scmp.eq.s32.totalorder %s32, 0
      %p363 = por %p361, %p362
      %p364 = scmp.ne.s32.totalorder %s353, %s356
      %p365 = scmp.eq.s32.totalorder %s37, 1
      %p366 = por %p364, %p365
      %p367 = scmp.ne.s32.totalorder %s356, %s357
      %p368 = scmp.eq.s32.totalorder %s37, 0
      %p369 = por %p367, %p368
      %p370 = scmp.ne.s32.totalorder %s356, %s357
      %p371 = scmp.eq.s32.totalorder %s38, 1
      %p372 = por %p370, %p371
      %p374 = scmp.ne.s32.totalorder %s357, %s373
      %p375 = scmp.eq.s32.totalorder %s38, 0
      %p376 = por %p374, %p375
      %s377 = ssub.s32 %s39, %s51
      %p378 = scmp.eq.s32.totalorder %s377, 0
      %s380 = sadd.s32 %s379, 1
      %s381 = scalar_select %p378, %s379, %s380
      %p384 = pneg %p378
      %p385 = scmp.eq.s32.totalorder %s32, 1
      %p386 = por %p384, %p385
      %p387 = scmp.ne.s32.totalorder %s379, %s382
      %p388 = scmp.eq.s32.totalorder %s32, 0
      %p389 = por %p387, %p388
      %p390 = scmp.ne.s32.totalorder %s379, %s382
      %p391 = scmp.eq.s32.totalorder %s37, 1
      %p392 = por %p390, %p391
      %p393 = scmp.ne.s32.totalorder %s382, %s383
      %p394 = scmp.eq.s32.totalorder %s37, 0
      %p395 = por %p393, %p394
      %p396 = scmp.ne.s32.totalorder %s382, %s383
      %p397 = scmp.eq.s32.totalorder %s38, 1
      %p398 = por %p396, %p397
      %p400 = scmp.ne.s32.totalorder %s383, %s399
      %p401 = scmp.eq.s32.totalorder %s38, 0
      %p402 = por %p400, %p401
      %s403 = ssub.s32 %s40, %s47
      %s404 = ssub.s32 %s39, %s51
      %s405 = sor.u32 %s403, %s404
      %p406 = scmp.eq.s32.totalorder %s405, 0
      %s408 = sadd.s32 %s407, 1
      %s409 = scalar_select %p406, %s407, %s408
      %p412 = pneg %p406
      %p413 = scmp.eq.s32.totalorder %s32, 1
      %p414 = por %p412, %p413
      %p415 = scmp.ne.s32.totalorder %s407, %s410
      %p416 = scmp.eq.s32.totalorder %s32, 0
      %p417 = por %p415, %p416
      %p418 = scmp.ne.s32.totalorder %s407, %s410
      %p419 = scmp.eq.s32.totalorder %s37, 1
      %p420 = por %p418, %p419
      %p421 = scmp.ne.s32.totalorder %s410, %s411
      %p422 = scmp.eq.s32.totalorder %s37, 0
      %p423 = por %p421, %p422
      %p424 = scmp.ne.s32.totalorder %s410, %s411
      %p425 = scmp.eq.s32.totalorder %s38, 1
      %p426 = por %p424, %p425
      %p428 = scmp.ne.s32.totalorder %s411, %s427
      %p429 = scmp.eq.s32.totalorder %s38, 0
      %p430 = por %p428, %p429
      %p431 = scmp.le.s32.totalorder 1, %s32
      %p432 = scmp.lt.s32.totalorder %s32, 3
      %p433 = pnand %p431, %p432
      %p434 = pneg %p433
      // Predicated region
      $region9: #{tpu_custom_call.1} parent=5 // pred_check
        _
      $region10: #{tpu_custom_call.1} parent=5 // pred_check_branch
        %436 = sbr.rel (%p433) target = $region12
      $region11: #{tpu_custom_call.1} parent=5 // pred_region
        %s437 = ssub.s32 %s32, 1
        // Predicated region
        $region13: #{tpu_custom_call.1} parent=11 // pred_check
          %p438 = pneg %p91
        $region14: #{tpu_custom_call.1} parent=11 // pred_check_branch
          %440 = sbr.rel (%p438) target = $region16
        $region15: #{tpu_custom_call.1} parent=11 // pred_region
          %442 = vsyncadd [#allocation8], 0
          %s444 = sshll.u32 %s1, 4
          %s445 = int_to_ptr.hbm [resolvable:$true] %s444
          %s446 = sshll.u32 [#allocation7], 4
          %s447 = int_to_ptr.vmem [resolvable:$true] %s446
          %449 = dma.hbm_to_vmem [thread:$0]  %s445, 128, %s447, [#allocation8]
        $region16: #{tpu_custom_call.1} parent=11 // pred_fallthru
          _
        // Predicated region
        $region17: #{tpu_custom_call.1} parent=11 // pred_check
          %p450 = pneg %p112
        $region18: #{tpu_custom_call.1} parent=11 // pred_check_branch
          %452 = sbr.rel (%p450) target = $region20
        $region19: #{tpu_custom_call.1} parent=11 // pred_region
          %454 = vsyncadd [#allocation8], 0
          %s456 = sshll.u32 %s2, 4
          %s457 = int_to_ptr.hbm [resolvable:$true] %s456
          %s458 = sshll.u32 [#allocation9], 4
          %s459 = int_to_ptr.vmem [resolvable:$true] %s458
          %461 = dma.hbm_to_vmem [thread:$0]  %s457, 128, %s459, [#allocation8]
        $region20: #{tpu_custom_call.1} parent=11 // pred_fallthru
          _
        // Predicated region
        $region21: #{tpu_custom_call.1} parent=11 // pred_check
          %p462 = pneg %p133
        $region22: #{tpu_custom_call.1} parent=11 // pred_check_branch
          %464 = sbr.rel (%p462) target = $region24
        $region23: #{tpu_custom_call.1} parent=11 // pred_region
          %466 = vsyncadd [#allocation11], 0
          %s468 = sshll.u32 %s3, 4
          %s469 = int_to_ptr.hbm [resolvable:$true] %s468
          %s470 = sshll.u32 [#allocation10], 4
          %s471 = int_to_ptr.vmem [resolvable:$true] %s470
          %473 = dma.hbm_to_vmem [thread:$0]  %s469, 128, %s471, [#allocation11]
        $region24: #{tpu_custom_call.1} parent=11 // pred_fallthru
          _
        // Predicated region
        $region25: #{tpu_custom_call.1} parent=11 // pred_check
          %p474 = pneg %p154
        $region26: #{tpu_custom_call.1} parent=11 // pred_check_branch
          %476 = sbr.rel (%p474) target = $region28
        $region27: #{tpu_custom_call.1} parent=11 // pred_region
          _
        $region28: #{tpu_custom_call.1} parent=11 // pred_fallthru
          _
        // Predicated region
        $region29: #{tpu_custom_call.1} parent=11 // pred_check
          %p477 = pneg %p175
        $region30: #{tpu_custom_call.1} parent=11 // pred_check_branch
          %479 = sbr.rel (%p477) target = $region32
        $region31: #{tpu_custom_call.1} parent=11 // pred_region
          _
        $region32: #{tpu_custom_call.1} parent=11 // pred_fallthru
          _
        // Predicated region
        $region33: #{tpu_custom_call.1} parent=11 // pred_check
          %p480 = pneg %p196
        $region34: #{tpu_custom_call.1} parent=11 // pred_check_branch
          %482 = sbr.rel (%p480) target = $region36
        $region35: #{tpu_custom_call.1} parent=11 // pred_region
          _
        $region36: #{tpu_custom_call.1} parent=11 // pred_fallthru
          _
        // Predicated region
        $region37: #{tpu_custom_call.1} parent=11 // pred_check
          %p483 = pneg %p217
        $region38: #{tpu_custom_call.1} parent=11 // pred_check_branch
          %485 = sbr.rel (%p483) target = $region40
        $region39: #{tpu_custom_call.1} parent=11 // pred_region
          _
        $region40: #{tpu_custom_call.1} parent=11 // pred_fallthru
          _
        // Predicated region
        $region41: #{tpu_custom_call.1} parent=11 // pred_check
          %p486 = pneg %p238
        $region42: #{tpu_custom_call.1} parent=11 // pred_check_branch
          %488 = sbr.rel (%p486) target = $region44
        $region43: #{tpu_custom_call.1} parent=11 // pred_region
          _
        $region44: #{tpu_custom_call.1} parent=11 // pred_fallthru
          _
        // Predicated region
        $region45: #{tpu_custom_call.1} parent=11 // pred_check
          %p489 = pneg %p259
        $region46: #{tpu_custom_call.1} parent=11 // pred_check_branch
          %491 = sbr.rel (%p489) target = $region48
        $region47: #{tpu_custom_call.1} parent=11 // pred_region
          %493 = vsyncadd [#allocation11], 0
          %s494 = sshll.u32 %s9, 4
          %s495 = int_to_ptr.hbm [resolvable:$true] %s494
          %s496 = sshll.u32 [#allocation12], 4
          %s497 = int_to_ptr.vmem [resolvable:$true] %s496
          %502 = dma.hbm_to_vmem [thread:$0]  %s495, 512, %s497, [#allocation11], 128, 128, 8
        $region48: #{tpu_custom_call.1} parent=11 // pred_fallthru
          _
        // Predicated region
        $region49: #{tpu_custom_call.1} parent=11 // pred_check
          %p503 = pneg %p280
        $region50: #{tpu_custom_call.1} parent=11 // pred_check_branch
          %505 = sbr.rel (%p503) target = $region52
        $region51: #{tpu_custom_call.1} parent=11 // pred_region
          _
        $region52: #{tpu_custom_call.1} parent=11 // pred_fallthru
          _
        // Predicated region
        $region53: #{tpu_custom_call.1} parent=11 // pred_check
          %p506 = pneg %p301
        $region54: #{tpu_custom_call.1} parent=11 // pred_check_branch
          %508 = sbr.rel (%p506) target = $region56
        $region55: #{tpu_custom_call.1} parent=11 // pred_region
          %510 = vsyncadd [#allocation14], 0
          %s511 = sshll.u32 %s11, 4
          %s512 = int_to_ptr.hbm [resolvable:$true] %s511
          %s513 = sshll.u32 [#allocation13], 4
          %s514 = int_to_ptr.vmem [resolvable:$true] %s513
          %519 = dma.hbm_to_vmem [thread:$0]  %s512, 512, %s514, [#allocation14], 128, 128, 8
        $region56: #{tpu_custom_call.1} parent=11 // pred_fallthru
          _
        // Predicated region
        $region57: #{tpu_custom_call.1} parent=11 // pred_check
          %p520 = pneg %p322
        $region58: #{tpu_custom_call.1} parent=11 // pred_check_branch
          %522 = sbr.rel (%p520) target = $region60
        $region59: #{tpu_custom_call.1} parent=11 // pred_region
          _
        $region60: #{tpu_custom_call.1} parent=11 // pred_fallthru
          _
        // Predicated region
        $region61: #{tpu_custom_call.1} parent=11 // pred_check
          %p523 = pneg %p343
        $region62: #{tpu_custom_call.1} parent=11 // pred_check_branch
          %525 = sbr.rel (%p523) target = $region64
        $region63: #{tpu_custom_call.1} parent=11 // pred_region
          _
        $region64: #{tpu_custom_call.1} parent=11 // pred_fallthru
          _
        // Predicated region
        $region65: #{tpu_custom_call.1} parent=11 // pred_check
          %p526 = pneg %p369
        $region66: #{tpu_custom_call.1} parent=11 // pred_check_branch
          %528 = sbr.rel (%p526) target = $region68
        $region67: #{tpu_custom_call.1} parent=11 // pred_region
          %530 = vsyncadd [#allocation14], 0
          %s531 = smul.addr %s41, 8
          %s532 = scalar_lea.hbm %s14, %s531
          %s533 = sshll.u32 %s532, 4
          %s534 = int_to_ptr.hbm [resolvable:$true] %s533
          %s535 = sshll.u32 [#allocation15], 4
          %s536 = int_to_ptr.vmem [resolvable:$true] %s535
          %541 = dma.hbm_to_vmem [thread:$0]  %s534, 512, %s536, [#allocation14], 128, 128, 8
        $region68: #{tpu_custom_call.1} parent=11 // pred_fallthru
          _
        // Predicated region
        $region69: #{tpu_custom_call.1} parent=11 // pred_check
          %p542 = pneg %p395
        $region70: #{tpu_custom_call.1} parent=11 // pred_check_branch
          %544 = sbr.rel (%p542) target = $region72
        $region71: #{tpu_custom_call.1} parent=11 // pred_region
          %p545 = scmp.lt.s32.totalorder %s41, 0
          %s546 = scalar_select %p545, %s41, 0
          %s547 = scalar_lea.vmem %s15, %s546
        $region72: #{tpu_custom_call.1} parent=11 // pred_fallthru
          _
      $region12: #{tpu_custom_call.1} parent=5 // pred_fallthru
        _
      %p548 = scmp.lt.s32.totalorder %s32, 2
      // Predicated region
      $region73: #{tpu_custom_call.1} parent=5 // pred_check
        %p549 = pneg %p548
      $region74: #{tpu_custom_call.1} parent=5 // pred_check_branch
        %551 = sbr.rel (%p549) target = $region76
      $region75: #{tpu_custom_call.1} parent=5 // pred_region
        // Predicated region
        $region77: #{tpu_custom_call.1} parent=75 // pred_check
          %p552 = pneg %p64
        $region78: #{tpu_custom_call.1} parent=75 // pred_check_branch
          %554 = sbr.rel (%p552) target = $region80
        $region79: #{tpu_custom_call.1} parent=75 // pred_region
          %s555 = sand.u32 %s54, 1
          %s556 = scalar_lea.sflag [#allocation5], %s555
          %s557 = sand.u32 %s54, 1
          %s558 = smul.addr %s557, 8
          %s559 = scalar_lea.vmem [#allocation4], %s558
          %561 = vsyncadd %s556, 0
          %s562 = smul.addr %s40, 8
          %s563 = scalar_lea.hbm %s0, %s562
          %s565 = sshll.u32 %s563, 4
          %s566 = int_to_ptr.hbm [resolvable:$true] %s565
          %s567 = sshll.u32 %s559, 4
          %s568 = int_to_ptr.vmem [resolvable:$true] %s567
          %570 = dma.hbm_to_vmem [thread:$0]  %s566, 128, %s568, %s556
        $region80: #{tpu_custom_call.1} parent=75 // pred_fallthru
          _
      $region76: #{tpu_custom_call.1} parent=5 // pred_fallthru
        _
      %p571 = scmp.le.s32.totalorder 1, %s32
      %p572 = scmp.lt.s32.totalorder %s32, 3
      %p573 = pnand %p571, %p572
      %p574 = pneg %p573
      // Predicated region
      $region81: #{tpu_custom_call.1} parent=5 // pred_check
        _
      $region82: #{tpu_custom_call.1} parent=5 // pred_check_branch
        %576 = sbr.rel (%p573) target = $region84
      $region83: #{tpu_custom_call.1} parent=5 // pred_region
        %s577 = ssub.s32 %s32, 1
        %s578 = sand.u32 %s57, 1
        %s579 = scalar_lea.sflag [#allocation5], %s578
        %s580 = sand.u32 %s57, 1
        %s581 = smul.addr %s580, 8
        %s582 = scalar_lea.vmem [#allocation4], %s581
        // Predicated region
        $region85: #{tpu_custom_call.1} parent=83 // pred_check
          %p583 = pneg %p70
        $region86: #{tpu_custom_call.1} parent=83 // pred_check_branch
          %585 = sbr.rel (%p583) target = $region88
        $region87: #{tpu_custom_call.1} parent=83 // pred_region
          %587 = dma.done %s579, 128
        $region88: #{tpu_custom_call.1} parent=83 // pred_fallthru
          _
        // Predicated region
        $region89: #{tpu_custom_call.1} parent=83 // pred_check
          %p588 = pneg %p91
        $region90: #{tpu_custom_call.1} parent=83 // pred_check_branch
          %590 = sbr.rel (%p588) target = $region92
        $region91: #{tpu_custom_call.1} parent=83 // pred_region
          %592 = dma.done [#allocation8], 128
        $region92: #{tpu_custom_call.1} parent=83 // pred_fallthru
          _
        // Predicated region
        $region93: #{tpu_custom_call.1} parent=83 // pred_check
          %p593 = pneg %p112
        $region94: #{tpu_custom_call.1} parent=83 // pred_check_branch
          %595 = sbr.rel (%p593) target = $region96
        $region95: #{tpu_custom_call.1} parent=83 // pred_region
          %597 = dma.done [#allocation8], 128
        $region96: #{tpu_custom_call.1} parent=83 // pred_fallthru
          _
        // Predicated region
        $region97: #{tpu_custom_call.1} parent=83 // pred_check
          %p598 = pneg %p133
        $region98: #{tpu_custom_call.1} parent=83 // pred_check_branch
          %600 = sbr.rel (%p598) target = $region100
        $region99: #{tpu_custom_call.1} parent=83 // pred_region
          %602 = dma.done [#allocation11], 128
        $region100: #{tpu_custom_call.1} parent=83 // pred_fallthru
          _
        // Predicated region
        $region101: #{tpu_custom_call.1} parent=83 // pred_check
          %p603 = pneg %p259
        $region102: #{tpu_custom_call.1} parent=83 // pred_check_branch
          %605 = sbr.rel (%p603) target = $region104
        $region103: #{tpu_custom_call.1} parent=83 // pred_region
          %607 = dma.done [#allocation11], 512
        $region104: #{tpu_custom_call.1} parent=83 // pred_fallthru
          _
        // Predicated region
        $region105: #{tpu_custom_call.1} parent=83 // pred_check
          %p608 = pneg %p301
        $region106: #{tpu_custom_call.1} parent=83 // pred_check_branch
          %610 = sbr.rel (%p608) target = $region108
        $region107: #{tpu_custom_call.1} parent=83 // pred_region
          %612 = dma.done [#allocation14], 512
        $region108: #{tpu_custom_call.1} parent=83 // pred_fallthru
          _
        // Predicated region
        $region109: #{tpu_custom_call.1} parent=83 // pred_check
          %p613 = pneg %p369
        $region110: #{tpu_custom_call.1} parent=83 // pred_check_branch
          %615 = sbr.rel (%p613) target = $region112
        $region111: #{tpu_custom_call.1} parent=83 // pred_region
          %617 = dma.done [#allocation14], 512
        $region112: #{tpu_custom_call.1} parent=83 // pred_fallthru
          _
        %s618 = sand.u32 %s57, 1
        %s619 = scalar_lea.sflag [#allocation5], %s618
        %s620 = sand.u32 %s57, 1
        %s621 = smul.addr %s620, 8
        %s622 = scalar_lea.vmem [#allocation4], %s621
        %p623 = pneg %p70
        %p624 = pneg %p67
        %p625 = pneg %p91
        %p626 = pneg %p88
        %p627 = pneg %p112
        %p628 = pneg %p109
        %p629 = pneg %p133
        %p630 = pneg %p130
        %p631 = pneg %p154
        %p632 = pneg %p151
        %p633 = pneg %p175
        %p634 = pneg %p172
        %p635 = pneg %p196
        %p636 = pneg %p193
        %p637 = pneg %p217
        %p638 = pneg %p214
        %p639 = pneg %p238
        %p640 = pneg %p235
        %p641 = pneg %p259
        %p642 = pneg %p256
        %p643 = pneg %p280
        %p644 = pneg %p277
        %p645 = pneg %p301
        %p646 = pneg %p298
        %p647 = pneg %p322
        %p648 = pneg %p319
        %p649 = pneg %p343
        %p650 = pneg %p340
        %p651 = pneg %p369
        %p652 = pneg %p366
        %p653 = scmp.lt.s32.totalorder %s41, 0
        %s654 = scalar_select %p653, %s41, 0
        %s655 = scalar_lea.vmem %s15, %s654
        %p656 = pneg %p395
        %p657 = pneg %p392
        %p658 = pneg %p423
        %p659 = pneg %p420
        %s660 = sand.u32 %s410, 1
        %s661 = scalar_lea.sflag [#allocation6], %s660
        %s662 = sand.u32 %s410, 1
        %s663 = smul.addr %s662, 8
        %s664 = scalar_lea.vmem [#allocation16], %s663
        %p665 = scmp.lt.s32.totalorder %s41, 0
        %s666 = scalar_select %p665, %s41, 0
        %s667 = scalar_lea.vmem %s15, %s666
        %p668 = scmp.eq.s32.totalorder %s41, 0
        // Predicated region
        $region113: #{tpu_custom_call.1} parent=83 // pred_check
          %p669 = pneg %p668
        $region114: #{tpu_custom_call.1} parent=83 // pred_check_branch
          %671 = sbr.rel (%p669) target = $region116
        $region115: #{tpu_custom_call.1} parent=83 // pred_region
          %v672 = vld [vmem:[%s582] sm:$0xff]
          %v673 = vld [vmem:[#allocation7] sm:$0xff]
          %v674 = vld [vmem:[#allocation9] sm:$0xff]
          %v675 = vld [vmem:[#allocation10] sm:$0xff]
          %v676 = vmul.f32 %v672, %v672
          %vm677 = vcmask 261120
          %v678 = vsel %vm677, %v676, 0.0
          %679 = vadd.xlane.f32.xlu0 %v678
          %v680 = vpop.xlane.xlu0 %679
          %v681 = vrot.slane %v680, 4
          %v682 = vadd.f32 %v680, %v681
          %v683 = vrot.slane %v682, 2
          %v684 = vadd.f32 %v682, %v683
          %v685 = vrot.slane %v684, 1
          %v686 = vadd.f32 %v684, %v685
          %s687 = vtos %v686
          %s688 = smul.f32 %s687, 0.00390625
          %v689 = vstv %s688
          %v690 = vrsqrt.pop %v689
          %v691 = vmul.f32 %v690, %v689
          %v692 = vmul.f32 %v691, %v690
          %v693 = vmul.f32 0.5, %v692
          %v694 = vsub.f32 1.5, %v693
          %v695 = vmul.f32 %v690, %v694
          %vm696 = vweird.f32 %v689
          %vm697 = vweird.f32 %v690
          %vm698 = vmor %vm696, %vm697
          %v699 = vsel %vm698, %v690, %v695
          %s700 = vtos %v699
          %v701 = vstv %s700
          %v702 = vmul.f32 %v672, %v701
          %v703 = vmul.f32 %v673, %v702
          %v704 = vld [vmem:[%s4] sm:$0xff]
          %v705 = vld [vmem:[%s4 + $0x8] sm:$0xff]
          %v706 = vld [vmem:[%s4 + $0x10] sm:$0xff]
          %v707 = vld [vmem:[%s4 + $0x18] sm:$0xff]
          %v708 = vld [vmem:[%s4 + $0x20] sm:$0xff]
          %v709 = vld [vmem:[%s4 + $0x28] sm:$0xff]
          %v710 = vld [vmem:[%s4 + $0x30] sm:$0xff]
          %v711 = vld [vmem:[%s4 + $0x38] sm:$0xff]
          %v713 = vsel %vm677, %v703, 0
          %715 = vmatpush.msra.mxu0 0.0
          %716 = vmatpush.msra.mxu0 0.0
          %717 = vmatpush.msra.mxu0 0.0
          %718 = vmatpush.msra.mxu0 0.0
          %719 = vmatpush.msra.mxu0 0.0
          %720 = vmatpush.msra.mxu0 0.0
          %721 = vmatpush.msra.mxu0 0.0
          %722 = vmatpush.msra.mxu0 0.0
          %723 = vmatpush.msra.mxu0 0.0
          %724 = vmatpush.msra.mxu0 0.0
          %725 = vmatpush.msra.mxu0 0.0
          %726 = vmatpush.msra.mxu0 0.0
          %727 = vmatpush.msra.mxu0 %v710
          %728 = vmatpush.msra.mxu0 %v708
          %729 = vmatpush.msra.mxu0 %v706
          %730 = vmatpush.msra.mxu0 %v704
          %731 = vmatmul.f32.gmra.mxu0 %v713
          %v732 = vpop.f32.mrf.mxu0
          %v733 = vadd.f32 0.0, %v732
          %734 = vdwg.mxu0
          %735 = vmatpush.msra.mxu0 0.0
          %736 = vmatpush.msra.mxu0 0.0
          %737 = vmatpush.msra.mxu0 0.0
          %738 = vmatpush.msra.mxu0 0.0
          %739 = vmatpush.msra.mxu0 0.0
          %740 = vmatpush.msra.mxu0 0.0
          %741 = vmatpush.msra.mxu0 0.0
          %742 = vmatpush.msra.mxu0 0.0
          %743 = vmatpush.msra.mxu0 0.0
          %744 = vmatpush.msra.mxu0 0.0
          %745 = vmatpush.msra.mxu0 0.0
          %746 = vmatpush.msra.mxu0 0.0
          %747 = vmatpush.msra.mxu0 %v711
          %748 = vmatpush.msra.mxu0 %v709
          %749 = vmatpush.msra.mxu0 %v707
          %750 = vmatpush.msra.mxu0 %v705
          %751 = vmatmul.f32.gmra.mxu0 %v713
          %v752 = vpop.f32.mrf.mxu0
          %v753 = vadd.f32 0.0, %v752
          %754 = vdwg.mxu0
          %v755 = vlaneseq
          %v756 = vshrl.u32 %v755, 7
          %v757 = vlaneseq
          %v758 = vand.u32 %v757, 127
          %vm759 = vcmp.ge.s32.totalorder %v756, %v758
          %v760 = vmul.f32 %v733, %v674
          %762 = vrot.lane.b32.xlu0 %v733, 112
          %v763 = vpop.permute.xlu0 %762
          %765 = vrot.lane.b32.xlu0 %v733, 16
          %v766 = vpop.permute.xlu0 %765
          %vm768 = vcmask 130048
          %v769 = vsel %vm768, %v763, %v766
          %v770 = vmul.f32 %v769, %v675
          %v771 = vadd.f32 %v760, %v770
          %773 = vrot.lane.b32.xlu0 %v674, 64
          %v774 = vpop.permute.xlu0 %773
          %v776 = vmul.f32 %v733, %v774
          %777 = vrot.lane.b32.xlu0 %v733, 48
          %v778 = vpop.permute.xlu0 %777
          %780 = vrot.lane.b32.xlu0 %v733, 80
          %v781 = vpop.permute.xlu0 %780
          %v783 = vsel %vm768, %v778, %v781
          %v784 = vmul.f32 %v783, %v675
          %786 = vrot.lane.b32.xlu0 %v784, 64
          %v787 = vpop.permute.xlu0 %786
          %v789 = vadd.f32 %v776, %v787
          %791 = vrot.lane.b32.xlu0 %v789, 64
          %v792 = vpop.permute.xlu0 %791
          %v794 = vsel %vm677, %v771, 0
          %v796 = vsel %vm677, %v792, 0
          %798 = vmatpush.xpose.msra.mxu0 0.0
          %799 = vmatpush.xpose.msra.mxu0 0.0
          %800 = vmatpush.xpose.msra.mxu0 0.0
          %801 = vmatpush.xpose.msra.mxu0 0.0
          %802 = vmatpush.xpose.msra.mxu0 0.0
          %803 = vmatpush.xpose.msra.mxu0 0.0
          %804 = vmatpush.xpose.msra.mxu0 0.0
          %805 = vmatpush.xpose.msra.mxu0 0.0
          %806 = vmatpush.xpose.msra.mxu0 0.0
          %807 = vmatpush.xpose.msra.mxu0 0.0
          %808 = vmatpush.xpose.msra.mxu0 0.0
          %809 = vmatpush.xpose.msra.mxu0 0.0
          %810 = vmatpush.xpose.msra.mxu0 0.0
          %811 = vmatpush.xpose.msra.mxu0 0.0
          %812 = vmatpush.xpose.msra.mxu0 0.0
          %813 = vmatpush.xpose.msra.mxu0 %v796
          %814 = vmatmul.f32.gmra.mxu0 %v794
          %v815 = vpop.f32.mrf.mxu0
          %v816 = vadd.f32 0.0, %v815
          %817 = vdwg.mxu0
          %v818 = vsel %vm759, %v816, -1e+30
          %vm819 = vcmask 64512
          %v820 = vsel %vm819, %v818, -inf
          %821 = vmax.xlane.f32.xlu0 %v820
          %v822 = vpop.xlane.xlu0 %821
          %v823 = vsub.f32 %v818, %v822
          %v824 = vmul.f32 %v823, 1.442695
          %v825 = vpow.pop %v824
          %v826 = vsel %vm819, %v825, 0.0
          %827 = vadd.xlane.f32.xlu0 %v826
          %v828 = vpop.xlane.xlu0 %827
          %v829 = vrcp.pop %v828
          %v830 = vmul.f32 %v825, %v829
          %v832 = vsel %vm819, %v830, 0
          %834 = vmatpush.msra.mxu0 0.0
          %835 = vmatpush.msra.mxu0 0.0
          %836 = vmatpush.msra.mxu0 0.0
          %837 = vmatpush.msra.mxu0 0.0
          %838 = vmatpush.msra.mxu0 0.0
          %839 = vmatpush.msra.mxu0 0.0
          %840 = vmatpush.msra.mxu0 0.0
          %841 = vmatpush.msra.mxu0 0.0
          %842 = vmatpush.msra.mxu0 0.0
          %843 = vmatpush.msra.mxu0 0.0
          %844 = vmatpush.msra.mxu0 0.0
          %845 = vmatpush.msra.mxu0 0.0
          %846 = vmatpush.msra.mxu0 0.0
          %847 = vmatpush.msra.mxu0 0.0
          %848 = vmatpush.msra.mxu0 0.0
          %849 = vmatpush.msra.mxu0 %v753
          %850 = vmatmul.f32.gmra.mxu0 %v832
          %v851 = vpop.f32.mrf.mxu0
          %v852 = vadd.f32 0.0, %v851
          %853 = vdwg.mxu0
          %854 = vrot.lane.b32.xlu0 %v674, 32
          %v855 = vpop.permute.xlu0 %854
          %v857 = vmul.f32 %v733, %v855
          %v858 = vsel %vm768, %v781, %v763
          %v859 = vmul.f32 %v858, %v675
          %861 = vrot.lane.b32.xlu0 %v859, 32
          %v862 = vpop.permute.xlu0 %861
          %v864 = vadd.f32 %v857, %v862
          %865 = vrot.lane.b32.xlu0 %v674, 96
          %v866 = vpop.permute.xlu0 %865
          %v868 = vmul.f32 %v733, %v866
          %v869 = vsel %vm768, %v766, %v778
          %v870 = vmul.f32 %v869, %v675
          %872 = vrot.lane.b32.xlu0 %v870, 96
          %v873 = vpop.permute.xlu0 %872
          %v875 = vadd.f32 %v868, %v873
          %877 = vrot.lane.b32.xlu0 %v864, 96
          %v878 = vpop.permute.xlu0 %877
          %880 = vrot.lane.b32.xlu0 %v875, 32
          %v881 = vpop.permute.xlu0 %880
          %v882 = vsel %vm677, %v878, 0
          %v884 = vsel %vm677, %v881, 0
          %886 = vmatpush.xpose.msra.mxu0 0.0
          %887 = vmatpush.xpose.msra.mxu0 0.0
          %888 = vmatpush.xpose.msra.mxu0 0.0
          %889 = vmatpush.xpose.msra.mxu0 0.0
          %890 = vmatpush.xpose.msra.mxu0 0.0
          %891 = vmatpush.xpose.msra.mxu0 0.0
          %892 = vmatpush.xpose.msra.mxu0 0.0
          %893 = vmatpush.xpose.msra.mxu0 0.0
          %894 = vmatpush.xpose.msra.mxu0 0.0
          %895 = vmatpush.xpose.msra.mxu0 0.0
          %896 = vmatpush.xpose.msra.mxu0 0.0
          %897 = vmatpush.xpose.msra.mxu0 0.0
          %898 = vmatpush.xpose.msra.mxu0 0.0
          %899 = vmatpush.xpose.msra.mxu0 0.0
          %900 = vmatpush.xpose.msra.mxu0 0.0
          %901 = vmatpush.xpose.msra.mxu0 %v884
          %902 = vmatmul.f32.gmra.mxu0 %v882
          %v903 = vpop.f32.mrf.mxu0
          %v904 = vadd.f32 0.0, %v903
          %905 = vdwg.mxu0
          %v906 = vsel %vm759, %v904, -1e+30
          %v907 = vsel %vm819, %v906, -inf
          %908 = vmax.xlane.f32.xlu0 %v907
          %v909 = vpop.xlane.xlu0 %908
          %v910 = vsub.f32 %v906, %v909
          %v911 = vmul.f32 %v910, 1.442695
          %v912 = vpow.pop %v911
          %v913 = vsel %vm819, %v912, 0.0
          %914 = vadd.xlane.f32.xlu0 %v913
          %v915 = vpop.xlane.xlu0 %914
          %v916 = vrcp.pop %v915
          %v917 = vmul.f32 %v912, %v916
          %919 = vrot.lane.b32.xlu0 %v753, 96
          %v920 = vpop.permute.xlu0 %919
          %v923 = vsel %vm819, %v917, 0
          %925 = vmatpush.msra.mxu0 0.0
          %926 = vmatpush.msra.mxu0 0.0
          %927 = vmatpush.msra.mxu0 0.0
          %928 = vmatpush.msra.mxu0 0.0
          %929 = vmatpush.msra.mxu0 0.0
          %930 = vmatpush.msra.mxu0 0.0
          %931 = vmatpush.msra.mxu0 0.0
          %932 = vmatpush.msra.mxu0 0.0
          %933 = vmatpush.msra.mxu0 0.0
          %934 = vmatpush.msra.mxu0 0.0
          %935 = vmatpush.msra.mxu0 0.0
          %936 = vmatpush.msra.mxu0 0.0
          %937 = vmatpush.msra.mxu0 0.0
          %938 = vmatpush.msra.mxu0 0.0
          %939 = vmatpush.msra.mxu0 0.0
          %940 = vmatpush.msra.mxu0 %v920
          %941 = vmatmul.f32.gmra.mxu0 %v923
          %v942 = vpop.f32.mrf.mxu0
          %v943 = vadd.f32 0.0, %v942
          %944 = vdwg.mxu0
          %946 = vrot.lane.b32.xlu0 %v943, 32
          %v947 = vpop.permute.xlu0 %946
          %v949 = vsel %vm677, %v852, %v947
          %v950 = vld [vmem:[%s5] sm:$0xff]
          %v951 = vld [vmem:[%s5 + $0x8] sm:$0xff]
          %v952 = vld [vmem:[%s5 + $0x10] sm:$0xff]
          %v953 = vld [vmem:[%s5 + $0x18] sm:$0xff]
          %v954 = vld [vmem:[%s5 + $0x20] sm:$0xff]
          %v955 = vld [vmem:[%s5 + $0x28] sm:$0xff]
          %v956 = vld [vmem:[%s5 + $0x30] sm:$0xff]
          %v957 = vld [vmem:[%s5 + $0x38] sm:$0xff]
          %v958 = vld [vmem:[%s6] sm:$0x1]
          %v960 = vperm.slane %v958, 0
          %vm962 = vcmask 523264
          %v964 = vsel %vm962, %v949, 0
          %966 = vmatpush.msra.mxu0 0.0
          %967 = vmatpush.msra.mxu0 0.0
          %968 = vmatpush.msra.mxu0 0.0
          %969 = vmatpush.msra.mxu0 0.0
          %970 = vmatpush.msra.mxu0 0.0
          %971 = vmatpush.msra.mxu0 0.0
          %972 = vmatpush.msra.mxu0 0.0
          %973 = vmatpush.msra.mxu0 0.0
          %974 = vmatpush.msra.mxu0 %v957
          %975 = vmatpush.msra.mxu0 %v956
          %976 = vmatpush.msra.mxu0 %v955
          %977 = vmatpush.msra.mxu0 %v954
          %978 = vmatpush.msra.mxu0 %v953
          %979 = vmatpush.msra.mxu0 %v952
          %980 = vmatpush.msra.mxu0 %v951
          %981 = vmatpush.msra.mxu0 %v950
          %982 = vmatmul.f32.gmra.mxu0 %v964
          %v983 = vpop.f32.mrf.mxu0
          %v984 = vadd.f32 %v960, %v983
          %985 = vdwg.mxu0
          %v986 = vadd.f32 %v703, %v984
          %v987 = vmul.f32 %v986, %v986
          %v988 = vsel %vm677, %v987, 0.0
          %989 = vadd.xlane.f32.xlu0 %v988
          %v990 = vpop.xlane.xlu0 %989
          %v991 = vrot.slane %v990, 4
          %v992 = vadd.f32 %v990, %v991
          %v993 = vrot.slane %v992, 2
          %v994 = vadd.f32 %v992, %v993
          %v995 = vrot.slane %v994, 1
          %v996 = vadd.f32 %v994, %v995
          %s997 = vtos %v996
          %s998 = smul.f32 %s997, 0.00390625
          %v999 = vstv %s998
          %v1000 = vrsqrt.pop %v999
          %v1001 = vmul.f32 %v1000, %v999
          %v1002 = vmul.f32 %v1001, %v1000
          %v1003 = vmul.f32 0.5, %v1002
          %v1004 = vsub.f32 1.5, %v1003
          %v1005 = vmul.f32 %v1000, %v1004
          %vm1006 = vweird.f32 %v999
          %vm1007 = vweird.f32 %v1000
          %vm1008 = vmor %vm1006, %vm1007
          %v1009 = vsel %vm1008, %v1000, %v1005
          %s1010 = vtos %v1009
          %v1011 = vstv %s1010
          %v1012 = vmul.f32 %v986, %v1011
          %v1013 = vmul.f32 %v673, %v1012
          %v1014 = vld [vmem:[%s7] sm:$0xff]
          %v1015 = vld [vmem:[%s7 + $0x8] sm:$0xff]
          %v1016 = vld [vmem:[%s7 + $0x10] sm:$0xff]
          %v1017 = vld [vmem:[%s7 + $0x18] sm:$0xff]
          %v1018 = vld [vmem:[%s8] sm:$0x1]
          %v1020 = vperm.slane %v1018, 0
          %v1023 = vsel %vm677, %v1013, 0
          %1025 = vmatpush.msra.mxu0 0.0
          %1026 = vmatpush.msra.mxu0 0.0
          %1027 = vmatpush.msra.mxu0 0.0
          %1028 = vmatpush.msra.mxu0 0.0
          %1029 = vmatpush.msra.mxu0 0.0
          %1030 = vmatpush.msra.mxu0 0.0
          %1031 = vmatpush.msra.mxu0 0.0
          %1032 = vmatpush.msra.mxu0 0.0
          %1033 = vmatpush.msra.mxu0 0.0
          %1034 = vmatpush.msra.mxu0 0.0
          %1035 = vmatpush.msra.mxu0 0.0
          %1036 = vmatpush.msra.mxu0 0.0
          %1037 = vmatpush.msra.mxu0 %v1017
          %1038 = vmatpush.msra.mxu0 %v1016
          %1039 = vmatpush.msra.mxu0 %v1015
          %1040 = vmatpush.msra.mxu0 %v1014
          %1041 = vmatmul.f32.gmra.mxu0 %v1023
          %v1042 = vpop.f32.mrf.mxu0
          %v1043 = vadd.f32 %v1020, %v1042
          %1044 = vdwg.mxu0
          %v1045 = vld [vmem:[#allocation12] sm:$0xff]
          %v1046 = vld [vmem:[#allocation12 + $0x8] sm:$0xff]
          %v1047 = vld [vmem:[#allocation12 + $0x10] sm:$0xff]
          %v1048 = vld [vmem:[#allocation12 + $0x18] sm:$0xff]
          %v1049 = vld [vmem:[%s10] sm:$0x1]
          %v1051 = vperm.slane %v1049, 0
          %v1054 = vsel %vm677, %v1043, 0
          %1056 = vmatpush.msra.mxu0 0.0
          %1057 = vmatpush.msra.mxu0 0.0
          %1058 = vmatpush.msra.mxu0 0.0
          %1059 = vmatpush.msra.mxu0 0.0
          %1060 = vmatpush.msra.mxu0 0.0
          %1061 = vmatpush.msra.mxu0 0.0
          %1062 = vmatpush.msra.mxu0 0.0
          %1063 = vmatpush.msra.mxu0 0.0
          %1064 = vmatpush.msra.mxu0 0.0
          %1065 = vmatpush.msra.mxu0 0.0
          %1066 = vmatpush.msra.mxu0 0.0
          %1067 = vmatpush.msra.mxu0 0.0
          %1068 = vmatpush.msra.mxu0 %v1048
          %1069 = vmatpush.msra.mxu0 %v1047
          %1070 = vmatpush.msra.mxu0 %v1046
          %1071 = vmatpush.msra.mxu0 %v1045
          %1072 = vmatmul.f32.gmra.mxu0 %v1054
          %v1073 = vpop.f32.mrf.mxu0
          %v1074 = vadd.f32 %v1051, %v1073
          %1075 = vdwg.mxu0
          %v1076 = vld [vmem:[#allocation13] sm:$0xff]
          %v1077 = vld [vmem:[#allocation13 + $0x8] sm:$0xff]
          %v1078 = vld [vmem:[#allocation13 + $0x10] sm:$0xff]
          %v1079 = vld [vmem:[#allocation13 + $0x18] sm:$0xff]
          %v1080 = vld [vmem:[%s12] sm:$0x1]
          %v1082 = vperm.slane %v1080, 0
          %1084 = vmatpush.msra.mxu0 0.0
          %1085 = vmatpush.msra.mxu0 0.0
          %1086 = vmatpush.msra.mxu0 0.0
          %1087 = vmatpush.msra.mxu0 0.0
          %1088 = vmatpush.msra.mxu0 0.0
          %1089 = vmatpush.msra.mxu0 0.0
          %1090 = vmatpush.msra.mxu0 0.0
          %1091 = vmatpush.msra.mxu0 0.0
          %1092 = vmatpush.msra.mxu0 0.0
          %1093 = vmatpush.msra.mxu0 0.0
          %1094 = vmatpush.msra.mxu0 0.0
          %1095 = vmatpush.msra.mxu0 0.0
          %1096 = vmatpush.msra.mxu0 %v1079
          %1097 = vmatpush.msra.mxu0 %v1078
          %1098 = vmatpush.msra.mxu0 %v1077
          %1099 = vmatpush.msra.mxu0 %v1076
          %1100 = vmatmul.f32.gmra.mxu0 %v1054
          %v1101 = vpop.f32.mrf.mxu0
          %v1102 = vadd.f32 %v1082, %v1101
          %1103 = vdwg.mxu0
          %s1104 = sld [smem:[#allocation3]]
          %v1105 = vstv %s1104
          %v1106 = vmul.f32 %v1105, %v1074
          %v1107 = vxor.u32 %v1106, 2147483648
          %v1108 = vmul.f32 %v1107, 1.442695
          %v1109 = vpow.pop %v1108
          %v1110 = vadd.f32 %v1109, 1.0
          %v1111 = vrcp.pop %v1110
          %v1112 = vmul.f32 %v1110, %v1111
          %v1113 = vsub.f32 1.0, %v1112
          %v1114 = vmul.f32 %v1111, %v1113
          %v1115 = vadd.f32 %v1111, %v1114
          %vm1116 = vweird.f32 %v1110
          %vm1117 = vweird.f32 %v1111
          %vm1118 = vmor %vm1116, %vm1117
          %v1119 = vsel %vm1118, %v1111, %v1115
          %v1120 = vand.u32 2147483647, %v1110
          %vm1121 = vcmp.eq.f32.partialorder %v1120, 8.507059e+37
          %v1122 = vand.u32 %v1110, 2147483648
          %v1123 = vor.u32 1.1754944e-38, %v1122
          %v1124 = vsel %vm1121, %v1123, %v1119
          %v1125 = vmul.f32 1.0, %v1124
          %v1126 = vmul.f32 %v1074, %v1125
          %v1127 = vmul.f32 %v1126, %v1102
          %v1128 = vadd.f32 %v1013, %v1127
          %s1129 = smul.u32 %s42, 8
          %s1130 = scalar_lea.vmem [#allocation2], %s1129
          %1131 = vst.msk [vmem:[%s1130] sm:$0xff] %vm677, %v1128
        $region116: #{tpu_custom_call.1} parent=83 // pred_fallthru
          _
        %s1132 = smul.u32 %s42, 8
        %s1133 = scalar_lea.vmem [#allocation2], %s1132
        %v1134 = vld [vmem:[%s1133] sm:$0xff]
        %v1135 = vld [vmem:[#allocation15] sm:$0xff]
        %v1136 = vld [vmem:[#allocation15 + $0x8] sm:$0xff]
        %v1137 = vld [vmem:[#allocation15 + $0x10] sm:$0xff]
        %v1138 = vld [vmem:[#allocation15 + $0x18] sm:$0xff]
        %v1139 = vld [vmem:[%s667] sm:$0x1]
        %v1141 = vperm.slane %v1139, 0
        %vm1143 = vcmask 261120
        %v1145 = vsel %vm1143, %v1134, 0
        %1147 = vmatpush.msra.mxu0 0.0
        %1148 = vmatpush.msra.mxu0 0.0
        %1149 = vmatpush.msra.mxu0 0.0
        %1150 = vmatpush.msra.mxu0 0.0
        %1151 = vmatpush.msra.mxu0 0.0
        %1152 = vmatpush.msra.mxu0 0.0
        %1153 = vmatpush.msra.mxu0 0.0
        %1154 = vmatpush.msra.mxu0 0.0
        %1155 = vmatpush.msra.mxu0 0.0
        %1156 = vmatpush.msra.mxu0 0.0
        %1157 = vmatpush.msra.mxu0 0.0
        %1158 = vmatpush.msra.mxu0 0.0
        %1159 = vmatpush.msra.mxu0 %v1138
        %1160 = vmatpush.msra.mxu0 %v1137
        %1161 = vmatpush.msra.mxu0 %v1136
        %1162 = vmatpush.msra.mxu0 %v1135
        %1163 = vmatmul.f32.gmra.mxu0 %v1145
        %v1164 = vpop.f32.mrf.mxu0
        %v1165 = vadd.f32 %v1141, %v1164
        %1166 = vdwg.mxu0
        %1167 = vst [vmem:[%s664] sm:$0xff] %v1165
        %s1168 = sand.u32 %s410, 1
        %s1169 = scalar_lea.sflag [#allocation6], %s1168
        %s1170 = sand.u32 %s410, 1
        %s1171 = smul.addr %s1170, 8
        %s1172 = scalar_lea.vmem [#allocation16], %s1171
        // Predicated region
        $region117: #{tpu_custom_call.1} parent=83 // pred_check
          %p1173 = pneg %p420
        $region118: #{tpu_custom_call.1} parent=83 // pred_check_branch
          %1175 = sbr.rel (%p1173) target = $region120
        $region119: #{tpu_custom_call.1} parent=83 // pred_region
          %1177 = vsyncadd %s1169, 0
          %s1178 = sadd.s32 %s41, %s42
          %s1179 = smul.addr %s1178, 8
          %s1180 = scalar_lea.hbm %s16, %s1179
          %s1182 = sshll.u32 %s1172, 4
          %s1183 = int_to_ptr.vmem [resolvable:$true] %s1182
          %s1184 = sshll.u32 %s1180, 4
          %s1185 = int_to_ptr.hbm [resolvable:$true] %s1184
          %1187 = dma.vmem_to_hbm [thread:$0]  %s1183, 128, %s1185, %s1169
        $region120: #{tpu_custom_call.1} parent=83 // pred_fallthru
          _
      $region84: #{tpu_custom_call.1} parent=5 // pred_fallthru
        _
      %p1188 = scmp.le.s32.totalorder 2, %s32
      // Predicated region
      $region121: #{tpu_custom_call.1} parent=5 // pred_check
        %p1189 = pneg %p1188
      $region122: #{tpu_custom_call.1} parent=5 // pred_check_branch
        %1191 = sbr.rel (%p1189) target = $region124
      $region123: #{tpu_custom_call.1} parent=5 // pred_region
        %s1192 = ssub.s32 %s32, 2
        // Predicated region
        $region125: #{tpu_custom_call.1} parent=123 // pred_check
          %p1193 = pneg %p426
        $region126: #{tpu_custom_call.1} parent=123 // pred_check_branch
          %1195 = sbr.rel (%p1193) target = $region128
        $region127: #{tpu_custom_call.1} parent=123 // pred_region
          %s1196 = sand.u32 %s411, 1
          %s1197 = scalar_lea.sflag [#allocation6], %s1196
          %s1198 = sand.u32 %s411, 1
          %s1199 = smul.addr %s1198, 8
          %s1200 = scalar_lea.vmem [#allocation16], %s1199
          %1202 = dma.done %s1197, 128
        $region128: #{tpu_custom_call.1} parent=123 // pred_fallthru
          _
      $region124: #{tpu_custom_call.1} parent=5 // pred_fallthru
        _
    $region6: #{tpu_custom_call.1} parent=1 // loop_footer
      %s36 = sadd.s32 1, %s32
    $region7: #{tpu_custom_call.1} parent=1 // loop_footer_branch
      %31 = sbr.rel target = $region3
    $region8: #{tpu_custom_call.1} parent=1 // loop_exit
      _
    %1203 = vsyncpa [#allocation5], 1
    %s1204 = scalar_lea.sflag [#allocation5], 1
    %1205 = vsyncpa %s1204, 1
    %1206 = vsyncpa [#allocation8], 1
    %1207 = vsyncpa [#allocation11], 1
    %1208 = vsyncpa [#allocation14], 1
    %1209 = vsyncpa [#allocation6], 1
    %s1210 = scalar_lea.sflag [#allocation6], 1
    %1211 = vsyncpa %s1210, 1

</llo_original>
